<compile_context>
chip_gen: v5e
topology: v5e:2x2
jax: 0.10.0
libtpu: 0.0.40
codegen_flags: <defaults>
</compile_context>

<pallas_src>
import functools
import math

import jax
import jax.numpy as jnp
from jax import lax
from jax.experimental import pallas as pl
from jax.experimental.pallas import tpu as pltpu
import numpy as np

LN_EPS = 1e-5
_HI = lax.Precision.HIGHEST
_INV_SQRT2 = 1.0 / math.sqrt(2.0)


# ---------------------------------------------------------------------------
# In-kernel helpers
# ---------------------------------------------------------------------------
def _dot(a, b):
    return jnp.dot(a, b, preferred_element_type=jnp.float32, precision=_HI)


def _layer_norm(x, gamma, beta):
    mu = jnp.mean(x, axis=-1, keepdims=True)
    var = jnp.mean((x - mu) * (x - mu), axis=-1, keepdims=True)
    return (x - mu) * lax.rsqrt(var + LN_EPS) * gamma + beta


def _erf(x):
    # Abramowitz & Stegun 7.1.26, |err| < 1.5e-7.  Uses only mul/add/exp/div,
    # all of which lower cleanly in Mosaic.
    p = 0.3275911
    a1, a2, a3, a4, a5 = (0.254829592, -0.284496736, 1.421413741,
                          -1.453152027, 1.061405429)
    sgn = jnp.where(x >= 0.0, 1.0, -1.0)
    ax = jnp.abs(x)
    t = 1.0 / (1.0 + p * ax)
    poly = ((((a5 * t + a4) * t + a3) * t + a2) * t + a1) * t
    return sgn * (1.0 - poly * jnp.exp(-ax * ax))


def _gelu(x):  # exact GELU (PyTorch nn.GELU default, approximate='none')
    return 0.5 * x * (1.0 + _erf(x * _INV_SQRT2))


# ---------------------------------------------------------------------------
# Pallas kernels
# ---------------------------------------------------------------------------
def _patch_embed_kernel(p_ref, w_ref, b_ref, o_ref):
    """patch_to_embedding: (1, N, patch_dim) @ (patch_dim, dim) + bias."""
    o_ref[0] = (_dot(p_ref[0], w_ref[...]) + b_ref[...]).astype(o_ref.dtype)


def _fnet_block_kernel(x_ref, g_ref, be_ref,
                       fc1_ref, fs1_ref, fc2_ref, fs2_ref, o_ref):
    """PreNorm + FNetBlock(p=1) + residual, fully fused per batch element.

    x_ref : (1, S, D) residual-stream input
    g/be  : (1, D)    LayerNorm affine
    fc1/fs1: (D, D)   cos/sin DFT matrices for the last-dim FFT
    fc2/fs2: (S, S)   cos/sin DFT matrices for the seq-dim FFT
    """
    x = x_ref[0]
    h = _layer_norm(x, g_ref[...], be_ref[...])
    h = h + 0.1 * h * h                              # x + p*0.1*x*x, p=1 (real)

    # fft(., dim=-1): complex result yr + i*yi  (exp(-2*pi*i*j*k/D) convention)
    yr = _dot(h, fc1_ref[...])
    yi = -_dot(h, fs1_ref[...])

    # u = y + 0.1*y*y  (complex square)
    ur = yr + 0.1 * (yr * yr - yi * yi)
    ui = yi + 0.2 * (yr * yi)

    # real(fft(u, dim=-2)) = Fc2 @ ur + Fs2 @ ui
    z = _dot(fc2_ref[...], ur) + _dot(fs2_ref[...], ui)

    o_ref[0] = (z + x).astype(o_ref.dtype)           # residual add


def _ffn_kernel(x_ref, g_ref, be_ref, w1_ref, b1_ref, w2_ref, b2_ref, o_ref):
    """PreNorm + FeedForward (Linear -> GELU -> Linear) + residual."""
    x = x_ref[0]
    h = _layer_norm(x, g_ref[...], be_ref[...])
    h = _gelu(_dot(h, w1_ref[...]) + b1_ref[...])
    y = _dot(h, w2_ref[...]) + b2_ref[...]
    o_ref[0] = (y + x).astype(o_ref.dtype)


def _head_kernel(x_ref, g_ref, be_ref, w_ref, b_ref, o_ref):
    """mlp_head on cls token: LayerNorm + Linear."""
    h = _layer_norm(x_ref[...], g_ref[...], be_ref[...])
    o_ref[...] = (_dot(h, w_ref[...]) + b_ref[...]).astype(o_ref.dtype)


# ---------------------------------------------------------------------------
# pallas_call wrappers
# ---------------------------------------------------------------------------
_COMPILER_PARAMS = pltpu.CompilerParams(
    dimension_semantics=("parallel",),          # batch grid -> megacore on v7x
    vmem_limit_bytes=32 * 1024 * 1024)          # safe on v7x's 64 MiB VMEM


def _token_spec(s, d):
    return pl.BlockSpec((1, s, d), lambda b: (b, 0, 0))


def _bcast_spec(arr2d):
    return pl.BlockSpec(arr2d.shape, lambda b: (0, 0))


def _batched_call(kernel, x, bcast_args, out_last=None):
    """Grid over batch; per-batch (1,S,D) tile, weights broadcast."""
    B, S, D = x.shape
    d_out = D if out_last is None else out_last
    return pl.pallas_call(
        kernel,
        out_shape=jax.ShapeDtypeStruct((B, S, d_out), jnp.float32),
        grid=(B,),
        in_specs=[_token_spec(S, D)] + [_bcast_spec(a) for a in bcast_args],
        out_specs=_token_spec(S, d_out),
        compiler_params=_COMPILER_PARAMS,
    )(x, *bcast_args)


def _head_call(x_cls, gamma, beta, w, bias):
    B = x_cls.shape[0]
    C = w.shape[1]
    return pl.pallas_call(
        _head_kernel,
        out_shape=jax.ShapeDtypeStruct((B, C), jnp.float32),
        in_specs=[pl.BlockSpec(memory_space=pltpu.MemorySpace.VMEM)
                  for _ in range(5)],
        out_specs=pl.BlockSpec(memory_space=pltpu.MemorySpace.VMEM),
    )(x_cls, gamma, beta, w, bias)


# ---------------------------------------------------------------------------
# Glue + full forward
# ---------------------------------------------------------------------------
def _dft_mats(n):
    """cos/sin DFT matrices (exp(-2*pi*i*j*k/n) = cos - i*sin), f64 -> f32."""
    k = np.arange(n, dtype=np.float64)
    ang = 2.0 * np.pi * np.outer(k, k) / n
    return (jnp.asarray(np.cos(ang), jnp.float32),
            jnp.asarray(np.sin(ang), jnp.float32))


def vit_forward(img, params, *, patch_size):
    B, C, H, W = img.shape
    p = patch_size
    hh, ww = H // p, W // p

    # rearrange 'b c (h p1) (w p2) -> b (h w) (p1 p2 c)'
    patches = img.reshape(B, C, hh, p, ww, p)
    patches = jnp.transpose(patches, (0, 2, 4, 3, 5, 1))
    patches = patches.reshape(B, hh * ww, p * p * C)

    dim = params["w_embed"].shape[1]
    emb = _batched_call(_patch_embed_kernel, patches,
                        [params["w_embed"], params["b_embed"].reshape(1, -1)],
                        out_last=dim)

    cls = jnp.broadcast_to(params["cls_token"], (B, 1, dim))
    x = jnp.concatenate([cls, emb], axis=1) + params["pos_embedding"]
    # emb_dropout = 0.0 -> identity

    S = x.shape[1]
    fc1, fs1 = _dft_mats(dim)   # last-dim FFT
    fc2, fs2 = _dft_mats(S)     # seq-dim FFT

    for lp in params["layers"]:
        x = _batched_call(
            _fnet_block_kernel, x,
            [lp["ln1_g"].reshape(1, -1), lp["ln1_b"].reshape(1, -1),
             fc1, fs1, fc2, fs2])
        x = _batched_call(
            _ffn_kernel, x,
            [lp["ln2_g"].reshape(1, -1), lp["ln2_b"].reshape(1, -1),
             lp["w1"], lp["b1"].reshape(1, -1),
             lp["w2"], lp["b2"].reshape(1, -1)])

    cls_out = x[:, 0]                                   # to_cls_token
    return _head_call(cls_out,
                      params["head_ln_g"].reshape(1, -1),
                      params["head_ln_b"].reshape(1, -1),
                      params["w_head"], params["b_head"].reshape(1, -1))


# ---------------------------------------------------------------------------
# float64 numpy reference (mirrors the PyTorch forward exactly)
# ---------------------------------------------------------------------------
def reference_forward_np(img, params, *, patch_size):
    f64 = lambda a: np.asarray(a, np.float64)
    erf_v = np.vectorize(math.erf)

    def layer_norm(a, g, b):
        mu = a.mean(-1, keepdims=True)
        var = ((a - mu) ** 2).mean(-1, keepdims=True)
        return (a - mu) / np.sqrt(var + LN_EPS) * g + b

    x = f64(img)
    B, C, H, W = x.shape
    p = patch_size
    hh, ww = H // p, W // p
    x = x.reshape(B, C, hh, p, ww, p).transpose(0, 2, 4, 3, 5, 1)
    x = x.reshape(B, hh * ww, p * p * C)

    x = x @ f64(params["w_embed"]) + f64(params["b_embed"])
    dim = x.shape[-1]
    cls = np.broadcast_to(f64(params["cls_token"]), (B, 1, dim))
    x = np.concatenate([cls, x], axis=1) + f64(params["pos_embedding"])

    for lp in params["layers"]:
        h = layer_norm(x, f64(lp["ln1_g"]), f64(lp["ln1_b"]))
        h = h + 0.1 * h * h
        y = np.fft.fft(h, axis=-1)
        u = y + 0.1 * y * y
        x = np.fft.fft(u, axis=-2).real + x

        h = layer_norm(x, f64(lp["ln2_g"]), f64(lp["ln2_b"]))
        h = h @ f64(lp["w1"]) + f64(lp["b1"])
        h = 0.5 * h * (1.0 + erf_v(h * _INV_SQRT2))
        x = h @ f64(lp["w2"]) + f64(lp["b2"]) + x

    c = layer_norm(x[:, 0], f64(params["head_ln_g"]), f64(params["head_ln_b"]))
    return c @ f64(params["w_head"]) + f64(params["b_head"])


# ---------------------------------------------------------------------------
# Parameter init (PyTorch default-style)
# ---------------------------------------------------------------------------
def make_params(key, *, image_size, patch_size, channels, dim, depth,
                mlp_dim, num_classes):
    num_patches = (image_size // patch_size) ** 2
    assert image_size % patch_size == 0
    assert num_patches > 8, "too few patches"
    patch_dim = channels * patch_size ** 2
    seq = num_patches + 1

    keys = iter(jax.random.split(key, 4 + 4 * depth + 2))

    def linear(fan_in, fan_out):
        bound = 1.0 / math.sqrt(fan_in)
        w = jax.random.uniform(next(keys), (fan_in, fan_out), jnp.float32,
                               -bound, bound)
        b = jax.random.uniform(next(keys), (fan_out,), jnp.float32,
                               -bound, bound)
        return w, b

    pos = jax.random.normal(next(keys), (1, seq, dim), jnp.float32)
    cls = jax.random.normal(next(keys), (1, 1, dim), jnp.float32)
    w_embed, b_embed = linear(patch_dim, dim)

    layers = []
    for _ in range(depth):
        w1, b1 = linear(dim, mlp_dim)
        w2, b2 = linear(mlp_dim, dim)
        layers.append(dict(
            ln1_g=jnp.ones((dim,), jnp.float32),
            ln1_b=jnp.zeros((dim,), jnp.float32),
            ln2_g=jnp.ones((dim,), jnp.float32),
            ln2_b=jnp.zeros((dim,), jnp.float32),
            w1=w1, b1=b1, w2=w2, b2=b2))

    w_head, b_head = linear(dim, num_classes)
    return dict(pos_embedding=pos, cls_token=cls,
                w_embed=w_embed, b_embed=b_embed, layers=layers,
                head_ln_g=jnp.ones((dim,), jnp.float32),
                head_ln_b=jnp.zeros((dim,), jnp.float32),
                w_head=w_head, b_head=b_head)


# ---------------------------------------------------------------------------
if __name__ == "__main__":
    IMAGE_SIZE, PATCH_SIZE, CHANNELS = 16, 4, 3      # num_patches = 16 > 8
    DIM, DEPTH, MLP_DIM, NUM_CLASSES = 32, 2, 64, 10
    BATCH = 2

    root = jax.random.PRNGKey(0)
    kx, kp = jax.random.split(root)
    img = jax.random.normal(kx, (BATCH, CHANNELS, IMAGE_SIZE, IMAGE_SIZE),
                            jnp.float32)
    params = make_params(kp, image_size=IMAGE_SIZE, patch_size=PATCH_SIZE,
                         channels=CHANNELS, dim=DIM, depth=DEPTH,
                         mlp_dim=MLP_DIM, num_classes=NUM_CLASSES)

    fwd = jax.jit(functools.partial(vit_forward, patch_size=PATCH_SIZE))
    out = jax.block_until_ready(fwd(img, params))

    assert out.shape == (BATCH, NUM_CLASSES), out.shape

    ref = reference_forward_np(img, params, patch_size=PATCH_SIZE)
    np.testing.assert_allclose(np.asarray(out), ref, rtol=2e-3, atol=2e-3)
    print("KERNEL_OK")
</pallas_src>

<mosaic_0001>
module attributes {stable_mosaic.version = 11 : i64} {
  func.func @_fnet_block_kernel(%arg0: i32, %arg1: memref<1x17x32xf32, #tpu.memory_space<vmem>>, %arg2: memref<1x32xf32, #tpu.memory_space<vmem>>, %arg3: memref<1x32xf32, #tpu.memory_space<vmem>>, %arg4: memref<32x32xf32, #tpu.memory_space<vmem>>, %arg5: memref<32x32xf32, #tpu.memory_space<vmem>>, %arg6: memref<17x17xf32, #tpu.memory_space<vmem>>, %arg7: memref<17x17xf32, #tpu.memory_space<vmem>>, %arg8: memref<1x17x32xf32, #tpu.memory_space<vmem>>) attributes {dimension_semantics = [#tpu.dimension_semantics<parallel>], iteration_bounds = array<i64: 2>, scalar_prefetch = 0 : i64, scratch_operands = 0 : i64, tpu.core_type = #tpu.core_type<tc>, window_params = [{transform_indices = @transform_0, window_bounds = array<i64: 1, 17, 32>}, {pipeline_mode = #tpu.pipeline_mode<synchronous>, transform_indices = @transform_1, window_bounds = array<i64: 1, 32>}, {pipeline_mode = #tpu.pipeline_mode<synchronous>, transform_indices = @transform_2, window_bounds = array<i64: 1, 32>}, {pipeline_mode = #tpu.pipeline_mode<synchronous>, transform_indices = @transform_3, window_bounds = array<i64: 32, 32>}, {pipeline_mode = #tpu.pipeline_mode<synchronous>, transform_indices = @transform_4, window_bounds = array<i64: 32, 32>}, {pipeline_mode = #tpu.pipeline_mode<synchronous>, transform_indices = @transform_5, window_bounds = array<i64: 17, 17>}, {pipeline_mode = #tpu.pipeline_mode<synchronous>, transform_indices = @transform_6, window_bounds = array<i64: 17, 17>}, {transform_indices = @transform_7, window_bounds = array<i64: 1, 17, 32>}]} {
    %c0 = arith.constant 0 : index
    %c0_0 = arith.constant 0 : index
    %c0_1 = arith.constant 0 : index
    %0 = vector.load %arg1[%c0, %c0_0, %c0_1] : memref<1x17x32xf32, #tpu.memory_space<vmem>>, vector<1x17x32xf32>
    %1 = vector.shape_cast %0 : vector<1x17x32xf32> to vector<17x32xf32>
    %c0_2 = arith.constant 0 : index
    %c0_3 = arith.constant 0 : index
    %2 = vector.load %arg2[%c0_2, %c0_3] : memref<1x32xf32, #tpu.memory_space<vmem>>, vector<1x32xf32>
    %c0_4 = arith.constant 0 : index
    %c0_5 = arith.constant 0 : index
    %3 = vector.load %arg3[%c0_4, %c0_5] : memref<1x32xf32, #tpu.memory_space<vmem>>, vector<1x32xf32>
    %cst = arith.constant dense<0.000000e+00> : vector<17xf32>
    %4 = vector.multi_reduction <add>, %1, %cst [1] : vector<17x32xf32> to vector<17xf32>
    %5 = vector.shape_cast %4 : vector<17xf32> to vector<17x1xf32>
    %cst_6 = arith.constant 3.200000e+01 : f32
    %6 = vector.broadcast %cst_6 : f32 to vector<17x1xf32>
    %7 = arith.divf %5, %6 : vector<17x1xf32>
    %8 = vector.broadcast %7 : vector<17x1xf32> to vector<17x32xf32>
    %9 = arith.subf %1, %8 : vector<17x32xf32>
    %10 = vector.broadcast %7 : vector<17x1xf32> to vector<17x32xf32>
    %11 = arith.subf %1, %10 : vector<17x32xf32>
    %12 = arith.mulf %9, %11 : vector<17x32xf32>
    %cst_7 = arith.constant dense<0.000000e+00> : vector<17xf32>
    %13 = vector.multi_reduction <add>, %12, %cst_7 [1] : vector<17x32xf32> to vector<17xf32>
    %14 = vector.shape_cast %13 : vector<17xf32> to vector<17x1xf32>
    %cst_8 = arith.constant 3.200000e+01 : f32
    %15 = vector.broadcast %cst_8 : f32 to vector<17x1xf32>
    %16 = arith.divf %14, %15 : vector<17x1xf32>
    %17 = vector.broadcast %7 : vector<17x1xf32> to vector<17x32xf32>
    %18 = arith.subf %1, %17 : vector<17x32xf32>
    %cst_9 = arith.constant 9.99999974E-6 : f32
    %19 = vector.broadcast %cst_9 : f32 to vector<17x1xf32>
    %20 = arith.addf %16, %19 : vector<17x1xf32>
    %21 = math.rsqrt %20 : vector<17x1xf32>
    %22 = vector.broadcast %21 : vector<17x1xf32> to vector<17x32xf32>
    %23 = arith.mulf %18, %22 : vector<17x32xf32>
    %24 = vector.broadcast %2 : vector<1x32xf32> to vector<17x32xf32>
    %25 = arith.mulf %23, %24 : vector<17x32xf32>
    %26 = vector.broadcast %3 : vector<1x32xf32> to vector<17x32xf32>
    %27 = arith.addf %25, %26 : vector<17x32xf32>
    %cst_10 = arith.constant 1.000000e-01 : f32
    %28 = vector.broadcast %cst_10 : f32 to vector<17x32xf32>
    %29 = arith.mulf %28, %27 : vector<17x32xf32>
    %30 = arith.mulf %29, %27 : vector<17x32xf32>
    %31 = arith.addf %27, %30 : vector<17x32xf32>
    %c0_11 = arith.constant 0 : index
    %c0_12 = arith.constant 0 : index
    %32 = vector.load %arg4[%c0_11, %c0_12] : memref<32x32xf32, #tpu.memory_space<vmem>>, vector<32x32xf32>
    %cst_13 = arith.constant dense<0.000000e+00> : vector<17x32xf32>
    %33 = tpu.matmul %31, %32, %cst_13 {dimension_numbers = #tpu.dot_dimension_numbers<[1], [0], [0], [1], [0, 0, 1, 1], [], []>, precision = #tpu.contract_precision<fp32>} : vector<17x32xf32>, vector<32x32xf32>, vector<17x32xf32> -> vector<17x32xf32>
    %c0_14 = arith.constant 0 : index
    %c0_15 = arith.constant 0 : index
    %34 = vector.load %arg5[%c0_14, %c0_15] : memref<32x32xf32, #tpu.memory_space<vmem>>, vector<32x32xf32>
    %cst_16 = arith.constant dense<0.000000e+00> : vector<17x32xf32>
    %35 = tpu.matmul %31, %34, %cst_16 {dimension_numbers = #tpu.dot_dimension_numbers<[1], [0], [0], [1], [0, 0, 1, 1], [], []>, precision = #tpu.contract_precision<fp32>} : vector<17x32xf32>, vector<32x32xf32>, vector<17x32xf32> -> vector<17x32xf32>
    %cst_17 = arith.constant 0.000000e+00 : f32
    %36 = vector.broadcast %cst_17 : f32 to vector<17x32xf32>
    %37 = arith.subf %36, %35 : vector<17x32xf32>
    %38 = arith.mulf %33, %33 : vector<17x32xf32>
    %39 = arith.mulf %37, %37 : vector<17x32xf32>
    %40 = arith.subf %38, %39 : vector<17x32xf32>
    %cst_18 = arith.constant 1.000000e-01 : f32
    %41 = vector.broadcast %cst_18 : f32 to vector<17x32xf32>
    %42 = arith.mulf %41, %40 : vector<17x32xf32>
    %43 = arith.addf %33, %42 : vector<17x32xf32>
    %44 = arith.mulf %33, %37 : vector<17x32xf32>
    %cst_19 = arith.constant 2.000000e-01 : f32
    %45 = vector.broadcast %cst_19 : f32 to vector<17x32xf32>
    %46 = arith.mulf %45, %44 : vector<17x32xf32>
    %47 = arith.addf %37, %46 : vector<17x32xf32>
    %c0_20 = arith.constant 0 : index
    %c0_21 = arith.constant 0 : index
    %48 = vector.load %arg6[%c0_20, %c0_21] : memref<17x17xf32, #tpu.memory_space<vmem>>, vector<17x17xf32>
    %cst_22 = arith.constant dense<0.000000e+00> : vector<17x32xf32>
    %49 = tpu.matmul %48, %43, %cst_22 {dimension_numbers = #tpu.dot_dimension_numbers<[1], [0], [0], [1], [0, 0, 1, 1], [], []>, precision = #tpu.contract_precision<fp32>} : vector<17x17xf32>, vector<17x32xf32>, vector<17x32xf32> -> vector<17x32xf32>
    %c0_23 = arith.constant 0 : index
    %c0_24 = arith.constant 0 : index
    %50 = vector.load %arg7[%c0_23, %c0_24] : memref<17x17xf32, #tpu.memory_space<vmem>>, vector<17x17xf32>
    %cst_25 = arith.constant dense<0.000000e+00> : vector<17x32xf32>
    %51 = tpu.matmul %50, %47, %cst_25 {dimension_numbers = #tpu.dot_dimension_numbers<[1], [0], [0], [1], [0, 0, 1, 1], [], []>, precision = #tpu.contract_precision<fp32>} : vector<17x17xf32>, vector<17x32xf32>, vector<17x32xf32> -> vector<17x32xf32>
    %52 = arith.addf %49, %51 : vector<17x32xf32>
    %53 = arith.addf %52, %1 : vector<17x32xf32>
    %c0_26 = arith.constant 0 : index
    %c0_27 = arith.constant 0 : index
    %c0_28 = arith.constant 0 : index
    %54 = vector.load %arg8[%c0_26, %c0_27, %c0_28] : memref<1x17x32xf32, #tpu.memory_space<vmem>>, vector<1x17x32xf32>
    %55 = vector.shape_cast %54 : vector<1x17x32xf32> to vector<17x32xf32>
    %56 = vector.shape_cast %53 : vector<17x32xf32> to vector<1x17x32xf32>
    tpu.vector_store %arg8[%c0_26, %c0_27, %c0_28], %56 {strides = array<i32>} : memref<1x17x32xf32, #tpu.memory_space<vmem>>, vector<1x17x32xf32>,
    return
  }
  func.func @transform_0(%arg0: i32) -> (i32, i32, i32) {
    %c0_i32 = arith.constant 0 : i32
    %c0_i32_0 = arith.constant 0 : i32
    %c0_i32_1 = arith.constant 0 : i32
    return %arg0, %c0_i32, %c0_i32_0 : i32, i32, i32
  }
  func.func @transform_1(%arg0: i32) -> (i32, i32) {
    %c0_i32 = arith.constant 0 : i32
    %c0_i32_0 = arith.constant 0 : i32
    %c0_i32_1 = arith.constant 0 : i32
    return %c0_i32, %c0_i32_0 : i32, i32
  }
  func.func @transform_2(%arg0: i32) -> (i32, i32) {
    %c0_i32 = arith.constant 0 : i32
    %c0_i32_0 = arith.constant 0 : i32
    %c0_i32_1 = arith.constant 0 : i32
    return %c0_i32, %c0_i32_0 : i32, i32
  }
  func.func @transform_3(%arg0: i32) -> (i32, i32) {
    %c0_i32 = arith.constant 0 : i32
    %c0_i32_0 = arith.constant 0 : i32
    %c0_i32_1 = arith.constant 0 : i32
    return %c0_i32, %c0_i32_0 : i32, i32
  }
  func.func @transform_4(%arg0: i32) -> (i32, i32) {
    %c0_i32 = arith.constant 0 : i32
    %c0_i32_0 = arith.constant 0 : i32
    %c0_i32_1 = arith.constant 0 : i32
    return %c0_i32, %c0_i32_0 : i32, i32
  }
  func.func @transform_5(%arg0: i32) -> (i32, i32) {
    %c0_i32 = arith.constant 0 : i32
    %c0_i32_0 = arith.constant 0 : i32
    %c0_i32_1 = arith.constant 0 : i32
    return %c0_i32, %c0_i32_0 : i32, i32
  }
  func.func @transform_6(%arg0: i32) -> (i32, i32) {
    %c0_i32 = arith.constant 0 : i32
    %c0_i32_0 = arith.constant 0 : i32
    %c0_i32_1 = arith.constant 0 : i32
    return %c0_i32, %c0_i32_0 : i32, i32
  }
  func.func @transform_7(%arg0: i32) -> (i32, i32, i32) {
    %c0_i32 = arith.constant 0 : i32
    %c0_i32_0 = arith.constant 0 : i32
    %c0_i32_1 = arith.constant 0 : i32
    return %arg0, %c0_i32, %c0_i32_0 : i32, i32, i32
  }
}

module attributes {stable_mosaic.version = 11 : i64} {
  func.func @_patch_embed_kernel(%arg0: i32, %arg1: memref<1x16x48xf32, #tpu.memory_space<vmem>>, %arg2: memref<48x32xf32, #tpu.memory_space<vmem>>, %arg3: memref<1x32xf32, #tpu.memory_space<vmem>>, %arg4: memref<1x16x32xf32, #tpu.memory_space<vmem>>) attributes {dimension_semantics = [#tpu.dimension_semantics<parallel>], iteration_bounds = array<i64: 2>, scalar_prefetch = 0 : i64, scratch_operands = 0 : i64, tpu.core_type = #tpu.core_type<tc>, window_params = [{transform_indices = @transform_0, window_bounds = array<i64: 1, 16, 48>}, {pipeline_mode = #tpu.pipeline_mode<synchronous>, transform_indices = @transform_1, window_bounds = array<i64: 48, 32>}, {pipeline_mode = #tpu.pipeline_mode<synchronous>, transform_indices = @transform_2, window_bounds = array<i64: 1, 32>}, {transform_indices = @transform_3, window_bounds = array<i64: 1, 16, 32>}]} {
    %c0 = arith.constant 0 : index
    %c0_0 = arith.constant 0 : index
    %c0_1 = arith.constant 0 : index
    %0 = vector.load %arg1[%c0, %c0_0, %c0_1] : memref<1x16x48xf32, #tpu.memory_space<vmem>>, vector<1x16x48xf32>
    %1 = vector.shape_cast %0 : vector<1x16x48xf32> to vector<16x48xf32>
    %c0_2 = arith.constant 0 : index
    %c0_3 = arith.constant 0 : index
    %2 = vector.load %arg2[%c0_2, %c0_3] : memref<48x32xf32, #tpu.memory_space<vmem>>, vector<48x32xf32>
    %cst = arith.constant dense<0.000000e+00> : vector<16x32xf32>
    %3 = tpu.matmul %1, %2, %cst {dimension_numbers = #tpu.dot_dimension_numbers<[1], [0], [0], [1], [0, 0, 1, 1], [], []>, precision = #tpu.contract_precision<fp32>} : vector<16x48xf32>, vector<48x32xf32>, vector<16x32xf32> -> vector<16x32xf32>
    %c0_4 = arith.constant 0 : index
    %c0_5 = arith.constant 0 : index
    %4 = vector.load %arg3[%c0_4, %c0_5] : memref<1x32xf32, #tpu.memory_space<vmem>>, vector<1x32xf32>
    %5 = vector.broadcast %4 : vector<1x32xf32> to vector<16x32xf32>
    %6 = arith.addf %3, %5 : vector<16x32xf32>
    %c0_6 = arith.constant 0 : index
    %c0_7 = arith.constant 0 : index
    %c0_8 = arith.constant 0 : index
    %7 = vector.load %arg4[%c0_6, %c0_7, %c0_8] : memref<1x16x32xf32, #tpu.memory_space<vmem>>, vector<1x16x32xf32>
    %8 = vector.shape_cast %7 : vector<1x16x32xf32> to vector<16x32xf32>
    %9 = vector.shape_cast %6 : vector<16x32xf32> to vector<1x16x32xf32>
    tpu.vector_store %arg4[%c0_6, %c0_7, %c0_8], %9 {strides = array<i32>} : memref<1x16x32xf32, #tpu.memory_space<vmem>>, vector<1x16x32xf32>,
    return
  }
  func.func @transform_0(%arg0: i32) -> (i32, i32, i32) {
    %c0_i32 = arith.constant 0 : i32
    %c0_i32_0 = arith.constant 0 : i32
    %c0_i32_1 = arith.constant 0 : i32
    return %arg0, %c0_i32, %c0_i32_0 : i32, i32, i32
  }
  func.func @transform_1(%arg0: i32) -> (i32, i32) {
    %c0_i32 = arith.constant 0 : i32
    %c0_i32_0 = arith.constant 0 : i32
    %c0_i32_1 = arith.constant 0 : i32
    return %c0_i32, %c0_i32_0 : i32, i32
  }
  func.func @transform_2(%arg0: i32) -> (i32, i32) {
    %c0_i32 = arith.constant 0 : i32
    %c0_i32_0 = arith.constant 0 : i32
    %c0_i32_1 = arith.constant 0 : i32
    return %c0_i32, %c0_i32_0 : i32, i32
  }
  func.func @transform_3(%arg0: i32) -> (i32, i32, i32) {
    %c0_i32 = arith.constant 0 : i32
    %c0_i32_0 = arith.constant 0 : i32
    %c0_i32_1 = arith.constant 0 : i32
    return %arg0, %c0_i32, %c0_i32_0 : i32, i32, i32
  }
}

module attributes {stable_mosaic.version = 11 : i64} {
  func.func @_ffn_kernel(%arg0: i32, %arg1: memref<1x17x32xf32, #tpu.memory_space<vmem>>, %arg2: memref<1x32xf32, #tpu.memory_space<vmem>>, %arg3: memref<1x32xf32, #tpu.memory_space<vmem>>, %arg4: memref<32x64xf32, #tpu.memory_space<vmem>>, %arg5: memref<1x64xf32, #tpu.memory_space<vmem>>, %arg6: memref<64x32xf32, #tpu.memory_space<vmem>>, %arg7: memref<1x32xf32, #tpu.memory_space<vmem>>, %arg8: memref<1x17x32xf32, #tpu.memory_space<vmem>>) attributes {dimension_semantics = [#tpu.dimension_semantics<parallel>], iteration_bounds = array<i64: 2>, scalar_prefetch = 0 : i64, scratch_operands = 0 : i64, tpu.core_type = #tpu.core_type<tc>, window_params = [{transform_indices = @transform_0, window_bounds = array<i64: 1, 17, 32>}, {pipeline_mode = #tpu.pipeline_mode<synchronous>, transform_indices = @transform_1, window_bounds = array<i64: 1, 32>}, {pipeline_mode = #tpu.pipeline_mode<synchronous>, transform_indices = @transform_2, window_bounds = array<i64: 1, 32>}, {pipeline_mode = #tpu.pipeline_mode<synchronous>, transform_indices = @transform_3, window_bounds = array<i64: 32, 64>}, {pipeline_mode = #tpu.pipeline_mode<synchronous>, transform_indices = @transform_4, window_bounds = array<i64: 1, 64>}, {pipeline_mode = #tpu.pipeline_mode<synchronous>, transform_indices = @transform_5, window_bounds = array<i64: 64, 32>}, {pipeline_mode = #tpu.pipeline_mode<synchronous>, transform_indices = @transform_6, window_bounds = array<i64: 1, 32>}, {transform_indices = @transform_7, window_bounds = array<i64: 1, 17, 32>}]} {
    %c0 = arith.constant 0 : index
    %c0_0 = arith.constant 0 : index
    %c0_1 = arith.constant 0 : index
    %0 = vector.load %arg1[%c0, %c0_0, %c0_1] : memref<1x17x32xf32, #tpu.memory_space<vmem>>, vector<1x17x32xf32>
    %1 = vector.shape_cast %0 : vector<1x17x32xf32> to vector<17x32xf32>
    %c0_2 = arith.constant 0 : index
    %c0_3 = arith.constant 0 : index
    %2 = vector.load %arg2[%c0_2, %c0_3] : memref<1x32xf32, #tpu.memory_space<vmem>>, vector<1x32xf32>
    %c0_4 = arith.constant 0 : index
    %c0_5 = arith.constant 0 : index
    %3 = vector.load %arg3[%c0_4, %c0_5] : memref<1x32xf32, #tpu.memory_space<vmem>>, vector<1x32xf32>
    %cst = arith.constant dense<0.000000e+00> : vector<17xf32>
    %4 = vector.multi_reduction <add>, %1, %cst [1] : vector<17x32xf32> to vector<17xf32>
    %5 = vector.shape_cast %4 : vector<17xf32> to vector<17x1xf32>
    %cst_6 = arith.constant 3.200000e+01 : f32
    %6 = vector.broadcast %cst_6 : f32 to vector<17x1xf32>
    %7 = arith.divf %5, %6 : vector<17x1xf32>
    %8 = vector.broadcast %7 : vector<17x1xf32> to vector<17x32xf32>
    %9 = arith.subf %1, %8 : vector<17x32xf32>
    %10 = vector.broadcast %7 : vector<17x1xf32> to vector<17x32xf32>
    %11 = arith.subf %1, %10 : vector<17x32xf32>
    %12 = arith.mulf %9, %11 : vector<17x32xf32>
    %cst_7 = arith.constant dense<0.000000e+00> : vector<17xf32>
    %13 = vector.multi_reduction <add>, %12, %cst_7 [1] : vector<17x32xf32> to vector<17xf32>
    %14 = vector.shape_cast %13 : vector<17xf32> to vector<17x1xf32>
    %cst_8 = arith.constant 3.200000e+01 : f32
    %15 = vector.broadcast %cst_8 : f32 to vector<17x1xf32>
    %16 = arith.divf %14, %15 : vector<17x1xf32>
    %17 = vector.broadcast %7 : vector<17x1xf32> to vector<17x32xf32>
    %18 = arith.subf %1, %17 : vector<17x32xf32>
    %cst_9 = arith.constant 9.99999974E-6 : f32
    %19 = vector.broadcast %cst_9 : f32 to vector<17x1xf32>
    %20 = arith.addf %16, %19 : vector<17x1xf32>
    %21 = math.rsqrt %20 : vector<17x1xf32>
    %22 = vector.broadcast %21 : vector<17x1xf32> to vector<17x32xf32>
    %23 = arith.mulf %18, %22 : vector<17x32xf32>
    %24 = vector.broadcast %2 : vector<1x32xf32> to vector<17x32xf32>
    %25 = arith.mulf %23, %24 : vector<17x32xf32>
    %26 = vector.broadcast %3 : vector<1x32xf32> to vector<17x32xf32>
    %27 = arith.addf %25, %26 : vector<17x32xf32>
    %c0_10 = arith.constant 0 : index
    %c0_11 = arith.constant 0 : index
    %28 = vector.load %arg4[%c0_10, %c0_11] : memref<32x64xf32, #tpu.memory_space<vmem>>, vector<32x64xf32>
    %cst_12 = arith.constant dense<0.000000e+00> : vector<17x64xf32>
    %29 = tpu.matmul %27, %28, %cst_12 {dimension_numbers = #tpu.dot_dimension_numbers<[1], [0], [0], [1], [0, 0, 1, 1], [], []>, precision = #tpu.contract_precision<fp32>} : vector<17x32xf32>, vector<32x64xf32>, vector<17x64xf32> -> vector<17x64xf32>
    %c0_13 = arith.constant 0 : index
    %c0_14 = arith.constant 0 : index
    %30 = vector.load %arg5[%c0_13, %c0_14] : memref<1x64xf32, #tpu.memory_space<vmem>>, vector<1x64xf32>
    %31 = vector.broadcast %30 : vector<1x64xf32> to vector<17x64xf32>
    %32 = arith.addf %29, %31 : vector<17x64xf32>
    %cst_15 = arith.constant 5.000000e-01 : f32
    %33 = vector.broadcast %cst_15 : f32 to vector<17x64xf32>
    %34 = arith.mulf %33, %32 : vector<17x64xf32>
    %cst_16 = arith.constant 0.707106769 : f32
    %35 = vector.broadcast %cst_16 : f32 to vector<17x64xf32>
    %36 = arith.mulf %32, %35 : vector<17x64xf32>
    %cst_17 = arith.constant 0.000000e+00 : f32
    %37 = vector.broadcast %cst_17 : f32 to vector<17x64xf32>
    %38 = arith.cmpf oge, %36, %37 : vector<17x64xf32>
    %cst_18 = arith.constant 1.000000e+00 : f32
    %cst_19 = arith.constant -1.000000e+00 : f32
    %39 = vector.broadcast %cst_18 : f32 to vector<17x64xf32>
    %40 = vector.broadcast %cst_19 : f32 to vector<17x64xf32>
    %41 = arith.select %38, %39, %40 : vector<17x64xi1>, vector<17x64xf32>
    %42 = math.absf %36 : vector<17x64xf32>
    %cst_20 = arith.constant 0.327591091 : f32
    %43 = vector.broadcast %cst_20 : f32 to vector<17x64xf32>
    %44 = arith.mulf %43, %42 : vector<17x64xf32>
    %cst_21 = arith.constant 1.000000e+00 : f32
    %45 = vector.broadcast %cst_21 : f32 to vector<17x64xf32>
    %46 = arith.addf %45, %44 : vector<17x64xf32>
    %cst_22 = arith.constant 1.000000e+00 : f32
    %47 = vector.broadcast %cst_22 : f32 to vector<17x64xf32>
    %48 = arith.divf %47, %46 : vector<17x64xf32>
    %cst_23 = arith.constant 1.06140542 : f32
    %49 = vector.broadcast %cst_23 : f32 to vector<17x64xf32>
    %50 = arith.mulf %49, %48 : vector<17x64xf32>
    %cst_24 = arith.constant -1.45315206 : f32
    %51 = vector.broadcast %cst_24 : f32 to vector<17x64xf32>
    %52 = arith.addf %50, %51 : vector<17x64xf32>
    %53 = arith.mulf %52, %48 : vector<17x64xf32>
    %cst_25 = arith.constant 1.42141378 : f32
    %54 = vector.broadcast %cst_25 : f32 to vector<17x64xf32>
    %55 = arith.addf %53, %54 : vector<17x64xf32>
    %56 = arith.mulf %55, %48 : vector<17x64xf32>
    %cst_26 = arith.constant -0.284496725 : f32
    %57 = vector.broadcast %cst_26 : f32 to vector<17x64xf32>
    %58 = arith.addf %56, %57 : vector<17x64xf32>
    %59 = arith.mulf %58, %48 : vector<17x64xf32>
    %cst_27 = arith.constant 0.254829586 : f32
    %60 = vector.broadcast %cst_27 : f32 to vector<17x64xf32>
    %61 = arith.addf %59, %60 : vector<17x64xf32>
    %62 = arith.mulf %61, %48 : vector<17x64xf32>
    %cst_28 = arith.constant 0.000000e+00 : f32
    %63 = vector.broadcast %cst_28 : f32 to vector<17x64xf32>
    %64 = arith.subf %63, %42 : vector<17x64xf32>
    %65 = arith.mulf %64, %42 : vector<17x64xf32>
    %66 = math.exp %65 : vector<17x64xf32>
    %67 = arith.mulf %62, %66 : vector<17x64xf32>
    %cst_29 = arith.constant 1.000000e+00 : f32
    %68 = vector.broadcast %cst_29 : f32 to vector<17x64xf32>
    %69 = arith.subf %68, %67 : vector<17x64xf32>
    %70 = arith.mulf %41, %69 : vector<17x64xf32>
    %cst_30 = arith.constant 1.000000e+00 : f32
    %71 = vector.broadcast %cst_30 : f32 to vector<17x64xf32>
    %72 = arith.addf %71, %70 : vector<17x64xf32>
    %73 = arith.mulf %34, %72 : vector<17x64xf32>
    %c0_31 = arith.constant 0 : index
    %c0_32 = arith.constant 0 : index
    %74 = vector.load %arg6[%c0_31, %c0_32] : memref<64x32xf32, #tpu.memory_space<vmem>>, vector<64x32xf32>
    %cst_33 = arith.constant dense<0.000000e+00> : vector<17x32xf32>
    %75 = tpu.matmul %73, %74, %cst_33 {dimension_numbers = #tpu.dot_dimension_numbers<[1], [0], [0], [1], [0, 0, 1, 1], [], []>, precision = #tpu.contract_precision<fp32>} : vector<17x64xf32>, vector<64x32xf32>, vector<17x32xf32> -> vector<17x32xf32>
    %c0_34 = arith.constant 0 : index
    %c0_35 = arith.constant 0 : index
    %76 = vector.load %arg7[%c0_34, %c0_35] : memref<1x32xf32, #tpu.memory_space<vmem>>, vector<1x32xf32>
    %77 = vector.broadcast %76 : vector<1x32xf32> to vector<17x32xf32>
    %78 = arith.addf %75, %77 : vector<17x32xf32>
    %79 = arith.addf %78, %1 : vector<17x32xf32>
    %c0_36 = arith.constant 0 : index
    %c0_37 = arith.constant 0 : index
    %c0_38 = arith.constant 0 : index
    %80 = vector.load %arg8[%c0_36, %c0_37, %c0_38] : memref<1x17x32xf32, #tpu.memory_space<vmem>>, vector<1x17x32xf32>
    %81 = vector.shape_cast %80 : vector<1x17x32xf32> to vector<17x32xf32>
    %82 = vector.shape_cast %79 : vector<17x32xf32> to vector<1x17x32xf32>
    tpu.vector_store %arg8[%c0_36, %c0_37, %c0_38], %82 {strides = array<i32>} : memref<1x17x32xf32, #tpu.memory_space<vmem>>, vector<1x17x32xf32>,
    return
  }
  func.func @transform_0(%arg0: i32) -> (i32, i32, i32) {
    %c0_i32 = arith.constant 0 : i32
    %c0_i32_0 = arith.constant 0 : i32
    %c0_i32_1 = arith.constant 0 : i32
    return %arg0, %c0_i32, %c0_i32_0 : i32, i32, i32
  }
  func.func @transform_1(%arg0: i32) -> (i32, i32) {
    %c0_i32 = arith.constant 0 : i32
    %c0_i32_0 = arith.constant 0 : i32
    %c0_i32_1 = arith.constant 0 : i32
    return %c0_i32, %c0_i32_0 : i32, i32
  }
  func.func @transform_2(%arg0: i32) -> (i32, i32) {
    %c0_i32 = arith.constant 0 : i32
    %c0_i32_0 = arith.constant 0 : i32
    %c0_i32_1 = arith.constant 0 : i32
    return %c0_i32, %c0_i32_0 : i32, i32
  }
  func.func @transform_3(%arg0: i32) -> (i32, i32) {
    %c0_i32 = arith.constant 0 : i32
    %c0_i32_0 = arith.constant 0 : i32
    %c0_i32_1 = arith.constant 0 : i32
    return %c0_i32, %c0_i32_0 : i32, i32
  }
  func.func @transform_4(%arg0: i32) -> (i32, i32) {
    %c0_i32 = arith.constant 0 : i32
    %c0_i32_0 = arith.constant 0 : i32
    %c0_i32_1 = arith.constant 0 : i32
    return %c0_i32, %c0_i32_0 : i32, i32
  }
  func.func @transform_5(%arg0: i32) -> (i32, i32) {
    %c0_i32 = arith.constant 0 : i32
    %c0_i32_0 = arith.constant 0 : i32
    %c0_i32_1 = arith.constant 0 : i32
    return %c0_i32, %c0_i32_0 : i32, i32
  }
  func.func @transform_6(%arg0: i32) -> (i32, i32) {
    %c0_i32 = arith.constant 0 : i32
    %c0_i32_0 = arith.constant 0 : i32
    %c0_i32_1 = arith.constant 0 : i32
    return %c0_i32, %c0_i32_0 : i32, i32
  }
  func.func @transform_7(%arg0: i32) -> (i32, i32, i32) {
    %c0_i32 = arith.constant 0 : i32
    %c0_i32_0 = arith.constant 0 : i32
    %c0_i32_1 = arith.constant 0 : i32
    return %arg0, %c0_i32, %c0_i32_0 : i32, i32, i32
  }
}

module attributes {stable_mosaic.version = 11 : i64} {
  func.func @_head_kernel(%arg0: memref<2x32xf32, #tpu.memory_space<vmem>>, %arg1: memref<1x32xf32, #tpu.memory_space<vmem>>, %arg2: memref<1x32xf32, #tpu.memory_space<vmem>>, %arg3: memref<32x10xf32, #tpu.memory_space<vmem>>, %arg4: memref<1x10xf32, #tpu.memory_space<vmem>>, %arg5: memref<2x10xf32, #tpu.memory_space<vmem>>) attributes {dimension_semantics = [], scalar_prefetch = 0 : i64, scratch_operands = 0 : i64, tpu.core_type = #tpu.core_type<tc>} {
    %c0 = arith.constant 0 : index
    %c0_0 = arith.constant 0 : index
    %0 = vector.load %arg0[%c0, %c0_0] : memref<2x32xf32, #tpu.memory_space<vmem>>, vector<2x32xf32>
    %c0_1 = arith.constant 0 : index
    %c0_2 = arith.constant 0 : index
    %1 = vector.load %arg1[%c0_1, %c0_2] : memref<1x32xf32, #tpu.memory_space<vmem>>, vector<1x32xf32>
    %c0_3 = arith.constant 0 : index
    %c0_4 = arith.constant 0 : index
    %2 = vector.load %arg2[%c0_3, %c0_4] : memref<1x32xf32, #tpu.memory_space<vmem>>, vector<1x32xf32>
    %cst = arith.constant dense<0.000000e+00> : vector<2xf32>
    %3 = vector.multi_reduction <add>, %0, %cst [1] : vector<2x32xf32> to vector<2xf32>
    %4 = vector.shape_cast %3 : vector<2xf32> to vector<2x1xf32>
    %cst_5 = arith.constant 3.200000e+01 : f32
    %5 = vector.broadcast %cst_5 : f32 to vector<2x1xf32>
    %6 = arith.divf %4, %5 : vector<2x1xf32>
    %7 = vector.broadcast %6 : vector<2x1xf32> to vector<2x32xf32>
    %8 = arith.subf %0, %7 : vector<2x32xf32>
    %9 = vector.broadcast %6 : vector<2x1xf32> to vector<2x32xf32>
    %10 = arith.subf %0, %9 : vector<2x32xf32>
    %11 = arith.mulf %8, %10 : vector<2x32xf32>
    %cst_6 = arith.constant dense<0.000000e+00> : vector<2xf32>
    %12 = vector.multi_reduction <add>, %11, %cst_6 [1] : vector<2x32xf32> to vector<2xf32>
    %13 = vector.shape_cast %12 : vector<2xf32> to vector<2x1xf32>
    %cst_7 = arith.constant 3.200000e+01 : f32
    %14 = vector.broadcast %cst_7 : f32 to vector<2x1xf32>
    %15 = arith.divf %13, %14 : vector<2x1xf32>
    %16 = vector.broadcast %6 : vector<2x1xf32> to vector<2x32xf32>
    %17 = arith.subf %0, %16 : vector<2x32xf32>
    %cst_8 = arith.constant 9.99999974E-6 : f32
    %18 = vector.broadcast %cst_8 : f32 to vector<2x1xf32>
    %19 = arith.addf %15, %18 : vector<2x1xf32>
    %20 = math.rsqrt %19 : vector<2x1xf32>
    %21 = vector.broadcast %20 : vector<2x1xf32> to vector<2x32xf32>
    %22 = arith.mulf %17, %21 : vector<2x32xf32>
    %23 = vector.broadcast %1 : vector<1x32xf32> to vector<2x32xf32>
    %24 = arith.mulf %22, %23 : vector<2x32xf32>
    %25 = vector.broadcast %2 : vector<1x32xf32> to vector<2x32xf32>
    %26 = arith.addf %24, %25 : vector<2x32xf32>
    %c0_9 = arith.constant 0 : index
    %c0_10 = arith.constant 0 : index
    %27 = vector.load %arg3[%c0_9, %c0_10] : memref<32x10xf32, #tpu.memory_space<vmem>>, vector<32x10xf32>
    %cst_11 = arith.constant dense<0.000000e+00> : vector<2x10xf32>
    %28 = tpu.matmul %26, %27, %cst_11 {dimension_numbers = #tpu.dot_dimension_numbers<[1], [0], [0], [1], [0, 0, 1, 1], [], []>, precision = #tpu.contract_precision<fp32>} : vector<2x32xf32>, vector<32x10xf32>, vector<2x10xf32> -> vector<2x10xf32>
    %c0_12 = arith.constant 0 : index
    %c0_13 = arith.constant 0 : index
    %29 = vector.load %arg4[%c0_12, %c0_13] : memref<1x10xf32, #tpu.memory_space<vmem>>, vector<1x10xf32>
    %30 = vector.broadcast %29 : vector<1x10xf32> to vector<2x10xf32>
    %31 = arith.addf %28, %30 : vector<2x10xf32>
    %c0_14 = arith.constant 0 : index
    %c0_15 = arith.constant 0 : index
    %32 = vector.load %arg5[%c0_14, %c0_15] : memref<2x10xf32, #tpu.memory_space<vmem>>, vector<2x10xf32>
    tpu.vector_store %arg5[%c0_14, %c0_15], %31 {strides = array<i32>} : memref<2x10xf32, #tpu.memory_space<vmem>>, vector<2x10xf32>,
    return
  }
}

</mosaic_0001>

<llo_original>
// kernel: vit_forward.6
$region0: #{vit_forward.6}
  #allocation0 [shape = 'u32[]', space=smem, size = 0x4, offset = 0x4, fixed_abs, tag = 'smem constant byte address 0x4 - core index']
  #allocation1 [shape = 'u32[72,128]{1,0:T(1,128)}', space=vmem, size = 0x9000, scoped, tag = 'internal scratch']
  %s0 = inlined_call_operand.vmem [shape: f32[2,16,48], index: 0, kind: input, shape index: {}]
  %s1 = inlined_call_operand.vmem [shape: f32[48,32], index: 1, kind: input, shape index: {}]
  %s2 = inlined_call_operand.vmem [shape: f32[1,32], index: 2, kind: input, shape index: {}]
  %s3 = inlined_call_operand.vmem [shape: f32[2,16,32], index: 3, kind: output, shape index: {}]
  %s4 = sld [smem:[#allocation0]]
  $region45: #{vit_forward.6} parent=0
    _
  %s6 = ssub.s32 1, %s4
  %s7 = scalar_select 0, %s6, %s4
  loop: start=0, step=1, limit=4
  $region2: #{vit_forward.6} parent=0 // loop_pre_header
    _
  $region3: #{vit_forward.6} parent=0 // loop_header
    %s9 = sphi 0, %s13
    %p10 = scmp.ge.s32.totalorder %s9, 4
    %s19 = sphi 0, %s21
    %s22 = sphi 0, %s19
    %s23 = sphi 0, %s22
    %s39 = sphi 0, %s23
    %s43 = sphi 0, %s43
    %s45 = sphi 0, %s43
    %s46 = sphi 0, %s45
    %s60 = sphi 0, %s46
    %s64 = sphi 0, %s64
    %s66 = sphi 0, %s64
    %s67 = sphi 0, %s66
    %s81 = sphi 0, %s67
    %s87 = sphi 0, %s89
    %s90 = sphi 0, %s87
    %s91 = sphi 0, %s90
    %s107 = sphi 0, %s91
  $region4: #{vit_forward.6} parent=0 // loop_header_branch
    %12 = sbr.rel (%p10) target = $region8
  $region5: #{vit_forward.6} parent=0 // loop_body
    %s14 = ssub.s32 %s9, 1
    %s15 = ssub.s32 %s9, 2
    %s16 = sadd.s32 %s9, 1
    %s17 = ssub.s32 %s9, %s16
    %p18 = scmp.eq.s32.totalorder %s17, 0
    %s20 = sadd.s32 %s19, 1
    %s21 = scalar_select %p18, %s19, %s20
    %p24 = pneg %p18
    %p25 = scmp.eq.s32.totalorder %s9, 1
    %p26 = por %p24, %p25
    %p27 = scmp.ne.s32.totalorder %s19, %s22
    %p28 = scmp.eq.s32.totalorder %s9, 0
    %p29 = por %p27, %p28
    %p30 = scmp.ne.s32.totalorder %s19, %s22
    %p31 = scmp.eq.s32.totalorder %s14, 1
    %p32 = por %p30, %p31
    %p33 = scmp.ne.s32.totalorder %s22, %s23
    %p34 = scmp.eq.s32.totalorder %s14, 0
    %p35 = por %p33, %p34
    %p36 = scmp.ne.s32.totalorder %s22, %s23
    %p37 = scmp.eq.s32.totalorder %s15, 1
    %p38 = por %p36, %p37
    %p40 = scmp.ne.s32.totalorder %s23, %s39
    %p41 = scmp.eq.s32.totalorder %s15, 0
    %p42 = por %p40, %p41
    %s44 = sadd.s32 %s43, 1
    %p47 = scmp.eq.s32.totalorder %s9, 1
    %p48 = scmp.ne.s32.totalorder %s43, %s45
    %p49 = scmp.eq.s32.totalorder %s9, 0
    %p50 = por %p48, %p49
    %p51 = scmp.ne.s32.totalorder %s43, %s45
    %p52 = scmp.eq.s32.totalorder %s14, 1
    %p53 = por %p51, %p52
    %p54 = scmp.ne.s32.totalorder %s45, %s46
    %p55 = scmp.eq.s32.totalorder %s14, 0
    %p56 = por %p54, %p55
    %p57 = scmp.ne.s32.totalorder %s45, %s46
    %p58 = scmp.eq.s32.totalorder %s15, 1
    %p59 = por %p57, %p58
    %p61 = scmp.ne.s32.totalorder %s46, %s60
    %p62 = scmp.eq.s32.totalorder %s15, 0
    %p63 = por %p61, %p62
    %s65 = sadd.s32 %s64, 1
    %p68 = scmp.eq.s32.totalorder %s9, 1
    %p69 = scmp.ne.s32.totalorder %s64, %s66
    %p70 = scmp.eq.s32.totalorder %s9, 0
    %p71 = por %p69, %p70
    %p72 = scmp.ne.s32.totalorder %s64, %s66
    %p73 = scmp.eq.s32.totalorder %s14, 1
    %p74 = por %p72, %p73
    %p75 = scmp.ne.s32.totalorder %s66, %s67
    %p76 = scmp.eq.s32.totalorder %s14, 0
    %p77 = por %p75, %p76
    %p78 = scmp.ne.s32.totalorder %s66, %s67
    %p79 = scmp.eq.s32.totalorder %s15, 1
    %p80 = por %p78, %p79
    %p82 = scmp.ne.s32.totalorder %s67, %s81
    %p83 = scmp.eq.s32.totalorder %s15, 0
    %p84 = por %p82, %p83
    %s85 = ssub.s32 %s9, %s16
    %p86 = scmp.eq.s32.totalorder %s85, 0
    %s88 = sadd.s32 %s87, 1
    %s89 = scalar_select %p86, %s87, %s88
    %p92 = pneg %p86
    %p93 = scmp.eq.s32.totalorder %s9, 1
    %p94 = por %p92, %p93
    %p95 = scmp.ne.s32.totalorder %s87, %s90
    %p96 = scmp.eq.s32.totalorder %s9, 0
    %p97 = por %p95, %p96
    %p98 = scmp.ne.s32.totalorder %s87, %s90
    %p99 = scmp.eq.s32.totalorder %s14, 1
    %p100 = por %p98, %p99
    %p101 = scmp.ne.s32.totalorder %s90, %s91
    %p102 = scmp.eq.s32.totalorder %s14, 0
    %p103 = por %p101, %p102
    %p104 = scmp.ne.s32.totalorder %s90, %s91
    %p105 = scmp.eq.s32.totalorder %s15, 1
    %p106 = por %p104, %p105
    %p108 = scmp.ne.s32.totalorder %s91, %s107
    %p109 = scmp.eq.s32.totalorder %s15, 0
    %p110 = por %p108, %p109
    %p111 = scmp.le.s32.totalorder 1, %s9
    %p112 = scmp.lt.s32.totalorder %s9, 3
    %p113 = pnand %p111, %p112
    %p114 = pneg %p113
    // Predicated region
    $region9: #{vit_forward.6} parent=5 // pred_check
      _
    $region10: #{vit_forward.6} parent=5 // pred_check_branch
      %116 = sbr.rel (%p113) target = $region12
    $region11: #{vit_forward.6} parent=5 // pred_region
      %s117 = ssub.s32 %s9, 1
      // Predicated region
      $region13: #{vit_forward.6} parent=11 // pred_check
        %p118 = pneg %p56
      $region14: #{vit_forward.6} parent=11 // pred_check_branch
        %120 = sbr.rel (%p118) target = $region16
      $region15: #{vit_forward.6} parent=11 // pred_region
        _
      $region16: #{vit_forward.6} parent=11 // pred_fallthru
        _
      // Predicated region
      $region17: #{vit_forward.6} parent=11 // pred_check
        %p121 = pneg %p77
      $region18: #{vit_forward.6} parent=11 // pred_check_branch
        %123 = sbr.rel (%p121) target = $region20
      $region19: #{vit_forward.6} parent=11 // pred_region
        _
      $region20: #{vit_forward.6} parent=11 // pred_fallthru
        _
    $region12: #{vit_forward.6} parent=5 // pred_fallthru
      _
    %p124 = scmp.lt.s32.totalorder %s9, 2
    // Predicated region
    $region21: #{vit_forward.6} parent=5 // pred_check
      %p125 = pneg %p124
    $region22: #{vit_forward.6} parent=5 // pred_check_branch
      %127 = sbr.rel (%p125) target = $region24
    $region23: #{vit_forward.6} parent=5 // pred_region
      // Predicated region
      $region25: #{vit_forward.6} parent=23 // pred_check
        %p128 = pneg %p29
      $region26: #{vit_forward.6} parent=23 // pred_check_branch
        %130 = sbr.rel (%p128) target = $region28
      $region27: #{vit_forward.6} parent=23 // pred_region
        %p131 = scmp.lt.s32.totalorder %s9, 1
        %s132 = scalar_select %p131, %s9, 1
        %s133 = smul.addr %s132, 2
        %s134 = smul.addr %s133, 8
        %s135 = scalar_lea.vmem %s0, %s134
      $region28: #{vit_forward.6} parent=23 // pred_fallthru
        _
    $region24: #{vit_forward.6} parent=5 // pred_fallthru
      _
    %p136 = scmp.le.s32.totalorder 1, %s9
    %p137 = scmp.lt.s32.totalorder %s9, 3
    %p138 = pnand %p136, %p137
    %p139 = pneg %p138
    // Predicated region
    $region29: #{vit_forward.6} parent=5 // pred_check
      _
    $region30: #{vit_forward.6} parent=5 // pred_check_branch
      %141 = sbr.rel (%p138) target = $region32
    $region31: #{vit_forward.6} parent=5 // pred_region
      %s142 = ssub.s32 %s9, 1
      %p143 = scmp.lt.s32.totalorder %s14, 1
      %s144 = scalar_select %p143, %s14, 1
      %s145 = smul.addr %s144, 2
      %s146 = smul.addr %s145, 8
      %s147 = scalar_lea.vmem %s0, %s146
      %p148 = pneg %p35
      %p149 = pneg %p32
      %p150 = pneg %p56
      %p151 = pneg %p53
      %p152 = pneg %p77
      %p153 = pneg %p74
      %p154 = pneg %p103
      %p155 = pneg %p100
      %p156 = scmp.lt.s32.totalorder %s14, 1
      %s157 = scalar_select %p156, %s14, 1
      %s158 = smul.addr %s157, 2
      %s159 = smul.addr %s158, 8
      %s160 = scalar_lea.vmem %s3, %s159
      %p161 = scmp.lt.s32.totalorder %s14, 1
      %s162 = scalar_select %p161, %s14, 1
      %s163 = smul.addr %s162, 2
      %s164 = smul.addr %s163, 8
      %s165 = scalar_lea.vmem %s0, %s164
      %p166 = scmp.lt.s32.totalorder %s14, 1
      %s167 = scalar_select %p166, %s14, 1
      %s168 = smul.addr %s167, 2
      %s169 = smul.addr %s168, 8
      %s170 = scalar_lea.vmem %s3, %s169
      %v171 = vld [vmem:[%s165] sm:$0xff]
      %v172 = vld [vmem:[%s165 + $0x8] sm:$0xff]
      %v173 = vld [vmem:[%s1] sm:$0xff]
      %v174 = vld [vmem:[%s1 + $0x8] sm:$0xff]
      %v175 = vld [vmem:[%s1 + $0x10] sm:$0xff]
      %v176 = vld [vmem:[%s1 + $0x18] sm:$0xff]
      %v177 = vld [vmem:[%s1 + $0x20] sm:$0xff]
      %v178 = vld [vmem:[%s1 + $0x28] sm:$0xff]
      %v179 = vld [vmem:[%s2] sm:$0x1]
      %v181 = vperm.slane %v179, 0
      %vm183 = vcmask 392192
      %v185 = vsel %vm183, %v171, 0
      %v188 = vsel %vm183, %v172, 0
      %190 = vmatpush.msra.mxu0 0.0
      %191 = vmatpush.msra.mxu0 0.0
      %192 = vmatpush.msra.mxu0 0.0
      %193 = vmatpush.msra.mxu0 0.0
      %194 = vmatpush.msra.mxu0 0.0
      %195 = vmatpush.msra.mxu0 0.0
      %196 = vmatpush.msra.mxu0 0.0
      %197 = vmatpush.msra.mxu0 0.0
      %198 = vmatpush.msra.mxu0 0.0
      %199 = vmatpush.msra.mxu0 0.0
      %v200 = vand.u32 %v178, 4294901760
      %201 = vmatpush.msra.mxu0 %v200
      %v202 = vand.u32 %v177, 4294901760
      %203 = vmatpush.msra.mxu0 %v202
      %v204 = vand.u32 %v176, 4294901760
      %205 = vmatpush.msra.mxu0 %v204
      %v206 = vand.u32 %v175, 4294901760
      %207 = vmatpush.msra.mxu0 %v206
      %v208 = vand.u32 %v174, 4294901760
      %209 = vmatpush.msra.mxu0 %v208
      %v210 = vand.u32 %v173, 4294901760
      %211 = vmatpush.msra.mxu0 %v210
      %v212 = vand.u32 %v185, 4294901760
      %v213 = vsub.f32 %v185, %v212
      %v214 = vand.u32 %v213, 4294901760
      %v215 = vsub.f32 %v213, %v214
      %v216 = vand.u32 %v215, 4294901760
      %217 = vmatmul.f32.gmra.mxu0 %v216
      %v218 = vpop.f32.mrf.mxu0
      %v219 = vadd.f32 %v181, %v218
      %v220 = vand.u32 %v188, 4294901760
      %v221 = vsub.f32 %v188, %v220
      %v222 = vand.u32 %v221, 4294901760
      %v223 = vsub.f32 %v221, %v222
      %v224 = vand.u32 %v223, 4294901760
      %225 = vmatmul.f32.gmra.mxu0 %v224
      %v226 = vpop.f32.mrf.mxu0
      %v227 = vadd.f32 %v181, %v226
      %228 = vdwg.mxu0
      %229 = vmatpush.msra.mxu0 0.0
      %230 = vmatpush.msra.mxu0 0.0
      %231 = vmatpush.msra.mxu0 0.0
      %232 = vmatpush.msra.mxu0 0.0
      %233 = vmatpush.msra.mxu0 0.0
      %234 = vmatpush.msra.mxu0 0.0
      %235 = vmatpush.msra.mxu0 0.0
      %236 = vmatpush.msra.mxu0 0.0
      %237 = vmatpush.msra.mxu0 0.0
      %238 = vmatpush.msra.mxu0 0.0
      %v239 = vand.u32 %v178, 4294901760
      %v240 = vsub.f32 %v178, %v239
      %v241 = vand.u32 %v240, 4294901760
      %v242 = vsub.f32 %v240, %v241
      %v243 = vand.u32 %v242, 4294901760
      %244 = vmatpush.msra.mxu0 %v243
      %v245 = vand.u32 %v177, 4294901760
      %v246 = vsub.f32 %v177, %v245
      %v247 = vand.u32 %v246, 4294901760
      %v248 = vsub.f32 %v246, %v247
      %v249 = vand.u32 %v248, 4294901760
      %250 = vmatpush.msra.mxu0 %v249
      %v251 = vand.u32 %v176, 4294901760
      %v252 = vsub.f32 %v176, %v251
      %v253 = vand.u32 %v252, 4294901760
      %v254 = vsub.f32 %v252, %v253
      %v255 = vand.u32 %v254, 4294901760
      %256 = vmatpush.msra.mxu0 %v255
      %v257 = vand.u32 %v175, 4294901760
      %v258 = vsub.f32 %v175, %v257
      %v259 = vand.u32 %v258, 4294901760
      %v260 = vsub.f32 %v258, %v259
      %v261 = vand.u32 %v260, 4294901760
      %262 = vmatpush.msra.mxu0 %v261
      %v263 = vand.u32 %v174, 4294901760
      %v264 = vsub.f32 %v174, %v263
      %v265 = vand.u32 %v264, 4294901760
      %v266 = vsub.f32 %v264, %v265
      %v267 = vand.u32 %v266, 4294901760
      %268 = vmatpush.msra.mxu0 %v267
      %v269 = vand.u32 %v173, 4294901760
      %v270 = vsub.f32 %v173, %v269
      %v271 = vand.u32 %v270, 4294901760
      %v272 = vsub.f32 %v270, %v271
      %v273 = vand.u32 %v272, 4294901760
      %274 = vmatpush.msra.mxu0 %v273
      %v275 = vand.u32 %v185, 4294901760
      %276 = vmatmul.f32.gmra.mxu0 %v275
      %v277 = vpop.f32.mrf.mxu0
      %v278 = vadd.f32 %v219, %v277
      %v279 = vand.u32 %v188, 4294901760
      %280 = vmatmul.f32.gmra.mxu0 %v279
      %v281 = vpop.f32.mrf.mxu0
      %v282 = vadd.f32 %v227, %v281
      %283 = vdwg.mxu0
      %284 = vmatpush.msra.mxu0 0.0
      %285 = vmatpush.msra.mxu0 0.0
      %286 = vmatpush.msra.mxu0 0.0
      %287 = vmatpush.msra.mxu0 0.0
      %288 = vmatpush.msra.mxu0 0.0
      %289 = vmatpush.msra.mxu0 0.0
      %290 = vmatpush.msra.mxu0 0.0
      %291 = vmatpush.msra.mxu0 0.0
      %292 = vmatpush.msra.mxu0 0.0
      %293 = vmatpush.msra.mxu0 0.0
      %v294 = vand.u32 %v178, 4294901760
      %v295 = vsub.f32 %v178, %v294
      %296 = vmatpush.msra.mxu0 %v295
      %v297 = vand.u32 %v177, 4294901760
      %v298 = vsub.f32 %v177, %v297
      %299 = vmatpush.msra.mxu0 %v298
      %v300 = vand.u32 %v176, 4294901760
      %v301 = vsub.f32 %v176, %v300
      %302 = vmatpush.msra.mxu0 %v301
      %v303 = vand.u32 %v175, 4294901760
      %v304 = vsub.f32 %v175, %v303
      %305 = vmatpush.msra.mxu0 %v304
      %v306 = vand.u32 %v174, 4294901760
      %v307 = vsub.f32 %v174, %v306
      %308 = vmatpush.msra.mxu0 %v307
      %v309 = vand.u32 %v173, 4294901760
      %v310 = vsub.f32 %v173, %v309
      %311 = vmatpush.msra.mxu0 %v310
      %v312 = vand.u32 %v185, 4294901760
      %v313 = vsub.f32 %v185, %v312
      %314 = vmatmul.f32.gmra.mxu0 %v313
      %v315 = vpop.f32.mrf.mxu0
      %v316 = vadd.f32 %v278, %v315
      %v317 = vand.u32 %v188, 4294901760
      %v318 = vsub.f32 %v188, %v317
      %319 = vmatmul.f32.gmra.mxu0 %v318
      %v320 = vpop.f32.mrf.mxu0
      %v321 = vadd.f32 %v282, %v320
      %322 = vdwg.mxu0
      %323 = vmatpush.msra.mxu0 0.0
      %324 = vmatpush.msra.mxu0 0.0
      %325 = vmatpush.msra.mxu0 0.0
      %326 = vmatpush.msra.mxu0 0.0
      %327 = vmatpush.msra.mxu0 0.0
      %328 = vmatpush.msra.mxu0 0.0
      %329 = vmatpush.msra.mxu0 0.0
      %330 = vmatpush.msra.mxu0 0.0
      %331 = vmatpush.msra.mxu0 0.0
      %332 = vmatpush.msra.mxu0 0.0
      %v333 = vand.u32 %v178, 4294901760
      %334 = vmatpush.msra.mxu0 %v333
      %v335 = vand.u32 %v177, 4294901760
      %336 = vmatpush.msra.mxu0 %v335
      %v337 = vand.u32 %v176, 4294901760
      %338 = vmatpush.msra.mxu0 %v337
      %v339 = vand.u32 %v175, 4294901760
      %340 = vmatpush.msra.mxu0 %v339
      %v341 = vand.u32 %v174, 4294901760
      %342 = vmatpush.msra.mxu0 %v341
      %v343 = vand.u32 %v173, 4294901760
      %344 = vmatpush.msra.mxu0 %v343
      %v345 = vand.u32 %v185, 4294901760
      %v346 = vsub.f32 %v185, %v345
      %v347 = vand.u32 %v346, 4294901760
      %348 = vmatmul.f32.gmra.mxu0 %v347
      %v349 = vpop.f32.mrf.mxu0
      %v350 = vadd.f32 %v316, %v349
      %v351 = vand.u32 %v188, 4294901760
      %v352 = vsub.f32 %v188, %v351
      %v353 = vand.u32 %v352, 4294901760
      %354 = vmatmul.f32.gmra.mxu0 %v353
      %v355 = vpop.f32.mrf.mxu0
      %v356 = vadd.f32 %v321, %v355
      %357 = vdwg.mxu0
      %358 = vmatpush.msra.mxu0 0.0
      %359 = vmatpush.msra.mxu0 0.0
      %360 = vmatpush.msra.mxu0 0.0
      %361 = vmatpush.msra.mxu0 0.0
      %362 = vmatpush.msra.mxu0 0.0
      %363 = vmatpush.msra.mxu0 0.0
      %364 = vmatpush.msra.mxu0 0.0
      %365 = vmatpush.msra.mxu0 0.0
      %366 = vmatpush.msra.mxu0 0.0
      %367 = vmatpush.msra.mxu0 0.0
      %v368 = vand.u32 %v178, 4294901760
      %v369 = vsub.f32 %v178, %v368
      %v370 = vand.u32 %v369, 4294901760
      %371 = vmatpush.msra.mxu0 %v370
      %v372 = vand.u32 %v177, 4294901760
      %v373 = vsub.f32 %v177, %v372
      %v374 = vand.u32 %v373, 4294901760
      %375 = vmatpush.msra.mxu0 %v374
      %v376 = vand.u32 %v176, 4294901760
      %v377 = vsub.f32 %v176, %v376
      %v378 = vand.u32 %v377, 4294901760
      %379 = vmatpush.msra.mxu0 %v378
      %v380 = vand.u32 %v175, 4294901760
      %v381 = vsub.f32 %v175, %v380
      %v382 = vand.u32 %v381, 4294901760
      %383 = vmatpush.msra.mxu0 %v382
      %v384 = vand.u32 %v174, 4294901760
      %v385 = vsub.f32 %v174, %v384
      %v386 = vand.u32 %v385, 4294901760
      %387 = vmatpush.msra.mxu0 %v386
      %v388 = vand.u32 %v173, 4294901760
      %v389 = vsub.f32 %v173, %v388
      %v390 = vand.u32 %v389, 4294901760
      %391 = vmatpush.msra.mxu0 %v390
      %v392 = vand.u32 %v185, 4294901760
      %393 = vmatmul.f32.gmra.mxu0 %v392
      %v394 = vpop.f32.mrf.mxu0
      %v395 = vadd.f32 %v350, %v394
      %v396 = vand.u32 %v188, 4294901760
      %397 = vmatmul.f32.gmra.mxu0 %v396
      %v398 = vpop.f32.mrf.mxu0
      %v399 = vadd.f32 %v356, %v398
      %400 = vdwg.mxu0
      %401 = vmatpush.msra.mxu0 0.0
      %402 = vmatpush.msra.mxu0 0.0
      %403 = vmatpush.msra.mxu0 0.0
      %404 = vmatpush.msra.mxu0 0.0
      %405 = vmatpush.msra.mxu0 0.0
      %406 = vmatpush.msra.mxu0 0.0
      %407 = vmatpush.msra.mxu0 0.0
      %408 = vmatpush.msra.mxu0 0.0
      %409 = vmatpush.msra.mxu0 0.0
      %410 = vmatpush.msra.mxu0 0.0
      %v411 = vand.u32 %v178, 4294901760
      %412 = vmatpush.msra.mxu0 %v411
      %v413 = vand.u32 %v177, 4294901760
      %414 = vmatpush.msra.mxu0 %v413
      %v415 = vand.u32 %v176, 4294901760
      %416 = vmatpush.msra.mxu0 %v415
      %v417 = vand.u32 %v175, 4294901760
      %418 = vmatpush.msra.mxu0 %v417
      %v419 = vand.u32 %v174, 4294901760
      %420 = vmatpush.msra.mxu0 %v419
      %v421 = vand.u32 %v173, 4294901760
      %422 = vmatpush.msra.mxu0 %v421
      %v423 = vand.u32 %v185, 4294901760
      %424 = vmatmul.f32.gmra.mxu0 %v423
      %v425 = vpop.f32.mrf.mxu0
      %v426 = vadd.f32 %v395, %v425
      %v427 = vand.u32 %v188, 4294901760
      %428 = vmatmul.f32.gmra.mxu0 %v427
      %v429 = vpop.f32.mrf.mxu0
      %v430 = vadd.f32 %v399, %v429
      %431 = vdwg.mxu0
      %vm432 = vcmask 261120
      %433 = vst.msk [vmem:[%s170] sm:$0xff] %vm432, %v426
      %434 = vst.msk [vmem:[%s170 + $0x8] sm:$0xff] %vm432, %v430
      %p435 = scmp.lt.s32.totalorder %s14, 1
      %s436 = scalar_select %p435, %s14, 1
      %s437 = smul.addr %s436, 2
      %s438 = smul.addr %s437, 8
      %s439 = scalar_lea.vmem %s3, %s438
      // Predicated region
      $region33: #{vit_forward.6} parent=31 // pred_check
        %p440 = pneg %p100
      $region34: #{vit_forward.6} parent=31 // pred_check_branch
        %442 = sbr.rel (%p440) target = $region36
      $region35: #{vit_forward.6} parent=31 // pred_region
        _
      $region36: #{vit_forward.6} parent=31 // pred_fallthru
        _
    $region32: #{vit_forward.6} parent=5 // pred_fallthru
      _
    %p443 = scmp.le.s32.totalorder 2, %s9
    // Predicated region
    $region37: #{vit_forward.6} parent=5 // pred_check
      %p444 = pneg %p443
    $region38: #{vit_forward.6} parent=5 // pred_check_branch
      %446 = sbr.rel (%p444) target = $region40
    $region39: #{vit_forward.6} parent=5 // pred_region
      %s447 = ssub.s32 %s9, 2
      // Predicated region
      $region41: #{vit_forward.6} parent=39 // pred_check
        %p448 = pneg %p106
      $region42: #{vit_forward.6} parent=39 // pred_check_branch
        %450 = sbr.rel (%p448) target = $region44
      $region43: #{vit_forward.6} parent=39 // pred_region
        %p451 = scmp.lt.s32.totalorder %s15, 1
        %s452 = scalar_select %p451, %s15, 1
        %s453 = smul.addr %s452, 2
        %s454 = smul.addr %s453, 8
        %s455 = scalar_lea.vmem %s3, %s454
      $region44: #{vit_forward.6} parent=39 // pred_fallthru
        _
    $region40: #{vit_forward.6} parent=5 // pred_fallthru
      _
  $region6: #{vit_forward.6} parent=0 // loop_footer
    %s13 = sadd.s32 1, %s9
  $region7: #{vit_forward.6} parent=0 // loop_footer_branch
    %8 = sbr.rel target = $region3
  $region8: #{vit_forward.6} parent=0 // loop_exit
    _

// kernel: vit_forward.7
$region0: #{vit_forward.7}
  #allocation0 [shape = 'u32[]', space=smem, size = 0x4, offset = 0x4, fixed_abs, tag = 'smem constant byte address 0x4 - core index']
  #allocation1 [shape = 'u32[72,128]{1,0:T(1,128)}', space=vmem, size = 0x9000, scoped, tag = 'internal scratch']
  %s0 = inlined_call_operand.vmem [shape: f32[2,17,32], index: 0, kind: input, shape index: {}]
  %s1 = inlined_call_operand.vmem [shape: f32[1,32], index: 1, kind: input, shape index: {}]
  %s2 = inlined_call_operand.vmem [shape: f32[1,32], index: 2, kind: input, shape index: {}]
  %s3 = inlined_call_operand.vmem [shape: f32[32,32], index: 3, kind: input, shape index: {}]
  %s4 = inlined_call_operand.vmem [shape: f32[32,32], index: 4, kind: input, shape index: {}]
  %s5 = inlined_call_operand.vmem [shape: f32[17,17], index: 5, kind: input, shape index: {}]
  %s6 = inlined_call_operand.vmem [shape: f32[17,17], index: 6, kind: input, shape index: {}]
  %s7 = inlined_call_operand.vmem [shape: f32[2,17,32], index: 7, kind: output, shape index: {}]
  %s8 = sld [smem:[#allocation0]]
  $region61: #{vit_forward.7} parent=0
    _
  %s10 = ssub.s32 1, %s8
  %s11 = scalar_select 0, %s10, %s8
  loop: start=0, step=1, limit=4
  $region2: #{vit_forward.7} parent=0 // loop_pre_header
    _
  $region3: #{vit_forward.7} parent=0 // loop_header
    %s13 = sphi 0, %s17
    %p14 = scmp.ge.s32.totalorder %s13, 4
    %s23 = sphi 0, %s25
    %s26 = sphi 0, %s23
    %s27 = sphi 0, %s26
    %s43 = sphi 0, %s27
    %s47 = sphi 0, %s47
    %s49 = sphi 0, %s47
    %s50 = sphi 0, %s49
    %s64 = sphi 0, %s50
    %s68 = sphi 0, %s68
    %s70 = sphi 0, %s68
    %s71 = sphi 0, %s70
    %s85 = sphi 0, %s71
    %s89 = sphi 0, %s89
    %s91 = sphi 0, %s89
    %s92 = sphi 0, %s91
    %s106 = sphi 0, %s92
    %s110 = sphi 0, %s110
    %s112 = sphi 0, %s110
    %s113 = sphi 0, %s112
    %s127 = sphi 0, %s113
    %s131 = sphi 0, %s131
    %s133 = sphi 0, %s131
    %s134 = sphi 0, %s133
    %s148 = sphi 0, %s134
    %s152 = sphi 0, %s152
    %s154 = sphi 0, %s152
    %s155 = sphi 0, %s154
    %s169 = sphi 0, %s155
    %s175 = sphi 0, %s177
    %s178 = sphi 0, %s175
    %s179 = sphi 0, %s178
    %s195 = sphi 0, %s179
  $region4: #{vit_forward.7} parent=0 // loop_header_branch
    %16 = sbr.rel (%p14) target = $region8
  $region5: #{vit_forward.7} parent=0 // loop_body
    %s18 = ssub.s32 %s13, 1
    %s19 = ssub.s32 %s13, 2
    %s20 = sadd.s32 %s13, 1
    %s21 = ssub.s32 %s13, %s20
    %p22 = scmp.eq.s32.totalorder %s21, 0
    %s24 = sadd.s32 %s23, 1
    %s25 = scalar_select %p22, %s23, %s24
    %p28 = pneg %p22
    %p29 = scmp.eq.s32.totalorder %s13, 1
    %p30 = por %p28, %p29
    %p31 = scmp.ne.s32.totalorder %s23, %s26
    %p32 = scmp.eq.s32.totalorder %s13, 0
    %p33 = por %p31, %p32
    %p34 = scmp.ne.s32.totalorder %s23, %s26
    %p35 = scmp.eq.s32.totalorder %s18, 1
    %p36 = por %p34, %p35
    %p37 = scmp.ne.s32.totalorder %s26, %s27
    %p38 = scmp.eq.s32.totalorder %s18, 0
    %p39 = por %p37, %p38
    %p40 = scmp.ne.s32.totalorder %s26, %s27
    %p41 = scmp.eq.s32.totalorder %s19, 1
    %p42 = por %p40, %p41
    %p44 = scmp.ne.s32.totalorder %s27, %s43
    %p45 = scmp.eq.s32.totalorder %s19, 0
    %p46 = por %p44, %p45
    %s48 = sadd.s32 %s47, 1
    %p51 = scmp.eq.s32.totalorder %s13, 1
    %p52 = scmp.ne.s32.totalorder %s47, %s49
    %p53 = scmp.eq.s32.totalorder %s13, 0
    %p54 = por %p52, %p53
    %p55 = scmp.ne.s32.totalorder %s47, %s49
    %p56 = scmp.eq.s32.totalorder %s18, 1
    %p57 = por %p55, %p56
    %p58 = scmp.ne.s32.totalorder %s49, %s50
    %p59 = scmp.eq.s32.totalorder %s18, 0
    %p60 = por %p58, %p59
    %p61 = scmp.ne.s32.totalorder %s49, %s50
    %p62 = scmp.eq.s32.totalorder %s19, 1
    %p63 = por %p61, %p62
    %p65 = scmp.ne.s32.totalorder %s50, %s64
    %p66 = scmp.eq.s32.totalorder %s19, 0
    %p67 = por %p65, %p66
    %s69 = sadd.s32 %s68, 1
    %p72 = scmp.eq.s32.totalorder %s13, 1
    %p73 = scmp.ne.s32.totalorder %s68, %s70
    %p74 = scmp.eq.s32.totalorder %s13, 0
    %p75 = por %p73, %p74
    %p76 = scmp.ne.s32.totalorder %s68, %s70
    %p77 = scmp.eq.s32.totalorder %s18, 1
    %p78 = por %p76, %p77
    %p79 = scmp.ne.s32.totalorder %s70, %s71
    %p80 = scmp.eq.s32.totalorder %s18, 0
    %p81 = por %p79, %p80
    %p82 = scmp.ne.s32.totalorder %s70, %s71
    %p83 = scmp.eq.s32.totalorder %s19, 1
    %p84 = por %p82, %p83
    %p86 = scmp.ne.s32.totalorder %s71, %s85
    %p87 = scmp.eq.s32.totalorder %s19, 0
    %p88 = por %p86, %p87
    %s90 = sadd.s32 %s89, 1
    %p93 = scmp.eq.s32.totalorder %s13, 1
    %p94 = scmp.ne.s32.totalorder %s89, %s91
    %p95 = scmp.eq.s32.totalorder %s13, 0
    %p96 = por %p94, %p95
    %p97 = scmp.ne.s32.totalorder %s89, %s91
    %p98 = scmp.eq.s32.totalorder %s18, 1
    %p99 = por %p97, %p98
    %p100 = scmp.ne.s32.totalorder %s91, %s92
    %p101 = scmp.eq.s32.totalorder %s18, 0
    %p102 = por %p100, %p101
    %p103 = scmp.ne.s32.totalorder %s91, %s92
    %p104 = scmp.eq.s32.totalorder %s19, 1
    %p105 = por %p103, %p104
    %p107 = scmp.ne.s32.totalorder %s92, %s106
    %p108 = scmp.eq.s32.totalorder %s19, 0
    %p109 = por %p107, %p108
    %s111 = sadd.s32 %s110, 1
    %p114 = scmp.eq.s32.totalorder %s13, 1
    %p115 = scmp.ne.s32.totalorder %s110, %s112
    %p116 = scmp.eq.s32.totalorder %s13, 0
    %p117 = por %p115, %p116
    %p118 = scmp.ne.s32.totalorder %s110, %s112
    %p119 = scmp.eq.s32.totalorder %s18, 1
    %p120 = por %p118, %p119
    %p121 = scmp.ne.s32.totalorder %s112, %s113
    %p122 = scmp.eq.s32.totalorder %s18, 0
    %p123 = por %p121, %p122
    %p124 = scmp.ne.s32.totalorder %s112, %s113
    %p125 = scmp.eq.s32.totalorder %s19, 1
    %p126 = por %p124, %p125
    %p128 = scmp.ne.s32.totalorder %s113, %s127
    %p129 = scmp.eq.s32.totalorder %s19, 0
    %p130 = por %p128, %p129
    %s132 = sadd.s32 %s131, 1
    %p135 = scmp.eq.s32.totalorder %s13, 1
    %p136 = scmp.ne.s32.totalorder %s131, %s133
    %p137 = scmp.eq.s32.totalorder %s13, 0
    %p138 = por %p136, %p137
    %p139 = scmp.ne.s32.totalorder %s131, %s133
    %p140 = scmp.eq.s32.totalorder %s18, 1
    %p141 = por %p139, %p140
    %p142 = scmp.ne.s32.totalorder %s133, %s134
    %p143 = scmp.eq.s32.totalorder %s18, 0
    %p144 = por %p142, %p143
    %p145 = scmp.ne.s32.totalorder %s133, %s134
    %p146 = scmp.eq.s32.totalorder %s19, 1
    %p147 = por %p145, %p146
    %p149 = scmp.ne.s32.totalorder %s134, %s148
    %p150 = scmp.eq.s32.totalorder %s19, 0
    %p151 = por %p149, %p150
    %s153 = sadd.s32 %s152, 1
    %p156 = scmp.eq.s32.totalorder %s13, 1
    %p157 = scmp.ne.s32.totalorder %s152, %s154
    %p158 = scmp.eq.s32.totalorder %s13, 0
    %p159 = por %p157, %p158
    %p160 = scmp.ne.s32.totalorder %s152, %s154
    %p161 = scmp.eq.s32.totalorder %s18, 1
    %p162 = por %p160, %p161
    %p163 = scmp.ne.s32.totalorder %s154, %s155
    %p164 = scmp.eq.s32.totalorder %s18, 0
    %p165 = por %p163, %p164
    %p166 = scmp.ne.s32.totalorder %s154, %s155
    %p167 = scmp.eq.s32.totalorder %s19, 1
    %p168 = por %p166, %p167
    %p170 = scmp.ne.s32.totalorder %s155, %s169
    %p171 = scmp.eq.s32.totalorder %s19, 0
    %p172 = por %p170, %p171
    %s173 = ssub.s32 %s13, %s20
    %p174 = scmp.eq.s32.totalorder %s173, 0
    %s176 = sadd.s32 %s175, 1
    %s177 = scalar_select %p174, %s175, %s176
    %p180 = pneg %p174
    %p181 = scmp.eq.s32.totalorder %s13, 1
    %p182 = por %p180, %p181
    %p183 = scmp.ne.s32.totalorder %s175, %s178
    %p184 = scmp.eq.s32.totalorder %s13, 0
    %p185 = por %p183, %p184
    %p186 = scmp.ne.s32.totalorder %s175, %s178
    %p187 = scmp.eq.s32.totalorder %s18, 1
    %p188 = por %p186, %p187
    %p189 = scmp.ne.s32.totalorder %s178, %s179
    %p190 = scmp.eq.s32.totalorder %s18, 0
    %p191 = por %p189, %p190
    %p192 = scmp.ne.s32.totalorder %s178, %s179
    %p193 = scmp.eq.s32.totalorder %s19, 1
    %p194 = por %p192, %p193
    %p196 = scmp.ne.s32.totalorder %s179, %s195
    %p197 = scmp.eq.s32.totalorder %s19, 0
    %p198 = por %p196, %p197
    %p199 = scmp.le.s32.totalorder 1, %s13
    %p200 = scmp.lt.s32.totalorder %s13, 3
    %p201 = pnand %p199, %p200
    %p202 = pneg %p201
    // Predicated region
    $region9: #{vit_forward.7} parent=5 // pred_check
      _
    $region10: #{vit_forward.7} parent=5 // pred_check_branch
      %204 = sbr.rel (%p201) target = $region12
    $region11: #{vit_forward.7} parent=5 // pred_region
      %s205 = ssub.s32 %s13, 1
      // Predicated region
      $region13: #{vit_forward.7} parent=11 // pred_check
        %p206 = pneg %p60
      $region14: #{vit_forward.7} parent=11 // pred_check_branch
        %208 = sbr.rel (%p206) target = $region16
      $region15: #{vit_forward.7} parent=11 // pred_region
        _
      $region16: #{vit_forward.7} parent=11 // pred_fallthru
        _
      // Predicated region
      $region17: #{vit_forward.7} parent=11 // pred_check
        %p209 = pneg %p81
      $region18: #{vit_forward.7} parent=11 // pred_check_branch
        %211 = sbr.rel (%p209) target = $region20
      $region19: #{vit_forward.7} parent=11 // pred_region
        _
      $region20: #{vit_forward.7} parent=11 // pred_fallthru
        _
      // Predicated region
      $region21: #{vit_forward.7} parent=11 // pred_check
        %p212 = pneg %p102
      $region22: #{vit_forward.7} parent=11 // pred_check_branch
        %214 = sbr.rel (%p212) target = $region24
      $region23: #{vit_forward.7} parent=11 // pred_region
        _
      $region24: #{vit_forward.7} parent=11 // pred_fallthru
        _
      // Predicated region
      $region25: #{vit_forward.7} parent=11 // pred_check
        %p215 = pneg %p123
      $region26: #{vit_forward.7} parent=11 // pred_check_branch
        %217 = sbr.rel (%p215) target = $region28
      $region27: #{vit_forward.7} parent=11 // pred_region
        _
      $region28: #{vit_forward.7} parent=11 // pred_fallthru
        _
      // Predicated region
      $region29: #{vit_forward.7} parent=11 // pred_check
        %p218 = pneg %p144
      $region30: #{vit_forward.7} parent=11 // pred_check_branch
        %220 = sbr.rel (%p218) target = $region32
      $region31: #{vit_forward.7} parent=11 // pred_region
        _
      $region32: #{vit_forward.7} parent=11 // pred_fallthru
        _
      // Predicated region
      $region33: #{vit_forward.7} parent=11 // pred_check
        %p221 = pneg %p165
      $region34: #{vit_forward.7} parent=11 // pred_check_branch
        %223 = sbr.rel (%p221) target = $region36
      $region35: #{vit_forward.7} parent=11 // pred_region
        _
      $region36: #{vit_forward.7} parent=11 // pred_fallthru
        _
    $region12: #{vit_forward.7} parent=5 // pred_fallthru
      _
    %p224 = scmp.lt.s32.totalorder %s13, 2
    // Predicated region
    $region37: #{vit_forward.7} parent=5 // pred_check
      %p225 = pneg %p224
    $region38: #{vit_forward.7} parent=5 // pred_check_branch
      %227 = sbr.rel (%p225) target = $region40
    $region39: #{vit_forward.7} parent=5 // pred_region
      // Predicated region
      $region41: #{vit_forward.7} parent=39 // pred_check
        %p228 = pneg %p33
      $region42: #{vit_forward.7} parent=39 // pred_check_branch
        %230 = sbr.rel (%p228) target = $region44
      $region43: #{vit_forward.7} parent=39 // pred_region
        %p231 = scmp.lt.s32.totalorder %s13, 1
        %s232 = scalar_select %p231, %s13, 1
        %s233 = smul.addr %s232, 3
        %s234 = smul.addr %s233, 8
        %s235 = scalar_lea.vmem %s0, %s234
      $region44: #{vit_forward.7} parent=39 // pred_fallthru
        _
    $region40: #{vit_forward.7} parent=5 // pred_fallthru
      _
    %p236 = scmp.le.s32.totalorder 1, %s13
    %p237 = scmp.lt.s32.totalorder %s13, 3
    %p238 = pnand %p236, %p237
    %p239 = pneg %p238
    // Predicated region
    $region45: #{vit_forward.7} parent=5 // pred_check
      _
    $region46: #{vit_forward.7} parent=5 // pred_check_branch
      %241 = sbr.rel (%p238) target = $region48
    $region47: #{vit_forward.7} parent=5 // pred_region
      %s242 = ssub.s32 %s13, 1
      %p243 = scmp.lt.s32.totalorder %s18, 1
      %s244 = scalar_select %p243, %s18, 1
      %s245 = smul.addr %s244, 3
      %s246 = smul.addr %s245, 8
      %s247 = scalar_lea.vmem %s0, %s246
      %p248 = pneg %p39
      %p249 = pneg %p36
      %p250 = pneg %p60
      %p251 = pneg %p57
      %p252 = pneg %p81
      %p253 = pneg %p78
      %p254 = pneg %p102
      %p255 = pneg %p99
      %p256 = pneg %p123
      %p257 = pneg %p120
      %p258 = pneg %p144
      %p259 = pneg %p141
      %p260 = pneg %p165
      %p261 = pneg %p162
      %p262 = pneg %p191
      %p263 = pneg %p188
      %p264 = scmp.lt.s32.totalorder %s18, 1
      %s265 = scalar_select %p264, %s18, 1
      %s266 = smul.addr %s265, 3
      %s267 = smul.addr %s266, 8
      %s268 = scalar_lea.vmem %s7, %s267
      %p269 = scmp.lt.s32.totalorder %s18, 1
      %s270 = scalar_select %p269, %s18, 1
      %s271 = smul.addr %s270, 3
      %s272 = smul.addr %s271, 8
      %s273 = scalar_lea.vmem %s0, %s272
      %p274 = scmp.lt.s32.totalorder %s18, 1
      %s275 = scalar_select %p274, %s18, 1
      %s276 = smul.addr %s275, 3
      %s277 = smul.addr %s276, 8
      %s278 = scalar_lea.vmem %s7, %s277
      %v279 = vld [vmem:[%s273] sm:$0xff]
      %v280 = vld [vmem:[%s273 + $0x8] sm:$0xff]
      %v281 = vld [vmem:[%s273 + $0x10] sm:$0x1]
      %v282 = vld [vmem:[%s1] sm:$0x1]
      %v283 = vld [vmem:[%s2] sm:$0x1]
      %vm284 = vcmask 261120
      %v285 = vsel %vm284, %v279, 0.0
      %286 = vadd.xlane.f32.xlu0 %v285
      %v287 = vpop.xlane.xlu0 %286
      %v288 = vsel %vm284, %v280, 0.0
      %289 = vadd.xlane.f32.xlu0 %v288
      %v290 = vpop.xlane.xlu0 %289
      %vm291 = vcmask 253952
      %v292 = vsel %vm291, %v281, 0.0
      %293 = vadd.xlane.f32.xlu0 %v292
      %v294 = vpop.xlane.xlu0 %293
      %v295 = vrcp.pop 32.0
      %v296 = vmul.f32 32.0, %v295
      %v297 = vsub.f32 1.0, %v296
      %v298 = vmul.f32 %v295, %v297
      %v299 = vadd.f32 %v295, %v298
      %vm300 = vweird.f32 %v295
      %v301 = vsel %vm300, %v295, %v299
      %v302 = vmul.f32 %v287, %v301
      %v303 = vmul.f32 %v290, %v301
      %v304 = vmul.f32 %v294, %v301
      %v305 = vsub.f32 %v279, %v302
      %v306 = vsub.f32 %v280, %v303
      %v307 = vsub.f32 %v281, %v304
      %v308 = vmul.f32 %v305, %v305
      %v309 = vmul.f32 %v306, %v306
      %v310 = vmul.f32 %v307, %v307
      %v311 = vsel %vm284, %v308, 0.0
      %312 = vadd.xlane.f32.xlu0 %v311
      %v313 = vpop.xlane.xlu0 %312
      %v314 = vsel %vm284, %v309, 0.0
      %315 = vadd.xlane.f32.xlu0 %v314
      %v316 = vpop.xlane.xlu0 %315
      %v317 = vsel %vm291, %v310, 0.0
      %318 = vadd.xlane.f32.xlu0 %v317
      %v319 = vpop.xlane.xlu0 %318
      %v320 = vmul.f32 %v313, %v301
      %v321 = vmul.f32 %v316, %v301
      %v322 = vmul.f32 %v319, %v301
      %v323 = vadd.f32 %v320, 1e-05
      %v324 = vadd.f32 %v321, 1e-05
      %v325 = vadd.f32 %v322, 1e-05
      %v326 = vrsqrt.pop %v323
      %v327 = vmul.f32 %v326, %v323
      %v328 = vmul.f32 %v327, %v326
      %v329 = vmul.f32 0.5, %v328
      %v330 = vsub.f32 1.5, %v329
      %v331 = vmul.f32 %v326, %v330
      %vm332 = vweird.f32 %v323
      %vm333 = vweird.f32 %v326
      %vm334 = vmor %vm332, %vm333
      %v335 = vsel %vm334, %v326, %v331
      %v336 = vrsqrt.pop %v324
      %v337 = vmul.f32 %v336, %v324
      %v338 = vmul.f32 %v337, %v336
      %v339 = vmul.f32 0.5, %v338
      %v340 = vsub.f32 1.5, %v339
      %v341 = vmul.f32 %v336, %v340
      %vm342 = vweird.f32 %v324
      %vm343 = vweird.f32 %v336
      %vm344 = vmor %vm342, %vm343
      %v345 = vsel %vm344, %v336, %v341
      %v346 = vrsqrt.pop %v325
      %v347 = vmul.f32 %v346, %v325
      %v348 = vmul.f32 %v347, %v346
      %v349 = vmul.f32 0.5, %v348
      %v350 = vsub.f32 1.5, %v349
      %v351 = vmul.f32 %v346, %v350
      %vm352 = vweird.f32 %v325
      %vm353 = vweird.f32 %v346
      %vm354 = vmor %vm352, %vm353
      %v355 = vsel %vm354, %v346, %v351
      %v356 = vmul.f32 %v305, %v335
      %v357 = vmul.f32 %v306, %v345
      %v358 = vmul.f32 %v307, %v355
      %v360 = vperm.slane %v282, 0
      %v362 = vmul.f32 %v356, %v360
      %v363 = vmul.f32 %v357, %v360
      %v364 = vmul.f32 %v358, %v360
      %v366 = vperm.slane %v283, 0
      %v368 = vadd.f32 %v362, %v366
      %v369 = vadd.f32 %v363, %v366
      %v370 = vadd.f32 %v364, %v366
      %v371 = vmul.f32 %v368, 0.1
      %v372 = vmul.f32 %v369, 0.1
      %v373 = vmul.f32 %v370, 0.1
      %v374 = vmul.f32 %v371, %v368
      %v375 = vmul.f32 %v372, %v369
      %v376 = vmul.f32 %v373, %v370
      %v377 = vadd.f32 %v368, %v374
      %v378 = vadd.f32 %v369, %v375
      %v379 = vadd.f32 %v370, %v376
      %v380 = vld [vmem:[%s3] sm:$0xff]
      %v381 = vld [vmem:[%s3 + $0x8] sm:$0xff]
      %v382 = vld [vmem:[%s3 + $0x10] sm:$0xff]
      %v383 = vld [vmem:[%s3 + $0x18] sm:$0xff]
      %v385 = vsel %vm284, %v377, 0
      %v388 = vsel %vm284, %v378, 0
      %v391 = vsel %vm284, %v379, 0
      %393 = vmatpush.msra.mxu0 0.0
      %394 = vmatpush.msra.mxu0 0.0
      %395 = vmatpush.msra.mxu0 0.0
      %396 = vmatpush.msra.mxu0 0.0
      %397 = vmatpush.msra.mxu0 0.0
      %398 = vmatpush.msra.mxu0 0.0
      %399 = vmatpush.msra.mxu0 0.0
      %400 = vmatpush.msra.mxu0 0.0
      %401 = vmatpush.msra.mxu0 0.0
      %402 = vmatpush.msra.mxu0 0.0
      %403 = vmatpush.msra.mxu0 0.0
      %404 = vmatpush.msra.mxu0 0.0
      %v405 = vand.u32 %v383, 4294901760
      %406 = vmatpush.msra.mxu0 %v405
      %v407 = vand.u32 %v382, 4294901760
      %408 = vmatpush.msra.mxu0 %v407
      %v409 = vand.u32 %v381, 4294901760
      %410 = vmatpush.msra.mxu0 %v409
      %v411 = vand.u32 %v380, 4294901760
      %412 = vmatpush.msra.mxu0 %v411
      %v413 = vand.u32 %v385, 4294901760
      %v414 = vsub.f32 %v385, %v413
      %v415 = vand.u32 %v414, 4294901760
      %v416 = vsub.f32 %v414, %v415
      %v417 = vand.u32 %v416, 4294901760
      %418 = vmatmul.f32.gmra.mxu0 %v417
      %v419 = vpop.f32.mrf.mxu0
      %v420 = vadd.f32 0.0, %v419
      %v421 = vand.u32 %v388, 4294901760
      %v422 = vsub.f32 %v388, %v421
      %v423 = vand.u32 %v422, 4294901760
      %v424 = vsub.f32 %v422, %v423
      %v425 = vand.u32 %v424, 4294901760
      %426 = vmatmul.f32.gmra.mxu0 %v425
      %v427 = vpop.f32.mrf.mxu0
      %v428 = vadd.f32 0.0, %v427
      %v429 = vand.u32 %v391, 4294901760
      %v430 = vsub.f32 %v391, %v429
      %v431 = vand.u32 %v430, 4294901760
      %v432 = vsub.f32 %v430, %v431
      %v433 = vand.u32 %v432, 4294901760
      %434 = vmatmul.f32.gmra.mxu0 %v433
      %v435 = vpop.f32.mrf.mxu0
      %v436 = vadd.f32 0.0, %v435
      %437 = vdwg.mxu0
      %438 = vmatpush.msra.mxu0 0.0
      %439 = vmatpush.msra.mxu0 0.0
      %440 = vmatpush.msra.mxu0 0.0
      %441 = vmatpush.msra.mxu0 0.0
      %442 = vmatpush.msra.mxu0 0.0
      %443 = vmatpush.msra.mxu0 0.0
      %444 = vmatpush.msra.mxu0 0.0
      %445 = vmatpush.msra.mxu0 0.0
      %446 = vmatpush.msra.mxu0 0.0
      %447 = vmatpush.msra.mxu0 0.0
      %448 = vmatpush.msra.mxu0 0.0
      %449 = vmatpush.msra.mxu0 0.0
      %v450 = vand.u32 %v383, 4294901760
      %v451 = vsub.f32 %v383, %v450
      %v452 = vand.u32 %v451, 4294901760
      %v453 = vsub.f32 %v451, %v452
      %v454 = vand.u32 %v453, 4294901760
      %455 = vmatpush.msra.mxu0 %v454
      %v456 = vand.u32 %v382, 4294901760
      %v457 = vsub.f32 %v382, %v456
      %v458 = vand.u32 %v457, 4294901760
      %v459 = vsub.f32 %v457, %v458
      %v460 = vand.u32 %v459, 4294901760
      %461 = vmatpush.msra.mxu0 %v460
      %v462 = vand.u32 %v381, 4294901760
      %v463 = vsub.f32 %v381, %v462
      %v464 = vand.u32 %v463, 4294901760
      %v465 = vsub.f32 %v463, %v464
      %v466 = vand.u32 %v465, 4294901760
      %467 = vmatpush.msra.mxu0 %v466
      %v468 = vand.u32 %v380, 4294901760
      %v469 = vsub.f32 %v380, %v468
      %v470 = vand.u32 %v469, 4294901760
      %v471 = vsub.f32 %v469, %v470
      %v472 = vand.u32 %v471, 4294901760
      %473 = vmatpush.msra.mxu0 %v472
      %v474 = vand.u32 %v385, 4294901760
      %475 = vmatmul.f32.gmra.mxu0 %v474
      %v476 = vpop.f32.mrf.mxu0
      %v477 = vadd.f32 %v420, %v476
      %v478 = vand.u32 %v388, 4294901760
      %479 = vmatmul.f32.gmra.mxu0 %v478
      %v480 = vpop.f32.mrf.mxu0
      %v481 = vadd.f32 %v428, %v480
      %v482 = vand.u32 %v391, 4294901760
      %483 = vmatmul.f32.gmra.mxu0 %v482
      %v484 = vpop.f32.mrf.mxu0
      %v485 = vadd.f32 %v436, %v484
      %486 = vdwg.mxu0
      %487 = vmatpush.msra.mxu0 0.0
      %488 = vmatpush.msra.mxu0 0.0
      %489 = vmatpush.msra.mxu0 0.0
      %490 = vmatpush.msra.mxu0 0.0
      %491 = vmatpush.msra.mxu0 0.0
      %492 = vmatpush.msra.mxu0 0.0
      %493 = vmatpush.msra.mxu0 0.0
      %494 = vmatpush.msra.mxu0 0.0
      %495 = vmatpush.msra.mxu0 0.0
      %496 = vmatpush.msra.mxu0 0.0
      %497 = vmatpush.msra.mxu0 0.0
      %498 = vmatpush.msra.mxu0 0.0
      %v499 = vand.u32 %v383, 4294901760
      %v500 = vsub.f32 %v383, %v499
      %501 = vmatpush.msra.mxu0 %v500
      %v502 = vand.u32 %v382, 4294901760
      %v503 = vsub.f32 %v382, %v502
      %504 = vmatpush.msra.mxu0 %v503
      %v505 = vand.u32 %v381, 4294901760
      %v506 = vsub.f32 %v381, %v505
      %507 = vmatpush.msra.mxu0 %v506
      %v508 = vand.u32 %v380, 4294901760
      %v509 = vsub.f32 %v380, %v508
      %510 = vmatpush.msra.mxu0 %v509
      %v511 = vand.u32 %v385, 4294901760
      %v512 = vsub.f32 %v385, %v511
      %513 = vmatmul.f32.gmra.mxu0 %v512
      %v514 = vpop.f32.mrf.mxu0
      %v515 = vadd.f32 %v477, %v514
      %v516 = vand.u32 %v388, 4294901760
      %v517 = vsub.f32 %v388, %v516
      %518 = vmatmul.f32.gmra.mxu0 %v517
      %v519 = vpop.f32.mrf.mxu0
      %v520 = vadd.f32 %v481, %v519
      %v521 = vand.u32 %v391, 4294901760
      %v522 = vsub.f32 %v391, %v521
      %523 = vmatmul.f32.gmra.mxu0 %v522
      %v524 = vpop.f32.mrf.mxu0
      %v525 = vadd.f32 %v485, %v524
      %526 = vdwg.mxu0
      %527 = vmatpush.msra.mxu0 0.0
      %528 = vmatpush.msra.mxu0 0.0
      %529 = vmatpush.msra.mxu0 0.0
      %530 = vmatpush.msra.mxu0 0.0
      %531 = vmatpush.msra.mxu0 0.0
      %532 = vmatpush.msra.mxu0 0.0
      %533 = vmatpush.msra.mxu0 0.0
      %534 = vmatpush.msra.mxu0 0.0
      %535 = vmatpush.msra.mxu0 0.0
      %536 = vmatpush.msra.mxu0 0.0
      %537 = vmatpush.msra.mxu0 0.0
      %538 = vmatpush.msra.mxu0 0.0
      %v539 = vand.u32 %v383, 4294901760
      %540 = vmatpush.msra.mxu0 %v539
      %v541 = vand.u32 %v382, 4294901760
      %542 = vmatpush.msra.mxu0 %v541
      %v543 = vand.u32 %v381, 4294901760
      %544 = vmatpush.msra.mxu0 %v543
      %v545 = vand.u32 %v380, 4294901760
      %546 = vmatpush.msra.mxu0 %v545
      %v547 = vand.u32 %v385, 4294901760
      %v548 = vsub.f32 %v385, %v547
      %v549 = vand.u32 %v548, 4294901760
      %550 = vmatmul.f32.gmra.mxu0 %v549
      %v551 = vpop.f32.mrf.mxu0
      %v552 = vadd.f32 %v515, %v551
      %v553 = vand.u32 %v388, 4294901760
      %v554 = vsub.f32 %v388, %v553
      %v555 = vand.u32 %v554, 4294901760
      %556 = vmatmul.f32.gmra.mxu0 %v555
      %v557 = vpop.f32.mrf.mxu0
      %v558 = vadd.f32 %v520, %v557
      %v559 = vand.u32 %v391, 4294901760
      %v560 = vsub.f32 %v391, %v559
      %v561 = vand.u32 %v560, 4294901760
      %562 = vmatmul.f32.gmra.mxu0 %v561
      %v563 = vpop.f32.mrf.mxu0
      %v564 = vadd.f32 %v525, %v563
      %565 = vdwg.mxu0
      %566 = vmatpush.msra.mxu0 0.0
      %567 = vmatpush.msra.mxu0 0.0
      %568 = vmatpush.msra.mxu0 0.0
      %569 = vmatpush.msra.mxu0 0.0
      %570 = vmatpush.msra.mxu0 0.0
      %571 = vmatpush.msra.mxu0 0.0
      %572 = vmatpush.msra.mxu0 0.0
      %573 = vmatpush.msra.mxu0 0.0
      %574 = vmatpush.msra.mxu0 0.0
      %575 = vmatpush.msra.mxu0 0.0
      %576 = vmatpush.msra.mxu0 0.0
      %577 = vmatpush.msra.mxu0 0.0
      %v578 = vand.u32 %v383, 4294901760
      %v579 = vsub.f32 %v383, %v578
      %v580 = vand.u32 %v579, 4294901760
      %581 = vmatpush.msra.mxu0 %v580
      %v582 = vand.u32 %v382, 4294901760
      %v583 = vsub.f32 %v382, %v582
      %v584 = vand.u32 %v583, 4294901760
      %585 = vmatpush.msra.mxu0 %v584
      %v586 = vand.u32 %v381, 4294901760
      %v587 = vsub.f32 %v381, %v586
      %v588 = vand.u32 %v587, 4294901760
      %589 = vmatpush.msra.mxu0 %v588
      %v590 = vand.u32 %v380, 4294901760
      %v591 = vsub.f32 %v380, %v590
      %v592 = vand.u32 %v591, 4294901760
      %593 = vmatpush.msra.mxu0 %v592
      %v594 = vand.u32 %v385, 4294901760
      %595 = vmatmul.f32.gmra.mxu0 %v594
      %v596 = vpop.f32.mrf.mxu0
      %v597 = vadd.f32 %v552, %v596
      %v598 = vand.u32 %v388, 4294901760
      %599 = vmatmul.f32.gmra.mxu0 %v598
      %v600 = vpop.f32.mrf.mxu0
      %v601 = vadd.f32 %v558, %v600
      %v602 = vand.u32 %v391, 4294901760
      %603 = vmatmul.f32.gmra.mxu0 %v602
      %v604 = vpop.f32.mrf.mxu0
      %v605 = vadd.f32 %v564, %v604
      %606 = vdwg.mxu0
      %607 = vmatpush.msra.mxu0 0.0
      %608 = vmatpush.msra.mxu0 0.0
      %609 = vmatpush.msra.mxu0 0.0
      %610 = vmatpush.msra.mxu0 0.0
      %611 = vmatpush.msra.mxu0 0.0
      %612 = vmatpush.msra.mxu0 0.0
      %613 = vmatpush.msra.mxu0 0.0
      %614 = vmatpush.msra.mxu0 0.0
      %615 = vmatpush.msra.mxu0 0.0
      %616 = vmatpush.msra.mxu0 0.0
      %617 = vmatpush.msra.mxu0 0.0
      %618 = vmatpush.msra.mxu0 0.0
      %v619 = vand.u32 %v383, 4294901760
      %620 = vmatpush.msra.mxu0 %v619
      %v621 = vand.u32 %v382, 4294901760
      %622 = vmatpush.msra.mxu0 %v621
      %v623 = vand.u32 %v381, 4294901760
      %624 = vmatpush.msra.mxu0 %v623
      %v625 = vand.u32 %v380, 4294901760
      %626 = vmatpush.msra.mxu0 %v625
      %v627 = vand.u32 %v385, 4294901760
      %628 = vmatmul.f32.gmra.mxu0 %v627
      %v629 = vpop.f32.mrf.mxu0
      %v630 = vadd.f32 %v597, %v629
      %v631 = vand.u32 %v388, 4294901760
      %632 = vmatmul.f32.gmra.mxu0 %v631
      %v633 = vpop.f32.mrf.mxu0
      %v634 = vadd.f32 %v601, %v633
      %v635 = vand.u32 %v391, 4294901760
      %636 = vmatmul.f32.gmra.mxu0 %v635
      %v637 = vpop.f32.mrf.mxu0
      %v638 = vadd.f32 %v605, %v637
      %639 = vdwg.mxu0
      %v640 = vld [vmem:[%s4] sm:$0xff]
      %v641 = vld [vmem:[%s4 + $0x8] sm:$0xff]
      %v642 = vld [vmem:[%s4 + $0x10] sm:$0xff]
      %v643 = vld [vmem:[%s4 + $0x18] sm:$0xff]
      %644 = vmatpush.msra.mxu0 0.0
      %645 = vmatpush.msra.mxu0 0.0
      %646 = vmatpush.msra.mxu0 0.0
      %647 = vmatpush.msra.mxu0 0.0
      %648 = vmatpush.msra.mxu0 0.0
      %649 = vmatpush.msra.mxu0 0.0
      %650 = vmatpush.msra.mxu0 0.0
      %651 = vmatpush.msra.mxu0 0.0
      %652 = vmatpush.msra.mxu0 0.0
      %653 = vmatpush.msra.mxu0 0.0
      %654 = vmatpush.msra.mxu0 0.0
      %655 = vmatpush.msra.mxu0 0.0
      %v656 = vand.u32 %v643, 4294901760
      %657 = vmatpush.msra.mxu0 %v656
      %v658 = vand.u32 %v642, 4294901760
      %659 = vmatpush.msra.mxu0 %v658
      %v660 = vand.u32 %v641, 4294901760
      %661 = vmatpush.msra.mxu0 %v660
      %v662 = vand.u32 %v640, 4294901760
      %663 = vmatpush.msra.mxu0 %v662
      %v664 = vand.u32 %v385, 4294901760
      %v665 = vsub.f32 %v385, %v664
      %v666 = vand.u32 %v665, 4294901760
      %v667 = vsub.f32 %v665, %v666
      %v668 = vand.u32 %v667, 4294901760
      %669 = vmatmul.f32.gmra.mxu0 %v668
      %v670 = vpop.f32.mrf.mxu0
      %v671 = vadd.f32 0.0, %v670
      %v672 = vand.u32 %v388, 4294901760
      %v673 = vsub.f32 %v388, %v672
      %v674 = vand.u32 %v673, 4294901760
      %v675 = vsub.f32 %v673, %v674
      %v676 = vand.u32 %v675, 4294901760
      %677 = vmatmul.f32.gmra.mxu0 %v676
      %v678 = vpop.f32.mrf.mxu0
      %v679 = vadd.f32 0.0, %v678
      %v680 = vand.u32 %v391, 4294901760
      %v681 = vsub.f32 %v391, %v680
      %v682 = vand.u32 %v681, 4294901760
      %v683 = vsub.f32 %v681, %v682
      %v684 = vand.u32 %v683, 4294901760
      %685 = vmatmul.f32.gmra.mxu0 %v684
      %v686 = vpop.f32.mrf.mxu0
      %v687 = vadd.f32 0.0, %v686
      %688 = vdwg.mxu0
      %689 = vmatpush.msra.mxu0 0.0
      %690 = vmatpush.msra.mxu0 0.0
      %691 = vmatpush.msra.mxu0 0.0
      %692 = vmatpush.msra.mxu0 0.0
      %693 = vmatpush.msra.mxu0 0.0
      %694 = vmatpush.msra.mxu0 0.0
      %695 = vmatpush.msra.mxu0 0.0
      %696 = vmatpush.msra.mxu0 0.0
      %697 = vmatpush.msra.mxu0 0.0
      %698 = vmatpush.msra.mxu0 0.0
      %699 = vmatpush.msra.mxu0 0.0
      %700 = vmatpush.msra.mxu0 0.0
      %v701 = vand.u32 %v643, 4294901760
      %v702 = vsub.f32 %v643, %v701
      %v703 = vand.u32 %v702, 4294901760
      %v704 = vsub.f32 %v702, %v703
      %v705 = vand.u32 %v704, 4294901760
      %706 = vmatpush.msra.mxu0 %v705
      %v707 = vand.u32 %v642, 4294901760
      %v708 = vsub.f32 %v642, %v707
      %v709 = vand.u32 %v708, 4294901760
      %v710 = vsub.f32 %v708, %v709
      %v711 = vand.u32 %v710, 4294901760
      %712 = vmatpush.msra.mxu0 %v711
      %v713 = vand.u32 %v641, 4294901760
      %v714 = vsub.f32 %v641, %v713
      %v715 = vand.u32 %v714, 4294901760
      %v716 = vsub.f32 %v714, %v715
      %v717 = vand.u32 %v716, 4294901760
      %718 = vmatpush.msra.mxu0 %v717
      %v719 = vand.u32 %v640, 4294901760
      %v720 = vsub.f32 %v640, %v719
      %v721 = vand.u32 %v720, 4294901760
      %v722 = vsub.f32 %v720, %v721
      %v723 = vand.u32 %v722, 4294901760
      %724 = vmatpush.msra.mxu0 %v723
      %v725 = vand.u32 %v385, 4294901760
      %726 = vmatmul.f32.gmra.mxu0 %v725
      %v727 = vpop.f32.mrf.mxu0
      %v728 = vadd.f32 %v671, %v727
      %v729 = vand.u32 %v388, 4294901760
      %730 = vmatmul.f32.gmra.mxu0 %v729
      %v731 = vpop.f32.mrf.mxu0
      %v732 = vadd.f32 %v679, %v731
      %v733 = vand.u32 %v391, 4294901760
      %734 = vmatmul.f32.gmra.mxu0 %v733
      %v735 = vpop.f32.mrf.mxu0
      %v736 = vadd.f32 %v687, %v735
      %737 = vdwg.mxu0
      %738 = vmatpush.msra.mxu0 0.0
      %739 = vmatpush.msra.mxu0 0.0
      %740 = vmatpush.msra.mxu0 0.0
      %741 = vmatpush.msra.mxu0 0.0
      %742 = vmatpush.msra.mxu0 0.0
      %743 = vmatpush.msra.mxu0 0.0
      %744 = vmatpush.msra.mxu0 0.0
      %745 = vmatpush.msra.mxu0 0.0
      %746 = vmatpush.msra.mxu0 0.0
      %747 = vmatpush.msra.mxu0 0.0
      %748 = vmatpush.msra.mxu0 0.0
      %749 = vmatpush.msra.mxu0 0.0
      %v750 = vand.u32 %v643, 4294901760
      %v751 = vsub.f32 %v643, %v750
      %752 = vmatpush.msra.mxu0 %v751
      %v753 = vand.u32 %v642, 4294901760
      %v754 = vsub.f32 %v642, %v753
      %755 = vmatpush.msra.mxu0 %v754
      %v756 = vand.u32 %v641, 4294901760
      %v757 = vsub.f32 %v641, %v756
      %758 = vmatpush.msra.mxu0 %v757
      %v759 = vand.u32 %v640, 4294901760
      %v760 = vsub.f32 %v640, %v759
      %761 = vmatpush.msra.mxu0 %v760
      %v762 = vand.u32 %v385, 4294901760
      %v763 = vsub.f32 %v385, %v762
      %764 = vmatmul.f32.gmra.mxu0 %v763
      %v765 = vpop.f32.mrf.mxu0
      %v766 = vadd.f32 %v728, %v765
      %v767 = vand.u32 %v388, 4294901760
      %v768 = vsub.f32 %v388, %v767
      %769 = vmatmul.f32.gmra.mxu0 %v768
      %v770 = vpop.f32.mrf.mxu0
      %v771 = vadd.f32 %v732, %v770
      %v772 = vand.u32 %v391, 4294901760
      %v773 = vsub.f32 %v391, %v772
      %774 = vmatmul.f32.gmra.mxu0 %v773
      %v775 = vpop.f32.mrf.mxu0
      %v776 = vadd.f32 %v736, %v775
      %777 = vdwg.mxu0
      %778 = vmatpush.msra.mxu0 0.0
      %779 = vmatpush.msra.mxu0 0.0
      %780 = vmatpush.msra.mxu0 0.0
      %781 = vmatpush.msra.mxu0 0.0
      %782 = vmatpush.msra.mxu0 0.0
      %783 = vmatpush.msra.mxu0 0.0
      %784 = vmatpush.msra.mxu0 0.0
      %785 = vmatpush.msra.mxu0 0.0
      %786 = vmatpush.msra.mxu0 0.0
      %787 = vmatpush.msra.mxu0 0.0
      %788 = vmatpush.msra.mxu0 0.0
      %789 = vmatpush.msra.mxu0 0.0
      %v790 = vand.u32 %v643, 4294901760
      %791 = vmatpush.msra.mxu0 %v790
      %v792 = vand.u32 %v642, 4294901760
      %793 = vmatpush.msra.mxu0 %v792
      %v794 = vand.u32 %v641, 4294901760
      %795 = vmatpush.msra.mxu0 %v794
      %v796 = vand.u32 %v640, 4294901760
      %797 = vmatpush.msra.mxu0 %v796
      %v798 = vand.u32 %v385, 4294901760
      %v799 = vsub.f32 %v385, %v798
      %v800 = vand.u32 %v799, 4294901760
      %801 = vmatmul.f32.gmra.mxu0 %v800
      %v802 = vpop.f32.mrf.mxu0
      %v803 = vadd.f32 %v766, %v802
      %v804 = vand.u32 %v388, 4294901760
      %v805 = vsub.f32 %v388, %v804
      %v806 = vand.u32 %v805, 4294901760
      %807 = vmatmul.f32.gmra.mxu0 %v806
      %v808 = vpop.f32.mrf.mxu0
      %v809 = vadd.f32 %v771, %v808
      %v810 = vand.u32 %v391, 4294901760
      %v811 = vsub.f32 %v391, %v810
      %v812 = vand.u32 %v811, 4294901760
      %813 = vmatmul.f32.gmra.mxu0 %v812
      %v814 = vpop.f32.mrf.mxu0
      %v815 = vadd.f32 %v776, %v814
      %816 = vdwg.mxu0
      %817 = vmatpush.msra.mxu0 0.0
      %818 = vmatpush.msra.mxu0 0.0
      %819 = vmatpush.msra.mxu0 0.0
      %820 = vmatpush.msra.mxu0 0.0
      %821 = vmatpush.msra.mxu0 0.0
      %822 = vmatpush.msra.mxu0 0.0
      %823 = vmatpush.msra.mxu0 0.0
      %824 = vmatpush.msra.mxu0 0.0
      %825 = vmatpush.msra.mxu0 0.0
      %826 = vmatpush.msra.mxu0 0.0
      %827 = vmatpush.msra.mxu0 0.0
      %828 = vmatpush.msra.mxu0 0.0
      %v829 = vand.u32 %v643, 4294901760
      %v830 = vsub.f32 %v643, %v829
      %v831 = vand.u32 %v830, 4294901760
      %832 = vmatpush.msra.mxu0 %v831
      %v833 = vand.u32 %v642, 4294901760
      %v834 = vsub.f32 %v642, %v833
      %v835 = vand.u32 %v834, 4294901760
      %836 = vmatpush.msra.mxu0 %v835
      %v837 = vand.u32 %v641, 4294901760
      %v838 = vsub.f32 %v641, %v837
      %v839 = vand.u32 %v838, 4294901760
      %840 = vmatpush.msra.mxu0 %v839
      %v841 = vand.u32 %v640, 4294901760
      %v842 = vsub.f32 %v640, %v841
      %v843 = vand.u32 %v842, 4294901760
      %844 = vmatpush.msra.mxu0 %v843
      %v845 = vand.u32 %v385, 4294901760
      %846 = vmatmul.f32.gmra.mxu0 %v845
      %v847 = vpop.f32.mrf.mxu0
      %v848 = vadd.f32 %v803, %v847
      %v849 = vand.u32 %v388, 4294901760
      %850 = vmatmul.f32.gmra.mxu0 %v849
      %v851 = vpop.f32.mrf.mxu0
      %v852 = vadd.f32 %v809, %v851
      %v853 = vand.u32 %v391, 4294901760
      %854 = vmatmul.f32.gmra.mxu0 %v853
      %v855 = vpop.f32.mrf.mxu0
      %v856 = vadd.f32 %v815, %v855
      %857 = vdwg.mxu0
      %858 = vmatpush.msra.mxu0 0.0
      %859 = vmatpush.msra.mxu0 0.0
      %860 = vmatpush.msra.mxu0 0.0
      %861 = vmatpush.msra.mxu0 0.0
      %862 = vmatpush.msra.mxu0 0.0
      %863 = vmatpush.msra.mxu0 0.0
      %864 = vmatpush.msra.mxu0 0.0
      %865 = vmatpush.msra.mxu0 0.0
      %866 = vmatpush.msra.mxu0 0.0
      %867 = vmatpush.msra.mxu0 0.0
      %868 = vmatpush.msra.mxu0 0.0
      %869 = vmatpush.msra.mxu0 0.0
      %v870 = vand.u32 %v643, 4294901760
      %871 = vmatpush.msra.mxu0 %v870
      %v872 = vand.u32 %v642, 4294901760
      %873 = vmatpush.msra.mxu0 %v872
      %v874 = vand.u32 %v641, 4294901760
      %875 = vmatpush.msra.mxu0 %v874
      %v876 = vand.u32 %v640, 4294901760
      %877 = vmatpush.msra.mxu0 %v876
      %v878 = vand.u32 %v385, 4294901760
      %879 = vmatmul.f32.gmra.mxu0 %v878
      %v880 = vpop.f32.mrf.mxu0
      %v881 = vadd.f32 %v848, %v880
      %v882 = vand.u32 %v388, 4294901760
      %883 = vmatmul.f32.gmra.mxu0 %v882
      %v884 = vpop.f32.mrf.mxu0
      %v885 = vadd.f32 %v852, %v884
      %v886 = vand.u32 %v391, 4294901760
      %887 = vmatmul.f32.gmra.mxu0 %v886
      %v888 = vpop.f32.mrf.mxu0
      %v889 = vadd.f32 %v856, %v888
      %890 = vdwg.mxu0
      %v891 = vsub.f32 0.0, %v881
      %v892 = vsub.f32 0.0, %v885
      %v893 = vsub.f32 0.0, %v889
      %v894 = vmul.f32 %v630, %v630
      %v895 = vmul.f32 %v634, %v634
      %v896 = vmul.f32 %v638, %v638
      %v897 = vmul.f32 %v891, %v891
      %v898 = vmul.f32 %v892, %v892
      %v899 = vmul.f32 %v893, %v893
      %v900 = vsub.f32 %v894, %v897
      %v901 = vsub.f32 %v895, %v898
      %v902 = vsub.f32 %v896, %v899
      %v903 = vmul.f32 %v900, 0.1
      %v904 = vmul.f32 %v901, 0.1
      %v905 = vmul.f32 %v902, 0.1
      %v906 = vadd.f32 %v630, %v903
      %v907 = vadd.f32 %v634, %v904
      %v908 = vadd.f32 %v638, %v905
      %v909 = vmul.f32 %v630, %v891
      %v910 = vmul.f32 %v634, %v892
      %v911 = vmul.f32 %v638, %v893
      %v912 = vmul.f32 %v909, 0.2
      %v913 = vmul.f32 %v910, 0.2
      %v914 = vmul.f32 %v911, 0.2
      %v915 = vadd.f32 %v891, %v912
      %v916 = vadd.f32 %v892, %v913
      %v917 = vadd.f32 %v893, %v914
      %v918 = vld [vmem:[%s5] sm:$0xff]
      %v919 = vld [vmem:[%s5 + $0x8] sm:$0xff]
      %v920 = vld [vmem:[%s5 + $0x10] sm:$0x1]
      %v921 = vld [vmem:[%s6] sm:$0xff]
      %v922 = vld [vmem:[%s6 + $0x8] sm:$0xff]
      %v923 = vld [vmem:[%s6 + $0x10] sm:$0x1]
      %vm924 = vcmask 138240
      %v926 = vsel %vm924, %v921, 0
      %v929 = vsel %vm924, %v922, 0
      %v932 = vsel %vm924, %v923, 0
      %vm934 = vcmask 1040384
      %v936 = vsel %vm934, %v917, 0
      %938 = vmatpush.msra.mxu0 0.0
      %939 = vmatpush.msra.mxu0 0.0
      %940 = vmatpush.msra.mxu0 0.0
      %941 = vmatpush.msra.mxu0 0.0
      %942 = vmatpush.msra.mxu0 0.0
      %943 = vmatpush.msra.mxu0 0.0
      %944 = vmatpush.msra.mxu0 0.0
      %945 = vmatpush.msra.mxu0 0.0
      %946 = vmatpush.msra.mxu0 0.0
      %947 = vmatpush.msra.mxu0 0.0
      %948 = vmatpush.msra.mxu0 0.0
      %949 = vmatpush.msra.mxu0 0.0
      %950 = vmatpush.msra.mxu0 0.0
      %v951 = vand.u32 %v936, 4294901760
      %952 = vmatpush.msra.mxu0 %v951
      %v953 = vand.u32 %v916, 4294901760
      %954 = vmatpush.msra.mxu0 %v953
      %v955 = vand.u32 %v915, 4294901760
      %956 = vmatpush.msra.mxu0 %v955
      %v957 = vand.u32 %v926, 4294901760
      %v958 = vsub.f32 %v926, %v957
      %v959 = vand.u32 %v958, 4294901760
      %v960 = vsub.f32 %v958, %v959
      %v961 = vand.u32 %v960, 4294901760
      %962 = vmatmul.f32.gmra.mxu0 %v961
      %v963 = vpop.f32.mrf.mxu0
      %v964 = vadd.f32 0.0, %v963
      %v965 = vand.u32 %v929, 4294901760
      %v966 = vsub.f32 %v929, %v965
      %v967 = vand.u32 %v966, 4294901760
      %v968 = vsub.f32 %v966, %v967
      %v969 = vand.u32 %v968, 4294901760
      %970 = vmatmul.f32.gmra.mxu0 %v969
      %v971 = vpop.f32.mrf.mxu0
      %v972 = vadd.f32 0.0, %v971
      %v973 = vand.u32 %v932, 4294901760
      %v974 = vsub.f32 %v932, %v973
      %v975 = vand.u32 %v974, 4294901760
      %v976 = vsub.f32 %v974, %v975
      %v977 = vand.u32 %v976, 4294901760
      %978 = vmatmul.f32.gmra.mxu0 %v977
      %v979 = vpop.f32.mrf.mxu0
      %v980 = vadd.f32 0.0, %v979
      %981 = vdwg.mxu0
      %982 = vmatpush.msra.mxu0 0.0
      %983 = vmatpush.msra.mxu0 0.0
      %984 = vmatpush.msra.mxu0 0.0
      %985 = vmatpush.msra.mxu0 0.0
      %986 = vmatpush.msra.mxu0 0.0
      %987 = vmatpush.msra.mxu0 0.0
      %988 = vmatpush.msra.mxu0 0.0
      %989 = vmatpush.msra.mxu0 0.0
      %990 = vmatpush.msra.mxu0 0.0
      %991 = vmatpush.msra.mxu0 0.0
      %992 = vmatpush.msra.mxu0 0.0
      %993 = vmatpush.msra.mxu0 0.0
      %994 = vmatpush.msra.mxu0 0.0
      %v995 = vand.u32 %v936, 4294901760
      %v996 = vsub.f32 %v936, %v995
      %v997 = vand.u32 %v996, 4294901760
      %v998 = vsub.f32 %v996, %v997
      %v999 = vand.u32 %v998, 4294901760
      %1000 = vmatpush.msra.mxu0 %v999
      %v1001 = vand.u32 %v916, 4294901760
      %v1002 = vsub.f32 %v916, %v1001
      %v1003 = vand.u32 %v1002, 4294901760
      %v1004 = vsub.f32 %v1002, %v1003
      %v1005 = vand.u32 %v1004, 4294901760
      %1006 = vmatpush.msra.mxu0 %v1005
      %v1007 = vand.u32 %v915, 4294901760
      %v1008 = vsub.f32 %v915, %v1007
      %v1009 = vand.u32 %v1008, 4294901760
      %v1010 = vsub.f32 %v1008, %v1009
      %v1011 = vand.u32 %v1010, 4294901760
      %1012 = vmatpush.msra.mxu0 %v1011
      %v1013 = vand.u32 %v926, 4294901760
      %1014 = vmatmul.f32.gmra.mxu0 %v1013
      %v1015 = vpop.f32.mrf.mxu0
      %v1016 = vadd.f32 %v964, %v1015
      %v1017 = vand.u32 %v929, 4294901760
      %1018 = vmatmul.f32.gmra.mxu0 %v1017
      %v1019 = vpop.f32.mrf.mxu0
      %v1020 = vadd.f32 %v972, %v1019
      %v1021 = vand.u32 %v932, 4294901760
      %1022 = vmatmul.f32.gmra.mxu0 %v1021
      %v1023 = vpop.f32.mrf.mxu0
      %v1024 = vadd.f32 %v980, %v1023
      %1025 = vdwg.mxu0
      %1026 = vmatpush.msra.mxu0 0.0
      %1027 = vmatpush.msra.mxu0 0.0
      %1028 = vmatpush.msra.mxu0 0.0
      %1029 = vmatpush.msra.mxu0 0.0
      %1030 = vmatpush.msra.mxu0 0.0
      %1031 = vmatpush.msra.mxu0 0.0
      %1032 = vmatpush.msra.mxu0 0.0
      %1033 = vmatpush.msra.mxu0 0.0
      %1034 = vmatpush.msra.mxu0 0.0
      %1035 = vmatpush.msra.mxu0 0.0
      %1036 = vmatpush.msra.mxu0 0.0
      %1037 = vmatpush.msra.mxu0 0.0
      %1038 = vmatpush.msra.mxu0 0.0
      %v1039 = vand.u32 %v936, 4294901760
      %v1040 = vsub.f32 %v936, %v1039
      %1041 = vmatpush.msra.mxu0 %v1040
      %v1042 = vand.u32 %v916, 4294901760
      %v1043 = vsub.f32 %v916, %v1042
      %1044 = vmatpush.msra.mxu0 %v1043
      %v1045 = vand.u32 %v915, 4294901760
      %v1046 = vsub.f32 %v915, %v1045
      %1047 = vmatpush.msra.mxu0 %v1046
      %v1048 = vand.u32 %v926, 4294901760
      %v1049 = vsub.f32 %v926, %v1048
      %1050 = vmatmul.f32.gmra.mxu0 %v1049
      %v1051 = vpop.f32.mrf.mxu0
      %v1052 = vadd.f32 %v1016, %v1051
      %v1053 = vand.u32 %v929, 4294901760
      %v1054 = vsub.f32 %v929, %v1053
      %1055 = vmatmul.f32.gmra.mxu0 %v1054
      %v1056 = vpop.f32.mrf.mxu0
      %v1057 = vadd.f32 %v1020, %v1056
      %v1058 = vand.u32 %v932, 4294901760
      %v1059 = vsub.f32 %v932, %v1058
      %1060 = vmatmul.f32.gmra.mxu0 %v1059
      %v1061 = vpop.f32.mrf.mxu0
      %v1062 = vadd.f32 %v1024, %v1061
      %1063 = vdwg.mxu0
      %1064 = vmatpush.msra.mxu0 0.0
      %1065 = vmatpush.msra.mxu0 0.0
      %1066 = vmatpush.msra.mxu0 0.0
      %1067 = vmatpush.msra.mxu0 0.0
      %1068 = vmatpush.msra.mxu0 0.0
      %1069 = vmatpush.msra.mxu0 0.0
      %1070 = vmatpush.msra.mxu0 0.0
      %1071 = vmatpush.msra.mxu0 0.0
      %1072 = vmatpush.msra.mxu0 0.0
      %1073 = vmatpush.msra.mxu0 0.0
      %1074 = vmatpush.msra.mxu0 0.0
      %1075 = vmatpush.msra.mxu0 0.0
      %1076 = vmatpush.msra.mxu0 0.0
      %v1077 = vand.u32 %v936, 4294901760
      %1078 = vmatpush.msra.mxu0 %v1077
      %v1079 = vand.u32 %v916, 4294901760
      %1080 = vmatpush.msra.mxu0 %v1079
      %v1081 = vand.u32 %v915, 4294901760
      %1082 = vmatpush.msra.mxu0 %v1081
      %v1083 = vand.u32 %v926, 4294901760
      %v1084 = vsub.f32 %v926, %v1083
      %v1085 = vand.u32 %v1084, 4294901760
      %1086 = vmatmul.f32.gmra.mxu0 %v1085
      %v1087 = vpop.f32.mrf.mxu0
      %v1088 = vadd.f32 %v1052, %v1087
      %v1089 = vand.u32 %v929, 4294901760
      %v1090 = vsub.f32 %v929, %v1089
      %v1091 = vand.u32 %v1090, 4294901760
      %1092 = vmatmul.f32.gmra.mxu0 %v1091
      %v1093 = vpop.f32.mrf.mxu0
      %v1094 = vadd.f32 %v1057, %v1093
      %v1095 = vand.u32 %v932, 4294901760
      %v1096 = vsub.f32 %v932, %v1095
      %v1097 = vand.u32 %v1096, 4294901760
      %1098 = vmatmul.f32.gmra.mxu0 %v1097
      %v1099 = vpop.f32.mrf.mxu0
      %v1100 = vadd.f32 %v1062, %v1099
      %1101 = vdwg.mxu0
      %1102 = vmatpush.msra.mxu0 0.0
      %1103 = vmatpush.msra.mxu0 0.0
      %1104 = vmatpush.msra.mxu0 0.0
      %1105 = vmatpush.msra.mxu0 0.0
      %1106 = vmatpush.msra.mxu0 0.0
      %1107 = vmatpush.msra.mxu0 0.0
      %1108 = vmatpush.msra.mxu0 0.0
      %1109 = vmatpush.msra.mxu0 0.0
      %1110 = vmatpush.msra.mxu0 0.0
      %1111 = vmatpush.msra.mxu0 0.0
      %1112 = vmatpush.msra.mxu0 0.0
      %1113 = vmatpush.msra.mxu0 0.0
      %1114 = vmatpush.msra.mxu0 0.0
      %v1115 = vand.u32 %v936, 4294901760
      %v1116 = vsub.f32 %v936, %v1115
      %v1117 = vand.u32 %v1116, 4294901760
      %1118 = vmatpush.msra.mxu0 %v1117
      %v1119 = vand.u32 %v916, 4294901760
      %v1120 = vsub.f32 %v916, %v1119
      %v1121 = vand.u32 %v1120, 4294901760
      %1122 = vmatpush.msra.mxu0 %v1121
      %v1123 = vand.u32 %v915, 4294901760
      %v1124 = vsub.f32 %v915, %v1123
      %v1125 = vand.u32 %v1124, 4294901760
      %1126 = vmatpush.msra.mxu0 %v1125
      %v1127 = vand.u32 %v926, 4294901760
      %1128 = vmatmul.f32.gmra.mxu0 %v1127
      %v1129 = vpop.f32.mrf.mxu0
      %v1130 = vadd.f32 %v1088, %v1129
      %v1131 = vand.u32 %v929, 4294901760
      %1132 = vmatmul.f32.gmra.mxu0 %v1131
      %v1133 = vpop.f32.mrf.mxu0
      %v1134 = vadd.f32 %v1094, %v1133
      %v1135 = vand.u32 %v932, 4294901760
      %1136 = vmatmul.f32.gmra.mxu0 %v1135
      %v1137 = vpop.f32.mrf.mxu0
      %v1138 = vadd.f32 %v1100, %v1137
      %1139 = vdwg.mxu0
      %1140 = vmatpush.msra.mxu0 0.0
      %1141 = vmatpush.msra.mxu0 0.0
      %1142 = vmatpush.msra.mxu0 0.0
      %1143 = vmatpush.msra.mxu0 0.0
      %1144 = vmatpush.msra.mxu0 0.0
      %1145 = vmatpush.msra.mxu0 0.0
      %1146 = vmatpush.msra.mxu0 0.0
      %1147 = vmatpush.msra.mxu0 0.0
      %1148 = vmatpush.msra.mxu0 0.0
      %1149 = vmatpush.msra.mxu0 0.0
      %1150 = vmatpush.msra.mxu0 0.0
      %1151 = vmatpush.msra.mxu0 0.0
      %1152 = vmatpush.msra.mxu0 0.0
      %v1153 = vand.u32 %v936, 4294901760
      %1154 = vmatpush.msra.mxu0 %v1153
      %v1155 = vand.u32 %v916, 4294901760
      %1156 = vmatpush.msra.mxu0 %v1155
      %v1157 = vand.u32 %v915, 4294901760
      %1158 = vmatpush.msra.mxu0 %v1157
      %v1159 = vand.u32 %v926, 4294901760
      %1160 = vmatmul.f32.gmra.mxu0 %v1159
      %v1161 = vpop.f32.mrf.mxu0
      %v1162 = vadd.f32 %v1130, %v1161
      %v1163 = vand.u32 %v929, 4294901760
      %1164 = vmatmul.f32.gmra.mxu0 %v1163
      %v1165 = vpop.f32.mrf.mxu0
      %v1166 = vadd.f32 %v1134, %v1165
      %v1167 = vand.u32 %v932, 4294901760
      %1168 = vmatmul.f32.gmra.mxu0 %v1167
      %v1169 = vpop.f32.mrf.mxu0
      %v1170 = vadd.f32 %v1138, %v1169
      %1171 = vdwg.mxu0
      %v1173 = vsel %vm924, %v918, 0
      %v1176 = vsel %vm924, %v919, 0
      %v1179 = vsel %vm924, %v920, 0
      %v1182 = vsel %vm934, %v908, 0
      %1184 = vmatpush.msra.mxu0 0.0
      %1185 = vmatpush.msra.mxu0 0.0
      %1186 = vmatpush.msra.mxu0 0.0
      %1187 = vmatpush.msra.mxu0 0.0
      %1188 = vmatpush.msra.mxu0 0.0
      %1189 = vmatpush.msra.mxu0 0.0
      %1190 = vmatpush.msra.mxu0 0.0
      %1191 = vmatpush.msra.mxu0 0.0
      %1192 = vmatpush.msra.mxu0 0.0
      %1193 = vmatpush.msra.mxu0 0.0
      %1194 = vmatpush.msra.mxu0 0.0
      %1195 = vmatpush.msra.mxu0 0.0
      %1196 = vmatpush.msra.mxu0 0.0
      %v1197 = vand.u32 %v1182, 4294901760
      %1198 = vmatpush.msra.mxu0 %v1197
      %v1199 = vand.u32 %v907, 4294901760
      %1200 = vmatpush.msra.mxu0 %v1199
      %v1201 = vand.u32 %v906, 4294901760
      %1202 = vmatpush.msra.mxu0 %v1201
      %v1203 = vand.u32 %v1173, 4294901760
      %v1204 = vsub.f32 %v1173, %v1203
      %v1205 = vand.u32 %v1204, 4294901760
      %v1206 = vsub.f32 %v1204, %v1205
      %v1207 = vand.u32 %v1206, 4294901760
      %1208 = vmatmul.f32.gmra.mxu0 %v1207
      %v1209 = vpop.f32.mrf.mxu0
      %v1210 = vadd.f32 %v1162, %v1209
      %v1211 = vand.u32 %v1176, 4294901760
      %v1212 = vsub.f32 %v1176, %v1211
      %v1213 = vand.u32 %v1212, 4294901760
      %v1214 = vsub.f32 %v1212, %v1213
      %v1215 = vand.u32 %v1214, 4294901760
      %1216 = vmatmul.f32.gmra.mxu0 %v1215
      %v1217 = vpop.f32.mrf.mxu0
      %v1218 = vadd.f32 %v1166, %v1217
      %v1219 = vand.u32 %v1179, 4294901760
      %v1220 = vsub.f32 %v1179, %v1219
      %v1221 = vand.u32 %v1220, 4294901760
      %v1222 = vsub.f32 %v1220, %v1221
      %v1223 = vand.u32 %v1222, 4294901760
      %1224 = vmatmul.f32.gmra.mxu0 %v1223
      %v1225 = vpop.f32.mrf.mxu0
      %v1226 = vadd.f32 %v1170, %v1225
      %1227 = vdwg.mxu0
      %1228 = vmatpush.msra.mxu0 0.0
      %1229 = vmatpush.msra.mxu0 0.0
      %1230 = vmatpush.msra.mxu0 0.0
      %1231 = vmatpush.msra.mxu0 0.0
      %1232 = vmatpush.msra.mxu0 0.0
      %1233 = vmatpush.msra.mxu0 0.0
      %1234 = vmatpush.msra.mxu0 0.0
      %1235 = vmatpush.msra.mxu0 0.0
      %1236 = vmatpush.msra.mxu0 0.0
      %1237 = vmatpush.msra.mxu0 0.0
      %1238 = vmatpush.msra.mxu0 0.0
      %1239 = vmatpush.msra.mxu0 0.0
      %1240 = vmatpush.msra.mxu0 0.0
      %v1241 = vand.u32 %v1182, 4294901760
      %v1242 = vsub.f32 %v1182, %v1241
      %v1243 = vand.u32 %v1242, 4294901760
      %v1244 = vsub.f32 %v1242, %v1243
      %v1245 = vand.u32 %v1244, 4294901760
      %1246 = vmatpush.msra.mxu0 %v1245
      %v1247 = vand.u32 %v907, 4294901760
      %v1248 = vsub.f32 %v907, %v1247
      %v1249 = vand.u32 %v1248, 4294901760
      %v1250 = vsub.f32 %v1248, %v1249
      %v1251 = vand.u32 %v1250, 4294901760
      %1252 = vmatpush.msra.mxu0 %v1251
      %v1253 = vand.u32 %v906, 4294901760
      %v1254 = vsub.f32 %v906, %v1253
      %v1255 = vand.u32 %v1254, 4294901760
      %v1256 = vsub.f32 %v1254, %v1255
      %v1257 = vand.u32 %v1256, 4294901760
      %1258 = vmatpush.msra.mxu0 %v1257
      %v1259 = vand.u32 %v1173, 4294901760
      %1260 = vmatmul.f32.gmra.mxu0 %v1259
      %v1261 = vpop.f32.mrf.mxu0
      %v1262 = vadd.f32 %v1210, %v1261
      %v1263 = vand.u32 %v1176, 4294901760
      %1264 = vmatmul.f32.gmra.mxu0 %v1263
      %v1265 = vpop.f32.mrf.mxu0
      %v1266 = vadd.f32 %v1218, %v1265
      %v1267 = vand.u32 %v1179, 4294901760
      %1268 = vmatmul.f32.gmra.mxu0 %v1267
      %v1269 = vpop.f32.mrf.mxu0
      %v1270 = vadd.f32 %v1226, %v1269
      %1271 = vdwg.mxu0
      %1272 = vmatpush.msra.mxu0 0.0
      %1273 = vmatpush.msra.mxu0 0.0
      %1274 = vmatpush.msra.mxu0 0.0
      %1275 = vmatpush.msra.mxu0 0.0
      %1276 = vmatpush.msra.mxu0 0.0
      %1277 = vmatpush.msra.mxu0 0.0
      %1278 = vmatpush.msra.mxu0 0.0
      %1279 = vmatpush.msra.mxu0 0.0
      %1280 = vmatpush.msra.mxu0 0.0
      %1281 = vmatpush.msra.mxu0 0.0
      %1282 = vmatpush.msra.mxu0 0.0
      %1283 = vmatpush.msra.mxu0 0.0
      %1284 = vmatpush.msra.mxu0 0.0
      %v1285 = vand.u32 %v1182, 4294901760
      %v1286 = vsub.f32 %v1182, %v1285
      %1287 = vmatpush.msra.mxu0 %v1286
      %v1288 = vand.u32 %v907, 4294901760
      %v1289 = vsub.f32 %v907, %v1288
      %1290 = vmatpush.msra.mxu0 %v1289
      %v1291 = vand.u32 %v906, 4294901760
      %v1292 = vsub.f32 %v906, %v1291
      %1293 = vmatpush.msra.mxu0 %v1292
      %v1294 = vand.u32 %v1173, 4294901760
      %v1295 = vsub.f32 %v1173, %v1294
      %1296 = vmatmul.f32.gmra.mxu0 %v1295
      %v1297 = vpop.f32.mrf.mxu0
      %v1298 = vadd.f32 %v1262, %v1297
      %v1299 = vand.u32 %v1176, 4294901760
      %v1300 = vsub.f32 %v1176, %v1299
      %1301 = vmatmul.f32.gmra.mxu0 %v1300
      %v1302 = vpop.f32.mrf.mxu0
      %v1303 = vadd.f32 %v1266, %v1302
      %v1304 = vand.u32 %v1179, 4294901760
      %v1305 = vsub.f32 %v1179, %v1304
      %1306 = vmatmul.f32.gmra.mxu0 %v1305
      %v1307 = vpop.f32.mrf.mxu0
      %v1308 = vadd.f32 %v1270, %v1307
      %1309 = vdwg.mxu0
      %1310 = vmatpush.msra.mxu0 0.0
      %1311 = vmatpush.msra.mxu0 0.0
      %1312 = vmatpush.msra.mxu0 0.0
      %1313 = vmatpush.msra.mxu0 0.0
      %1314 = vmatpush.msra.mxu0 0.0
      %1315 = vmatpush.msra.mxu0 0.0
      %1316 = vmatpush.msra.mxu0 0.0
      %1317 = vmatpush.msra.mxu0 0.0
      %1318 = vmatpush.msra.mxu0 0.0
      %1319 = vmatpush.msra.mxu0 0.0
      %1320 = vmatpush.msra.mxu0 0.0
      %1321 = vmatpush.msra.mxu0 0.0
      %1322 = vmatpush.msra.mxu0 0.0
      %v1323 = vand.u32 %v1182, 4294901760
      %1324 = vmatpush.msra.mxu0 %v1323
      %v1325 = vand.u32 %v907, 4294901760
      %1326 = vmatpush.msra.mxu0 %v1325
      %v1327 = vand.u32 %v906, 4294901760
      %1328 = vmatpush.msra.mxu0 %v1327
      %v1329 = vand.u32 %v1173, 4294901760
      %v1330 = vsub.f32 %v1173, %v1329
      %v1331 = vand.u32 %v1330, 4294901760
      %1332 = vmatmul.f32.gmra.mxu0 %v1331
      %v1333 = vpop.f32.mrf.mxu0
      %v1334 = vadd.f32 %v1298, %v1333
      %v1335 = vand.u32 %v1176, 4294901760
      %v1336 = vsub.f32 %v1176, %v1335
      %v1337 = vand.u32 %v1336, 4294901760
      %1338 = vmatmul.f32.gmra.mxu0 %v1337
      %v1339 = vpop.f32.mrf.mxu0
      %v1340 = vadd.f32 %v1303, %v1339
      %v1341 = vand.u32 %v1179, 4294901760
      %v1342 = vsub.f32 %v1179, %v1341
      %v1343 = vand.u32 %v1342, 4294901760
      %1344 = vmatmul.f32.gmra.mxu0 %v1343
      %v1345 = vpop.f32.mrf.mxu0
      %v1346 = vadd.f32 %v1308, %v1345
      %1347 = vdwg.mxu0
      %1348 = vmatpush.msra.mxu0 0.0
      %1349 = vmatpush.msra.mxu0 0.0
      %1350 = vmatpush.msra.mxu0 0.0
      %1351 = vmatpush.msra.mxu0 0.0
      %1352 = vmatpush.msra.mxu0 0.0
      %1353 = vmatpush.msra.mxu0 0.0
      %1354 = vmatpush.msra.mxu0 0.0
      %1355 = vmatpush.msra.mxu0 0.0
      %1356 = vmatpush.msra.mxu0 0.0
      %1357 = vmatpush.msra.mxu0 0.0
      %1358 = vmatpush.msra.mxu0 0.0
      %1359 = vmatpush.msra.mxu0 0.0
      %1360 = vmatpush.msra.mxu0 0.0
      %v1361 = vand.u32 %v1182, 4294901760
      %v1362 = vsub.f32 %v1182, %v1361
      %v1363 = vand.u32 %v1362, 4294901760
      %1364 = vmatpush.msra.mxu0 %v1363
      %v1365 = vand.u32 %v907, 4294901760
      %v1366 = vsub.f32 %v907, %v1365
      %v1367 = vand.u32 %v1366, 4294901760
      %1368 = vmatpush.msra.mxu0 %v1367
      %v1369 = vand.u32 %v906, 4294901760
      %v1370 = vsub.f32 %v906, %v1369
      %v1371 = vand.u32 %v1370, 4294901760
      %1372 = vmatpush.msra.mxu0 %v1371
      %v1373 = vand.u32 %v1173, 4294901760
      %1374 = vmatmul.f32.gmra.mxu0 %v1373
      %v1375 = vpop.f32.mrf.mxu0
      %v1376 = vadd.f32 %v1334, %v1375
      %v1377 = vand.u32 %v1176, 4294901760
      %1378 = vmatmul.f32.gmra.mxu0 %v1377
      %v1379 = vpop.f32.mrf.mxu0
      %v1380 = vadd.f32 %v1340, %v1379
      %v1381 = vand.u32 %v1179, 4294901760
      %1382 = vmatmul.f32.gmra.mxu0 %v1381
      %v1383 = vpop.f32.mrf.mxu0
      %v1384 = vadd.f32 %v1346, %v1383
      %1385 = vdwg.mxu0
      %1386 = vmatpush.msra.mxu0 0.0
      %1387 = vmatpush.msra.mxu0 0.0
      %1388 = vmatpush.msra.mxu0 0.0
      %1389 = vmatpush.msra.mxu0 0.0
      %1390 = vmatpush.msra.mxu0 0.0
      %1391 = vmatpush.msra.mxu0 0.0
      %1392 = vmatpush.msra.mxu0 0.0
      %1393 = vmatpush.msra.mxu0 0.0
      %1394 = vmatpush.msra.mxu0 0.0
      %1395 = vmatpush.msra.mxu0 0.0
      %1396 = vmatpush.msra.mxu0 0.0
      %1397 = vmatpush.msra.mxu0 0.0
      %1398 = vmatpush.msra.mxu0 0.0
      %v1399 = vand.u32 %v1182, 4294901760
      %1400 = vmatpush.msra.mxu0 %v1399
      %v1401 = vand.u32 %v907, 4294901760
      %1402 = vmatpush.msra.mxu0 %v1401
      %v1403 = vand.u32 %v906, 4294901760
      %1404 = vmatpush.msra.mxu0 %v1403
      %v1405 = vand.u32 %v1173, 4294901760
      %1406 = vmatmul.f32.gmra.mxu0 %v1405
      %v1407 = vpop.f32.mrf.mxu0
      %v1408 = vadd.f32 %v1376, %v1407
      %v1409 = vand.u32 %v1176, 4294901760
      %1410 = vmatmul.f32.gmra.mxu0 %v1409
      %v1411 = vpop.f32.mrf.mxu0
      %v1412 = vadd.f32 %v1380, %v1411
      %v1413 = vand.u32 %v1179, 4294901760
      %1414 = vmatmul.f32.gmra.mxu0 %v1413
      %v1415 = vpop.f32.mrf.mxu0
      %v1416 = vadd.f32 %v1384, %v1415
      %1417 = vdwg.mxu0
      %v1418 = vadd.f32 %v1408, %v279
      %v1419 = vadd.f32 %v1412, %v280
      %v1420 = vadd.f32 %v1416, %v281
      %1421 = vst.msk [vmem:[%s278] sm:$0xff] %vm284, %v1418
      %1422 = vst.msk [vmem:[%s278 + $0x8] sm:$0xff] %vm284, %v1419
      %1423 = vst.msk [vmem:[%s278 + $0x10] sm:$0x1] %vm291, %v1420
      %p1424 = scmp.lt.s32.totalorder %s18, 1
      %s1425 = scalar_select %p1424, %s18, 1
      %s1426 = smul.addr %s1425, 3
      %s1427 = smul.addr %s1426, 8
      %s1428 = scalar_lea.vmem %s7, %s1427
      // Predicated region
      $region49: #{vit_forward.7} parent=47 // pred_check
        %p1429 = pneg %p188
      $region50: #{vit_forward.7} parent=47 // pred_check_branch
        %1431 = sbr.rel (%p1429) target = $region52
      $region51: #{vit_forward.7} parent=47 // pred_region
        _
      $region52: #{vit_forward.7} parent=47 // pred_fallthru
        _
    $region48: #{vit_forward.7} parent=5 // pred_fallthru
      _
    %p1432 = scmp.le.s32.totalorder 2, %s13
    // Predicated region
    $region53: #{vit_forward.7} parent=5 // pred_check
      %p1433 = pneg %p1432
    $region54: #{vit_forward.7} parent=5 // pred_check_branch
      %1435 = sbr.rel (%p1433) target = $region56
    $region55: #{vit_forward.7} parent=5 // pred_region
      %s1436 = ssub.s32 %s13, 2
      // Predicated region
      $region57: #{vit_forward.7} parent=55 // pred_check
        %p1437 = pneg %p194
      $region58: #{vit_forward.7} parent=55 // pred_check_branch
        %1439 = sbr.rel (%p1437) target = $region60
      $region59: #{vit_forward.7} parent=55 // pred_region
        %p1440 = scmp.lt.s32.totalorder %s19, 1
        %s1441 = scalar_select %p1440, %s19, 1
        %s1442 = smul.addr %s1441, 3
        %s1443 = smul.addr %s1442, 8
        %s1444 = scalar_lea.vmem %s7, %s1443
      $region60: #{vit_forward.7} parent=55 // pred_fallthru
        _
    $region56: #{vit_forward.7} parent=5 // pred_fallthru
      _
  $region6: #{vit_forward.7} parent=0 // loop_footer
    %s17 = sadd.s32 1, %s13
  $region7: #{vit_forward.7} parent=0 // loop_footer_branch
    %12 = sbr.rel target = $region3
  $region8: #{vit_forward.7} parent=0 // loop_exit
    _

// kernel: vit_forward.8
$region0: #{vit_forward.8}
  #allocation0 [shape = 'u32[]', space=smem, size = 0x4, offset = 0x4, fixed_abs, tag = 'smem constant byte address 0x4 - core index']
  #allocation1 [shape = 'u32[72,128]{1,0:T(1,128)}', space=vmem, size = 0x9000, scoped, tag = 'internal scratch']
  %s0 = inlined_call_operand.vmem [shape: f32[2,17,32], index: 0, kind: input, shape index: {}]
  %s1 = inlined_call_operand.vmem [shape: f32[1,32], index: 1, kind: input, shape index: {}]
  %s2 = inlined_call_operand.vmem [shape: f32[1,32], index: 2, kind: input, shape index: {}]
  %s3 = inlined_call_operand.vmem [shape: f32[32,64], index: 3, kind: input, shape index: {}]
  %s4 = inlined_call_operand.vmem [shape: f32[1,64], index: 4, kind: input, shape index: {}]
  %s5 = inlined_call_operand.vmem [shape: f32[64,32], index: 5, kind: input, shape index: {}]
  %s6 = inlined_call_operand.vmem [shape: f32[1,32], index: 6, kind: input, shape index: {}]
  %s7 = inlined_call_operand.vmem [shape: f32[2,17,32], index: 7, kind: output, shape index: {}]
  %s8 = sld [smem:[#allocation0]]
  $region61: #{vit_forward.8} parent=0
    _
  %s10 = ssub.s32 1, %s8
  %s11 = scalar_select 0, %s10, %s8
  loop: start=0, step=1, limit=4
  $region2: #{vit_forward.8} parent=0 // loop_pre_header
    _
  $region3: #{vit_forward.8} parent=0 // loop_header
    %s13 = sphi 0, %s17
    %p14 = scmp.ge.s32.totalorder %s13, 4
    %s23 = sphi 0, %s25
    %s26 = sphi 0, %s23
    %s27 = sphi 0, %s26
    %s43 = sphi 0, %s27
    %s47 = sphi 0, %s47
    %s49 = sphi 0, %s47
    %s50 = sphi 0, %s49
    %s64 = sphi 0, %s50
    %s68 = sphi 0, %s68
    %s70 = sphi 0, %s68
    %s71 = sphi 0, %s70
    %s85 = sphi 0, %s71
    %s89 = sphi 0, %s89
    %s91 = sphi 0, %s89
    %s92 = sphi 0, %s91
    %s106 = sphi 0, %s92
    %s110 = sphi 0, %s110
    %s112 = sphi 0, %s110
    %s113 = sphi 0, %s112
    %s127 = sphi 0, %s113
    %s131 = sphi 0, %s131
    %s133 = sphi 0, %s131
    %s134 = sphi 0, %s133
    %s148 = sphi 0, %s134
    %s152 = sphi 0, %s152
    %s154 = sphi 0, %s152
    %s155 = sphi 0, %s154
    %s169 = sphi 0, %s155
    %s175 = sphi 0, %s177
    %s178 = sphi 0, %s175
    %s179 = sphi 0, %s178
    %s195 = sphi 0, %s179
  $region4: #{vit_forward.8} parent=0 // loop_header_branch
    %16 = sbr.rel (%p14) target = $region8
  $region5: #{vit_forward.8} parent=0 // loop_body
    %s18 = ssub.s32 %s13, 1
    %s19 = ssub.s32 %s13, 2
    %s20 = sadd.s32 %s13, 1
    %s21 = ssub.s32 %s13, %s20
    %p22 = scmp.eq.s32.totalorder %s21, 0
    %s24 = sadd.s32 %s23, 1
    %s25 = scalar_select %p22, %s23, %s24
    %p28 = pneg %p22
    %p29 = scmp.eq.s32.totalorder %s13, 1
    %p30 = por %p28, %p29
    %p31 = scmp.ne.s32.totalorder %s23, %s26
    %p32 = scmp.eq.s32.totalorder %s13, 0
    %p33 = por %p31, %p32
    %p34 = scmp.ne.s32.totalorder %s23, %s26
    %p35 = scmp.eq.s32.totalorder %s18, 1
    %p36 = por %p34, %p35
    %p37 = scmp.ne.s32.totalorder %s26, %s27
    %p38 = scmp.eq.s32.totalorder %s18, 0
    %p39 = por %p37, %p38
    %p40 = scmp.ne.s32.totalorder %s26, %s27
    %p41 = scmp.eq.s32.totalorder %s19, 1
    %p42 = por %p40, %p41
    %p44 = scmp.ne.s32.totalorder %s27, %s43
    %p45 = scmp.eq.s32.totalorder %s19, 0
    %p46 = por %p44, %p45
    %s48 = sadd.s32 %s47, 1
    %p51 = scmp.eq.s32.totalorder %s13, 1
    %p52 = scmp.ne.s32.totalorder %s47, %s49
    %p53 = scmp.eq.s32.totalorder %s13, 0
    %p54 = por %p52, %p53
    %p55 = scmp.ne.s32.totalorder %s47, %s49
    %p56 = scmp.eq.s32.totalorder %s18, 1
    %p57 = por %p55, %p56
    %p58 = scmp.ne.s32.totalorder %s49, %s50
    %p59 = scmp.eq.s32.totalorder %s18, 0
    %p60 = por %p58, %p59
    %p61 = scmp.ne.s32.totalorder %s49, %s50
    %p62 = scmp.eq.s32.totalorder %s19, 1
    %p63 = por %p61, %p62
    %p65 = scmp.ne.s32.totalorder %s50, %s64
    %p66 = scmp.eq.s32.totalorder %s19, 0
    %p67 = por %p65, %p66
    %s69 = sadd.s32 %s68, 1
    %p72 = scmp.eq.s32.totalorder %s13, 1
    %p73 = scmp.ne.s32.totalorder %s68, %s70
    %p74 = scmp.eq.s32.totalorder %s13, 0
    %p75 = por %p73, %p74
    %p76 = scmp.ne.s32.totalorder %s68, %s70
    %p77 = scmp.eq.s32.totalorder %s18, 1
    %p78 = por %p76, %p77
    %p79 = scmp.ne.s32.totalorder %s70, %s71
    %p80 = scmp.eq.s32.totalorder %s18, 0
    %p81 = por %p79, %p80
    %p82 = scmp.ne.s32.totalorder %s70, %s71
    %p83 = scmp.eq.s32.totalorder %s19, 1
    %p84 = por %p82, %p83
    %p86 = scmp.ne.s32.totalorder %s71, %s85
    %p87 = scmp.eq.s32.totalorder %s19, 0
    %p88 = por %p86, %p87
    %s90 = sadd.s32 %s89, 1
    %p93 = scmp.eq.s32.totalorder %s13, 1
    %p94 = scmp.ne.s32.totalorder %s89, %s91
    %p95 = scmp.eq.s32.totalorder %s13, 0
    %p96 = por %p94, %p95
    %p97 = scmp.ne.s32.totalorder %s89, %s91
    %p98 = scmp.eq.s32.totalorder %s18, 1
    %p99 = por %p97, %p98
    %p100 = scmp.ne.s32.totalorder %s91, %s92
    %p101 = scmp.eq.s32.totalorder %s18, 0
    %p102 = por %p100, %p101
    %p103 = scmp.ne.s32.totalorder %s91, %s92
    %p104 = scmp.eq.s32.totalorder %s19, 1
    %p105 = por %p103, %p104
    %p107 = scmp.ne.s32.totalorder %s92, %s106
    %p108 = scmp.eq.s32.totalorder %s19, 0
    %p109 = por %p107, %p108
    %s111 = sadd.s32 %s110, 1
    %p114 = scmp.eq.s32.totalorder %s13, 1
    %p115 = scmp.ne.s32.totalorder %s110, %s112
    %p116 = scmp.eq.s32.totalorder %s13, 0
    %p117 = por %p115, %p116
    %p118 = scmp.ne.s32.totalorder %s110, %s112
    %p119 = scmp.eq.s32.totalorder %s18, 1
    %p120 = por %p118, %p119
    %p121 = scmp.ne.s32.totalorder %s112, %s113
    %p122 = scmp.eq.s32.totalorder %s18, 0
    %p123 = por %p121, %p122
    %p124 = scmp.ne.s32.totalorder %s112, %s113
    %p125 = scmp.eq.s32.totalorder %s19, 1
    %p126 = por %p124, %p125
    %p128 = scmp.ne.s32.totalorder %s113, %s127
    %p129 = scmp.eq.s32.totalorder %s19, 0
    %p130 = por %p128, %p129
    %s132 = sadd.s32 %s131, 1
    %p135 = scmp.eq.s32.totalorder %s13, 1
    %p136 = scmp.ne.s32.totalorder %s131, %s133
    %p137 = scmp.eq.s32.totalorder %s13, 0
    %p138 = por %p136, %p137
    %p139 = scmp.ne.s32.totalorder %s131, %s133
    %p140 = scmp.eq.s32.totalorder %s18, 1
    %p141 = por %p139, %p140
    %p142 = scmp.ne.s32.totalorder %s133, %s134
    %p143 = scmp.eq.s32.totalorder %s18, 0
    %p144 = por %p142, %p143
    %p145 = scmp.ne.s32.totalorder %s133, %s134
    %p146 = scmp.eq.s32.totalorder %s19, 1
    %p147 = por %p145, %p146
    %p149 = scmp.ne.s32.totalorder %s134, %s148
    %p150 = scmp.eq.s32.totalorder %s19, 0
    %p151 = por %p149, %p150
    %s153 = sadd.s32 %s152, 1
    %p156 = scmp.eq.s32.totalorder %s13, 1
    %p157 = scmp.ne.s32.totalorder %s152, %s154
    %p158 = scmp.eq.s32.totalorder %s13, 0
    %p159 = por %p157, %p158
    %p160 = scmp.ne.s32.totalorder %s152, %s154
    %p161 = scmp.eq.s32.totalorder %s18, 1
    %p162 = por %p160, %p161
    %p163 = scmp.ne.s32.totalorder %s154, %s155
    %p164 = scmp.eq.s32.totalorder %s18, 0
    %p165 = por %p163, %p164
    %p166 = scmp.ne.s32.totalorder %s154, %s155
    %p167 = scmp.eq.s32.totalorder %s19, 1
    %p168 = por %p166, %p167
    %p170 = scmp.ne.s32.totalorder %s155, %s169
    %p171 = scmp.eq.s32.totalorder %s19, 0
    %p172 = por %p170, %p171
    %s173 = ssub.s32 %s13, %s20
    %p174 = scmp.eq.s32.totalorder %s173, 0
    %s176 = sadd.s32 %s175, 1
    %s177 = scalar_select %p174, %s175, %s176
    %p180 = pneg %p174
    %p181 = scmp.eq.s32.totalorder %s13, 1
    %p182 = por %p180, %p181
    %p183 = scmp.ne.s32.totalorder %s175, %s178
    %p184 = scmp.eq.s32.totalorder %s13, 0
    %p185 = por %p183, %p184
    %p186 = scmp.ne.s32.totalorder %s175, %s178
    %p187 = scmp.eq.s32.totalorder %s18, 1
    %p188 = por %p186, %p187
    %p189 = scmp.ne.s32.totalorder %s178, %s179
    %p190 = scmp.eq.s32.totalorder %s18, 0
    %p191 = por %p189, %p190
    %p192 = scmp.ne.s32.totalorder %s178, %s179
    %p193 = scmp.eq.s32.totalorder %s19, 1
    %p194 = por %p192, %p193
    %p196 = scmp.ne.s32.totalorder %s179, %s195
    %p197 = scmp.eq.s32.totalorder %s19, 0
    %p198 = por %p196, %p197
    %p199 = scmp.le.s32.totalorder 1, %s13
    %p200 = scmp.lt.s32.totalorder %s13, 3
    %p201 = pnand %p199, %p200
    %p202 = pneg %p201
    // Predicated region
    $region9: #{vit_forward.8} parent=5 // pred_check
      _
    $region10: #{vit_forward.8} parent=5 // pred_check_branch
      %204 = sbr.rel (%p201) target = $region12
    $region11: #{vit_forward.8} parent=5 // pred_region
      %s205 = ssub.s32 %s13, 1
      // Predicated region
      $region13: #{vit_forward.8} parent=11 // pred_check
        %p206 = pneg %p60
      $region14: #{vit_forward.8} parent=11 // pred_check_branch
        %208 = sbr.rel (%p206) target = $region16
      $region15: #{vit_forward.8} parent=11 // pred_region
        _
      $region16: #{vit_forward.8} parent=11 // pred_fallthru
        _
      // Predicated region
      $region17: #{vit_forward.8} parent=11 // pred_check
        %p209 = pneg %p81
      $region18: #{vit_forward.8} parent=11 // pred_check_branch
        %211 = sbr.rel (%p209) target = $region20
      $region19: #{vit_forward.8} parent=11 // pred_region
        _
      $region20: #{vit_forward.8} parent=11 // pred_fallthru
        _
      // Predicated region
      $region21: #{vit_forward.8} parent=11 // pred_check
        %p212 = pneg %p102
      $region22: #{vit_forward.8} parent=11 // pred_check_branch
        %214 = sbr.rel (%p212) target = $region24
      $region23: #{vit_forward.8} parent=11 // pred_region
        _
      $region24: #{vit_forward.8} parent=11 // pred_fallthru
        _
      // Predicated region
      $region25: #{vit_forward.8} parent=11 // pred_check
        %p215 = pneg %p123
      $region26: #{vit_forward.8} parent=11 // pred_check_branch
        %217 = sbr.rel (%p215) target = $region28
      $region27: #{vit_forward.8} parent=11 // pred_region
        _
      $region28: #{vit_forward.8} parent=11 // pred_fallthru
        _
      // Predicated region
      $region29: #{vit_forward.8} parent=11 // pred_check
        %p218 = pneg %p144
      $region30: #{vit_forward.8} parent=11 // pred_check_branch
        %220 = sbr.rel (%p218) target = $region32
      $region31: #{vit_forward.8} parent=11 // pred_region
        _
      $region32: #{vit_forward.8} parent=11 // pred_fallthru
        _
      // Predicated region
      $region33: #{vit_forward.8} parent=11 // pred_check
        %p221 = pneg %p165
      $region34: #{vit_forward.8} parent=11 // pred_check_branch
        %223 = sbr.rel (%p221) target = $region36
      $region35: #{vit_forward.8} parent=11 // pred_region
        _
      $region36: #{vit_forward.8} parent=11 // pred_fallthru
        _
    $region12: #{vit_forward.8} parent=5 // pred_fallthru
      _
    %p224 = scmp.lt.s32.totalorder %s13, 2
    // Predicated region
    $region37: #{vit_forward.8} parent=5 // pred_check
      %p225 = pneg %p224
    $region38: #{vit_forward.8} parent=5 // pred_check_branch
      %227 = sbr.rel (%p225) target = $region40
    $region39: #{vit_forward.8} parent=5 // pred_region
      // Predicated region
      $region41: #{vit_forward.8} parent=39 // pred_check
        %p228 = pneg %p33
      $region42: #{vit_forward.8} parent=39 // pred_check_branch
        %230 = sbr.rel (%p228) target = $region44
      $region43: #{vit_forward.8} parent=39 // pred_region
        %p231 = scmp.lt.s32.totalorder %s13, 1
        %s232 = scalar_select %p231, %s13, 1
        %s233 = smul.addr %s232, 3
        %s234 = smul.addr %s233, 8
        %s235 = scalar_lea.vmem %s0, %s234
      $region44: #{vit_forward.8} parent=39 // pred_fallthru
        _
    $region40: #{vit_forward.8} parent=5 // pred_fallthru
      _
    %p236 = scmp.le.s32.totalorder 1, %s13
    %p237 = scmp.lt.s32.totalorder %s13, 3
    %p238 = pnand %p236, %p237
    %p239 = pneg %p238
    // Predicated region
    $region45: #{vit_forward.8} parent=5 // pred_check
      _
    $region46: #{vit_forward.8} parent=5 // pred_check_branch
      %241 = sbr.rel (%p238) target = $region48
    $region47: #{vit_forward.8} parent=5 // pred_region
      %s242 = ssub.s32 %s13, 1
      %p243 = scmp.lt.s32.totalorder %s18, 1
      %s244 = scalar_select %p243, %s18, 1
      %s245 = smul.addr %s244, 3
      %s246 = smul.addr %s245, 8
      %s247 = scalar_lea.vmem %s0, %s246
      %p248 = pneg %p39
      %p249 = pneg %p36
      %p250 = pneg %p60
      %p251 = pneg %p57
      %p252 = pneg %p81
      %p253 = pneg %p78
      %p254 = pneg %p102
      %p255 = pneg %p99
      %p256 = pneg %p123
      %p257 = pneg %p120
      %p258 = pneg %p144
      %p259 = pneg %p141
      %p260 = pneg %p165
      %p261 = pneg %p162
      %p262 = pneg %p191
      %p263 = pneg %p188
      %p264 = scmp.lt.s32.totalorder %s18, 1
      %s265 = scalar_select %p264, %s18, 1
      %s266 = smul.addr %s265, 3
      %s267 = smul.addr %s266, 8
      %s268 = scalar_lea.vmem %s7, %s267
      %p269 = scmp.lt.s32.totalorder %s18, 1
      %s270 = scalar_select %p269, %s18, 1
      %s271 = smul.addr %s270, 3
      %s272 = smul.addr %s271, 8
      %s273 = scalar_lea.vmem %s0, %s272
      %p274 = scmp.lt.s32.totalorder %s18, 1
      %s275 = scalar_select %p274, %s18, 1
      %s276 = smul.addr %s275, 3
      %s277 = smul.addr %s276, 8
      %s278 = scalar_lea.vmem %s7, %s277
      %v279 = vld [vmem:[%s273] sm:$0xff]
      %v280 = vld [vmem:[%s273 + $0x8] sm:$0xff]
      %v281 = vld [vmem:[%s273 + $0x10] sm:$0x1]
      %v282 = vld [vmem:[%s1] sm:$0x1]
      %v283 = vld [vmem:[%s2] sm:$0x1]
      %vm284 = vcmask 261120
      %v285 = vsel %vm284, %v279, 0.0
      %286 = vadd.xlane.f32.xlu0 %v285
      %v287 = vpop.xlane.xlu0 %286
      %v288 = vsel %vm284, %v280, 0.0
      %289 = vadd.xlane.f32.xlu0 %v288
      %v290 = vpop.xlane.xlu0 %289
      %vm291 = vcmask 253952
      %v292 = vsel %vm291, %v281, 0.0
      %293 = vadd.xlane.f32.xlu0 %v292
      %v294 = vpop.xlane.xlu0 %293
      %v295 = vrcp.pop 32.0
      %v296 = vmul.f32 32.0, %v295
      %v297 = vsub.f32 1.0, %v296
      %v298 = vmul.f32 %v295, %v297
      %v299 = vadd.f32 %v295, %v298
      %vm300 = vweird.f32 %v295
      %v301 = vsel %vm300, %v295, %v299
      %v302 = vmul.f32 %v287, %v301
      %v303 = vmul.f32 %v290, %v301
      %v304 = vmul.f32 %v294, %v301
      %v305 = vsub.f32 %v279, %v302
      %v306 = vsub.f32 %v280, %v303
      %v307 = vsub.f32 %v281, %v304
      %v308 = vmul.f32 %v305, %v305
      %v309 = vmul.f32 %v306, %v306
      %v310 = vmul.f32 %v307, %v307
      %v311 = vsel %vm284, %v308, 0.0
      %312 = vadd.xlane.f32.xlu0 %v311
      %v313 = vpop.xlane.xlu0 %312
      %v314 = vsel %vm284, %v309, 0.0
      %315 = vadd.xlane.f32.xlu0 %v314
      %v316 = vpop.xlane.xlu0 %315
      %v317 = vsel %vm291, %v310, 0.0
      %318 = vadd.xlane.f32.xlu0 %v317
      %v319 = vpop.xlane.xlu0 %318
      %v320 = vmul.f32 %v313, %v301
      %v321 = vmul.f32 %v316, %v301
      %v322 = vmul.f32 %v319, %v301
      %v323 = vadd.f32 %v320, 1e-05
      %v324 = vadd.f32 %v321, 1e-05
      %v325 = vadd.f32 %v322, 1e-05
      %v326 = vrsqrt.pop %v323
      %v327 = vmul.f32 %v326, %v323
      %v328 = vmul.f32 %v327, %v326
      %v329 = vmul.f32 0.5, %v328
      %v330 = vsub.f32 1.5, %v329
      %v331 = vmul.f32 %v326, %v330
      %vm332 = vweird.f32 %v323
      %vm333 = vweird.f32 %v326
      %vm334 = vmor %vm332, %vm333
      %v335 = vsel %vm334, %v326, %v331
      %v336 = vrsqrt.pop %v324
      %v337 = vmul.f32 %v336, %v324
      %v338 = vmul.f32 %v337, %v336
      %v339 = vmul.f32 0.5, %v338
      %v340 = vsub.f32 1.5, %v339
      %v341 = vmul.f32 %v336, %v340
      %vm342 = vweird.f32 %v324
      %vm343 = vweird.f32 %v336
      %vm344 = vmor %vm342, %vm343
      %v345 = vsel %vm344, %v336, %v341
      %v346 = vrsqrt.pop %v325
      %v347 = vmul.f32 %v346, %v325
      %v348 = vmul.f32 %v347, %v346
      %v349 = vmul.f32 0.5, %v348
      %v350 = vsub.f32 1.5, %v349
      %v351 = vmul.f32 %v346, %v350
      %vm352 = vweird.f32 %v325
      %vm353 = vweird.f32 %v346
      %vm354 = vmor %vm352, %vm353
      %v355 = vsel %vm354, %v346, %v351
      %v356 = vmul.f32 %v305, %v335
      %v357 = vmul.f32 %v306, %v345
      %v358 = vmul.f32 %v307, %v355
      %v360 = vperm.slane %v282, 0
      %v362 = vmul.f32 %v356, %v360
      %v363 = vmul.f32 %v357, %v360
      %v364 = vmul.f32 %v358, %v360
      %v366 = vperm.slane %v283, 0
      %v368 = vadd.f32 %v362, %v366
      %v369 = vadd.f32 %v363, %v366
      %v370 = vadd.f32 %v364, %v366
      %v371 = vld [vmem:[%s3] sm:$0xff]
      %v372 = vld [vmem:[%s3 + $0x8] sm:$0xff]
      %v373 = vld [vmem:[%s3 + $0x10] sm:$0xff]
      %v374 = vld [vmem:[%s3 + $0x18] sm:$0xff]
      %v375 = vld [vmem:[%s4] sm:$0x1]
      %v377 = vperm.slane %v375, 0
      %v380 = vsel %vm284, %v368, 0
      %v383 = vsel %vm284, %v369, 0
      %v386 = vsel %vm284, %v370, 0
      %388 = vmatpush.msra.mxu0 0.0
      %389 = vmatpush.msra.mxu0 0.0
      %390 = vmatpush.msra.mxu0 0.0
      %391 = vmatpush.msra.mxu0 0.0
      %392 = vmatpush.msra.mxu0 0.0
      %393 = vmatpush.msra.mxu0 0.0
      %394 = vmatpush.msra.mxu0 0.0
      %395 = vmatpush.msra.mxu0 0.0
      %396 = vmatpush.msra.mxu0 0.0
      %397 = vmatpush.msra.mxu0 0.0
      %398 = vmatpush.msra.mxu0 0.0
      %399 = vmatpush.msra.mxu0 0.0
      %v400 = vand.u32 %v374, 4294901760
      %401 = vmatpush.msra.mxu0 %v400
      %v402 = vand.u32 %v373, 4294901760
      %403 = vmatpush.msra.mxu0 %v402
      %v404 = vand.u32 %v372, 4294901760
      %405 = vmatpush.msra.mxu0 %v404
      %v406 = vand.u32 %v371, 4294901760
      %407 = vmatpush.msra.mxu0 %v406
      %v408 = vand.u32 %v380, 4294901760
      %v409 = vsub.f32 %v380, %v408
      %v410 = vand.u32 %v409, 4294901760
      %v411 = vsub.f32 %v409, %v410
      %v412 = vand.u32 %v411, 4294901760
      %413 = vmatmul.f32.gmra.mxu0 %v412
      %v414 = vpop.f32.mrf.mxu0
      %v415 = vadd.f32 %v377, %v414
      %v416 = vand.u32 %v383, 4294901760
      %v417 = vsub.f32 %v383, %v416
      %v418 = vand.u32 %v417, 4294901760
      %v419 = vsub.f32 %v417, %v418
      %v420 = vand.u32 %v419, 4294901760
      %421 = vmatmul.f32.gmra.mxu0 %v420
      %v422 = vpop.f32.mrf.mxu0
      %v423 = vadd.f32 %v377, %v422
      %v424 = vand.u32 %v386, 4294901760
      %v425 = vsub.f32 %v386, %v424
      %v426 = vand.u32 %v425, 4294901760
      %v427 = vsub.f32 %v425, %v426
      %v428 = vand.u32 %v427, 4294901760
      %429 = vmatmul.f32.gmra.mxu0 %v428
      %v430 = vpop.f32.mrf.mxu0
      %v431 = vadd.f32 %v377, %v430
      %432 = vdwg.mxu0
      %433 = vmatpush.msra.mxu0 0.0
      %434 = vmatpush.msra.mxu0 0.0
      %435 = vmatpush.msra.mxu0 0.0
      %436 = vmatpush.msra.mxu0 0.0
      %437 = vmatpush.msra.mxu0 0.0
      %438 = vmatpush.msra.mxu0 0.0
      %439 = vmatpush.msra.mxu0 0.0
      %440 = vmatpush.msra.mxu0 0.0
      %441 = vmatpush.msra.mxu0 0.0
      %442 = vmatpush.msra.mxu0 0.0
      %443 = vmatpush.msra.mxu0 0.0
      %444 = vmatpush.msra.mxu0 0.0
      %v445 = vand.u32 %v374, 4294901760
      %v446 = vsub.f32 %v374, %v445
      %v447 = vand.u32 %v446, 4294901760
      %v448 = vsub.f32 %v446, %v447
      %v449 = vand.u32 %v448, 4294901760
      %450 = vmatpush.msra.mxu0 %v449
      %v451 = vand.u32 %v373, 4294901760
      %v452 = vsub.f32 %v373, %v451
      %v453 = vand.u32 %v452, 4294901760
      %v454 = vsub.f32 %v452, %v453
      %v455 = vand.u32 %v454, 4294901760
      %456 = vmatpush.msra.mxu0 %v455
      %v457 = vand.u32 %v372, 4294901760
      %v458 = vsub.f32 %v372, %v457
      %v459 = vand.u32 %v458, 4294901760
      %v460 = vsub.f32 %v458, %v459
      %v461 = vand.u32 %v460, 4294901760
      %462 = vmatpush.msra.mxu0 %v461
      %v463 = vand.u32 %v371, 4294901760
      %v464 = vsub.f32 %v371, %v463
      %v465 = vand.u32 %v464, 4294901760
      %v466 = vsub.f32 %v464, %v465
      %v467 = vand.u32 %v466, 4294901760
      %468 = vmatpush.msra.mxu0 %v467
      %v469 = vand.u32 %v380, 4294901760
      %470 = vmatmul.f32.gmra.mxu0 %v469
      %v471 = vpop.f32.mrf.mxu0
      %v472 = vadd.f32 %v415, %v471
      %v473 = vand.u32 %v383, 4294901760
      %474 = vmatmul.f32.gmra.mxu0 %v473
      %v475 = vpop.f32.mrf.mxu0
      %v476 = vadd.f32 %v423, %v475
      %v477 = vand.u32 %v386, 4294901760
      %478 = vmatmul.f32.gmra.mxu0 %v477
      %v479 = vpop.f32.mrf.mxu0
      %v480 = vadd.f32 %v431, %v479
      %481 = vdwg.mxu0
      %482 = vmatpush.msra.mxu0 0.0
      %483 = vmatpush.msra.mxu0 0.0
      %484 = vmatpush.msra.mxu0 0.0
      %485 = vmatpush.msra.mxu0 0.0
      %486 = vmatpush.msra.mxu0 0.0
      %487 = vmatpush.msra.mxu0 0.0
      %488 = vmatpush.msra.mxu0 0.0
      %489 = vmatpush.msra.mxu0 0.0
      %490 = vmatpush.msra.mxu0 0.0
      %491 = vmatpush.msra.mxu0 0.0
      %492 = vmatpush.msra.mxu0 0.0
      %493 = vmatpush.msra.mxu0 0.0
      %v494 = vand.u32 %v374, 4294901760
      %v495 = vsub.f32 %v374, %v494
      %496 = vmatpush.msra.mxu0 %v495
      %v497 = vand.u32 %v373, 4294901760
      %v498 = vsub.f32 %v373, %v497
      %499 = vmatpush.msra.mxu0 %v498
      %v500 = vand.u32 %v372, 4294901760
      %v501 = vsub.f32 %v372, %v500
      %502 = vmatpush.msra.mxu0 %v501
      %v503 = vand.u32 %v371, 4294901760
      %v504 = vsub.f32 %v371, %v503
      %505 = vmatpush.msra.mxu0 %v504
      %v506 = vand.u32 %v380, 4294901760
      %v507 = vsub.f32 %v380, %v506
      %508 = vmatmul.f32.gmra.mxu0 %v507
      %v509 = vpop.f32.mrf.mxu0
      %v510 = vadd.f32 %v472, %v509
      %v511 = vand.u32 %v383, 4294901760
      %v512 = vsub.f32 %v383, %v511
      %513 = vmatmul.f32.gmra.mxu0 %v512
      %v514 = vpop.f32.mrf.mxu0
      %v515 = vadd.f32 %v476, %v514
      %v516 = vand.u32 %v386, 4294901760
      %v517 = vsub.f32 %v386, %v516
      %518 = vmatmul.f32.gmra.mxu0 %v517
      %v519 = vpop.f32.mrf.mxu0
      %v520 = vadd.f32 %v480, %v519
      %521 = vdwg.mxu0
      %522 = vmatpush.msra.mxu0 0.0
      %523 = vmatpush.msra.mxu0 0.0
      %524 = vmatpush.msra.mxu0 0.0
      %525 = vmatpush.msra.mxu0 0.0
      %526 = vmatpush.msra.mxu0 0.0
      %527 = vmatpush.msra.mxu0 0.0
      %528 = vmatpush.msra.mxu0 0.0
      %529 = vmatpush.msra.mxu0 0.0
      %530 = vmatpush.msra.mxu0 0.0
      %531 = vmatpush.msra.mxu0 0.0
      %532 = vmatpush.msra.mxu0 0.0
      %533 = vmatpush.msra.mxu0 0.0
      %v534 = vand.u32 %v374, 4294901760
      %535 = vmatpush.msra.mxu0 %v534
      %v536 = vand.u32 %v373, 4294901760
      %537 = vmatpush.msra.mxu0 %v536
      %v538 = vand.u32 %v372, 4294901760
      %539 = vmatpush.msra.mxu0 %v538
      %v540 = vand.u32 %v371, 4294901760
      %541 = vmatpush.msra.mxu0 %v540
      %v542 = vand.u32 %v380, 4294901760
      %v543 = vsub.f32 %v380, %v542
      %v544 = vand.u32 %v543, 4294901760
      %545 = vmatmul.f32.gmra.mxu0 %v544
      %v546 = vpop.f32.mrf.mxu0
      %v547 = vadd.f32 %v510, %v546
      %v548 = vand.u32 %v383, 4294901760
      %v549 = vsub.f32 %v383, %v548
      %v550 = vand.u32 %v549, 4294901760
      %551 = vmatmul.f32.gmra.mxu0 %v550
      %v552 = vpop.f32.mrf.mxu0
      %v553 = vadd.f32 %v515, %v552
      %v554 = vand.u32 %v386, 4294901760
      %v555 = vsub.f32 %v386, %v554
      %v556 = vand.u32 %v555, 4294901760
      %557 = vmatmul.f32.gmra.mxu0 %v556
      %v558 = vpop.f32.mrf.mxu0
      %v559 = vadd.f32 %v520, %v558
      %560 = vdwg.mxu0
      %561 = vmatpush.msra.mxu0 0.0
      %562 = vmatpush.msra.mxu0 0.0
      %563 = vmatpush.msra.mxu0 0.0
      %564 = vmatpush.msra.mxu0 0.0
      %565 = vmatpush.msra.mxu0 0.0
      %566 = vmatpush.msra.mxu0 0.0
      %567 = vmatpush.msra.mxu0 0.0
      %568 = vmatpush.msra.mxu0 0.0
      %569 = vmatpush.msra.mxu0 0.0
      %570 = vmatpush.msra.mxu0 0.0
      %571 = vmatpush.msra.mxu0 0.0
      %572 = vmatpush.msra.mxu0 0.0
      %v573 = vand.u32 %v374, 4294901760
      %v574 = vsub.f32 %v374, %v573
      %v575 = vand.u32 %v574, 4294901760
      %576 = vmatpush.msra.mxu0 %v575
      %v577 = vand.u32 %v373, 4294901760
      %v578 = vsub.f32 %v373, %v577
      %v579 = vand.u32 %v578, 4294901760
      %580 = vmatpush.msra.mxu0 %v579
      %v581 = vand.u32 %v372, 4294901760
      %v582 = vsub.f32 %v372, %v581
      %v583 = vand.u32 %v582, 4294901760
      %584 = vmatpush.msra.mxu0 %v583
      %v585 = vand.u32 %v371, 4294901760
      %v586 = vsub.f32 %v371, %v585
      %v587 = vand.u32 %v586, 4294901760
      %588 = vmatpush.msra.mxu0 %v587
      %v589 = vand.u32 %v380, 4294901760
      %590 = vmatmul.f32.gmra.mxu0 %v589
      %v591 = vpop.f32.mrf.mxu0
      %v592 = vadd.f32 %v547, %v591
      %v593 = vand.u32 %v383, 4294901760
      %594 = vmatmul.f32.gmra.mxu0 %v593
      %v595 = vpop.f32.mrf.mxu0
      %v596 = vadd.f32 %v553, %v595
      %v597 = vand.u32 %v386, 4294901760
      %598 = vmatmul.f32.gmra.mxu0 %v597
      %v599 = vpop.f32.mrf.mxu0
      %v600 = vadd.f32 %v559, %v599
      %601 = vdwg.mxu0
      %602 = vmatpush.msra.mxu0 0.0
      %603 = vmatpush.msra.mxu0 0.0
      %604 = vmatpush.msra.mxu0 0.0
      %605 = vmatpush.msra.mxu0 0.0
      %606 = vmatpush.msra.mxu0 0.0
      %607 = vmatpush.msra.mxu0 0.0
      %608 = vmatpush.msra.mxu0 0.0
      %609 = vmatpush.msra.mxu0 0.0
      %610 = vmatpush.msra.mxu0 0.0
      %611 = vmatpush.msra.mxu0 0.0
      %612 = vmatpush.msra.mxu0 0.0
      %613 = vmatpush.msra.mxu0 0.0
      %v614 = vand.u32 %v374, 4294901760
      %615 = vmatpush.msra.mxu0 %v614
      %v616 = vand.u32 %v373, 4294901760
      %617 = vmatpush.msra.mxu0 %v616
      %v618 = vand.u32 %v372, 4294901760
      %619 = vmatpush.msra.mxu0 %v618
      %v620 = vand.u32 %v371, 4294901760
      %621 = vmatpush.msra.mxu0 %v620
      %v622 = vand.u32 %v380, 4294901760
      %623 = vmatmul.f32.gmra.mxu0 %v622
      %v624 = vpop.f32.mrf.mxu0
      %v625 = vadd.f32 %v592, %v624
      %v626 = vand.u32 %v383, 4294901760
      %627 = vmatmul.f32.gmra.mxu0 %v626
      %v628 = vpop.f32.mrf.mxu0
      %v629 = vadd.f32 %v596, %v628
      %v630 = vand.u32 %v386, 4294901760
      %631 = vmatmul.f32.gmra.mxu0 %v630
      %v632 = vpop.f32.mrf.mxu0
      %v633 = vadd.f32 %v600, %v632
      %634 = vdwg.mxu0
      %v635 = vmul.f32 %v625, 0.5
      %v636 = vmul.f32 %v629, 0.5
      %v637 = vmul.f32 %v633, 0.5
      %v638 = vmul.f32 %v625, 0.70710677
      %v639 = vmul.f32 %v629, 0.70710677
      %v640 = vmul.f32 %v633, 0.70710677
      %vm641 = vcmp.ge.f32.partialorder %v638, 0.0
      %vm642 = vcmp.ge.f32.partialorder %v639, 0.0
      %vm643 = vcmp.ge.f32.partialorder %v640, 0.0
      %v644 = vsel %vm641, 1.0, -1.0
      %v645 = vsel %vm642, 1.0, -1.0
      %v646 = vsel %vm643, 1.0, -1.0
      %v647 = vand.u32 2147483647, %v638
      %v648 = vand.u32 2147483647, %v639
      %v649 = vand.u32 2147483647, %v640
      %v650 = vmul.f32 %v647, 0.3275911
      %v651 = vmul.f32 %v648, 0.3275911
      %v652 = vmul.f32 %v649, 0.3275911
      %v653 = vadd.f32 %v650, 1.0
      %v654 = vadd.f32 %v651, 1.0
      %v655 = vadd.f32 %v652, 1.0
      %v656 = vrcp.pop %v653
      %v657 = vmul.f32 %v653, %v656
      %v658 = vsub.f32 1.0, %v657
      %v659 = vmul.f32 %v656, %v658
      %v660 = vadd.f32 %v656, %v659
      %vm661 = vweird.f32 %v653
      %vm662 = vweird.f32 %v656
      %vm663 = vmor %vm661, %vm662
      %v664 = vsel %vm663, %v656, %v660
      %v665 = vand.u32 2147483647, %v653
      %vm666 = vcmp.eq.f32.partialorder %v665, 8.507059e+37
      %v667 = vand.u32 %v653, 2147483648
      %v668 = vor.u32 1.1754944e-38, %v667
      %v669 = vsel %vm666, %v668, %v664
      %v670 = vmul.f32 1.0, %v669
      %v671 = vrcp.pop %v654
      %v672 = vmul.f32 %v654, %v671
      %v673 = vsub.f32 1.0, %v672
      %v674 = vmul.f32 %v671, %v673
      %v675 = vadd.f32 %v671, %v674
      %vm676 = vweird.f32 %v654
      %vm677 = vweird.f32 %v671
      %vm678 = vmor %vm676, %vm677
      %v679 = vsel %vm678, %v671, %v675
      %v680 = vand.u32 2147483647, %v654
      %vm681 = vcmp.eq.f32.partialorder %v680, 8.507059e+37
      %v682 = vand.u32 %v654, 2147483648
      %v683 = vor.u32 1.1754944e-38, %v682
      %v684 = vsel %vm681, %v683, %v679
      %v685 = vmul.f32 1.0, %v684
      %v686 = vrcp.pop %v655
      %v687 = vmul.f32 %v655, %v686
      %v688 = vsub.f32 1.0, %v687
      %v689 = vmul.f32 %v686, %v688
      %v690 = vadd.f32 %v686, %v689
      %vm691 = vweird.f32 %v655
      %vm692 = vweird.f32 %v686
      %vm693 = vmor %vm691, %vm692
      %v694 = vsel %vm693, %v686, %v690
      %v695 = vand.u32 2147483647, %v655
      %vm696 = vcmp.eq.f32.partialorder %v695, 8.507059e+37
      %v697 = vand.u32 %v655, 2147483648
      %v698 = vor.u32 1.1754944e-38, %v697
      %v699 = vsel %vm696, %v698, %v694
      %v700 = vmul.f32 1.0, %v699
      %v701 = vmul.f32 %v670, 1.0614054
      %v702 = vmul.f32 %v685, 1.0614054
      %v703 = vmul.f32 %v700, 1.0614054
      %v704 = vadd.f32 %v701, -1.4531521
      %v705 = vadd.f32 %v702, -1.4531521
      %v706 = vadd.f32 %v703, -1.4531521
      %v707 = vmul.f32 %v704, %v670
      %v708 = vmul.f32 %v705, %v685
      %v709 = vmul.f32 %v706, %v700
      %v710 = vadd.f32 %v707, 1.4214138
      %v711 = vadd.f32 %v708, 1.4214138
      %v712 = vadd.f32 %v709, 1.4214138
      %v713 = vmul.f32 %v710, %v670
      %v714 = vmul.f32 %v711, %v685
      %v715 = vmul.f32 %v712, %v700
      %v716 = vadd.f32 %v713, -0.28449672
      %v717 = vadd.f32 %v714, -0.28449672
      %v718 = vadd.f32 %v715, -0.28449672
      %v719 = vmul.f32 %v716, %v670
      %v720 = vmul.f32 %v717, %v685
      %v721 = vmul.f32 %v718, %v700
      %v722 = vadd.f32 %v719, 0.2548296
      %v723 = vadd.f32 %v720, 0.2548296
      %v724 = vadd.f32 %v721, 0.2548296
      %v725 = vmul.f32 %v722, %v670
      %v726 = vmul.f32 %v723, %v685
      %v727 = vmul.f32 %v724, %v700
      %v728 = vsub.f32 0.0, %v647
      %v729 = vsub.f32 0.0, %v648
      %v730 = vsub.f32 0.0, %v649
      %v731 = vmul.f32 %v728, %v647
      %v732 = vmul.f32 %v729, %v648
      %v733 = vmul.f32 %v730, %v649
      %v734 = vmul.f32 %v731, 1.442695
      %v735 = vpow.pop %v734
      %v736 = vmul.f32 %v732, 1.442695
      %v737 = vpow.pop %v736
      %v738 = vmul.f32 %v733, 1.442695
      %v739 = vpow.pop %v738
      %v740 = vmul.f32 %v725, %v735
      %v741 = vmul.f32 %v726, %v737
      %v742 = vmul.f32 %v727, %v739
      %v743 = vsub.f32 1.0, %v740
      %v744 = vsub.f32 1.0, %v741
      %v745 = vsub.f32 1.0, %v742
      %v746 = vmul.f32 %v644, %v743
      %v747 = vmul.f32 %v645, %v744
      %v748 = vmul.f32 %v646, %v745
      %v749 = vadd.f32 %v746, 1.0
      %v750 = vadd.f32 %v747, 1.0
      %v751 = vadd.f32 %v748, 1.0
      %v752 = vmul.f32 %v635, %v749
      %v753 = vmul.f32 %v636, %v750
      %v754 = vmul.f32 %v637, %v751
      %v755 = vld [vmem:[%s5] sm:$0xff]
      %v756 = vld [vmem:[%s5 + $0x8] sm:$0xff]
      %v757 = vld [vmem:[%s5 + $0x10] sm:$0xff]
      %v758 = vld [vmem:[%s5 + $0x18] sm:$0xff]
      %v759 = vld [vmem:[%s5 + $0x20] sm:$0xff]
      %v760 = vld [vmem:[%s5 + $0x28] sm:$0xff]
      %v761 = vld [vmem:[%s5 + $0x30] sm:$0xff]
      %v762 = vld [vmem:[%s5 + $0x38] sm:$0xff]
      %v763 = vld [vmem:[%s6] sm:$0x1]
      %v765 = vperm.slane %v763, 0
      %vm767 = vcmask 523264
      %v769 = vsel %vm767, %v752, 0
      %v772 = vsel %vm767, %v753, 0
      %v775 = vsel %vm767, %v754, 0
      %777 = vmatpush.msra.mxu0 0.0
      %778 = vmatpush.msra.mxu0 0.0
      %779 = vmatpush.msra.mxu0 0.0
      %780 = vmatpush.msra.mxu0 0.0
      %781 = vmatpush.msra.mxu0 0.0
      %782 = vmatpush.msra.mxu0 0.0
      %783 = vmatpush.msra.mxu0 0.0
      %784 = vmatpush.msra.mxu0 0.0
      %v785 = vand.u32 %v762, 4294901760
      %786 = vmatpush.msra.mxu0 %v785
      %v787 = vand.u32 %v761, 4294901760
      %788 = vmatpush.msra.mxu0 %v787
      %v789 = vand.u32 %v760, 4294901760
      %790 = vmatpush.msra.mxu0 %v789
      %v791 = vand.u32 %v759, 4294901760
      %792 = vmatpush.msra.mxu0 %v791
      %v793 = vand.u32 %v758, 4294901760
      %794 = vmatpush.msra.mxu0 %v793
      %v795 = vand.u32 %v757, 4294901760
      %796 = vmatpush.msra.mxu0 %v795
      %v797 = vand.u32 %v756, 4294901760
      %798 = vmatpush.msra.mxu0 %v797
      %v799 = vand.u32 %v755, 4294901760
      %800 = vmatpush.msra.mxu0 %v799
      %v801 = vand.u32 %v769, 4294901760
      %v802 = vsub.f32 %v769, %v801
      %v803 = vand.u32 %v802, 4294901760
      %v804 = vsub.f32 %v802, %v803
      %v805 = vand.u32 %v804, 4294901760
      %806 = vmatmul.f32.gmra.mxu0 %v805
      %v807 = vpop.f32.mrf.mxu0
      %v808 = vadd.f32 %v765, %v807
      %v809 = vand.u32 %v772, 4294901760
      %v810 = vsub.f32 %v772, %v809
      %v811 = vand.u32 %v810, 4294901760
      %v812 = vsub.f32 %v810, %v811
      %v813 = vand.u32 %v812, 4294901760
      %814 = vmatmul.f32.gmra.mxu0 %v813
      %v815 = vpop.f32.mrf.mxu0
      %v816 = vadd.f32 %v765, %v815
      %v817 = vand.u32 %v775, 4294901760
      %v818 = vsub.f32 %v775, %v817
      %v819 = vand.u32 %v818, 4294901760
      %v820 = vsub.f32 %v818, %v819
      %v821 = vand.u32 %v820, 4294901760
      %822 = vmatmul.f32.gmra.mxu0 %v821
      %v823 = vpop.f32.mrf.mxu0
      %v824 = vadd.f32 %v765, %v823
      %825 = vdwg.mxu0
      %826 = vmatpush.msra.mxu0 0.0
      %827 = vmatpush.msra.mxu0 0.0
      %828 = vmatpush.msra.mxu0 0.0
      %829 = vmatpush.msra.mxu0 0.0
      %830 = vmatpush.msra.mxu0 0.0
      %831 = vmatpush.msra.mxu0 0.0
      %832 = vmatpush.msra.mxu0 0.0
      %833 = vmatpush.msra.mxu0 0.0
      %v834 = vand.u32 %v762, 4294901760
      %v835 = vsub.f32 %v762, %v834
      %v836 = vand.u32 %v835, 4294901760
      %v837 = vsub.f32 %v835, %v836
      %v838 = vand.u32 %v837, 4294901760
      %839 = vmatpush.msra.mxu0 %v838
      %v840 = vand.u32 %v761, 4294901760
      %v841 = vsub.f32 %v761, %v840
      %v842 = vand.u32 %v841, 4294901760
      %v843 = vsub.f32 %v841, %v842
      %v844 = vand.u32 %v843, 4294901760
      %845 = vmatpush.msra.mxu0 %v844
      %v846 = vand.u32 %v760, 4294901760
      %v847 = vsub.f32 %v760, %v846
      %v848 = vand.u32 %v847, 4294901760
      %v849 = vsub.f32 %v847, %v848
      %v850 = vand.u32 %v849, 4294901760
      %851 = vmatpush.msra.mxu0 %v850
      %v852 = vand.u32 %v759, 4294901760
      %v853 = vsub.f32 %v759, %v852
      %v854 = vand.u32 %v853, 4294901760
      %v855 = vsub.f32 %v853, %v854
      %v856 = vand.u32 %v855, 4294901760
      %857 = vmatpush.msra.mxu0 %v856
      %v858 = vand.u32 %v758, 4294901760
      %v859 = vsub.f32 %v758, %v858
      %v860 = vand.u32 %v859, 4294901760
      %v861 = vsub.f32 %v859, %v860
      %v862 = vand.u32 %v861, 4294901760
      %863 = vmatpush.msra.mxu0 %v862
      %v864 = vand.u32 %v757, 4294901760
      %v865 = vsub.f32 %v757, %v864
      %v866 = vand.u32 %v865, 4294901760
      %v867 = vsub.f32 %v865, %v866
      %v868 = vand.u32 %v867, 4294901760
      %869 = vmatpush.msra.mxu0 %v868
      %v870 = vand.u32 %v756, 4294901760
      %v871 = vsub.f32 %v756, %v870
      %v872 = vand.u32 %v871, 4294901760
      %v873 = vsub.f32 %v871, %v872
      %v874 = vand.u32 %v873, 4294901760
      %875 = vmatpush.msra.mxu0 %v874
      %v876 = vand.u32 %v755, 4294901760
      %v877 = vsub.f32 %v755, %v876
      %v878 = vand.u32 %v877, 4294901760
      %v879 = vsub.f32 %v877, %v878
      %v880 = vand.u32 %v879, 4294901760
      %881 = vmatpush.msra.mxu0 %v880
      %v882 = vand.u32 %v769, 4294901760
      %883 = vmatmul.f32.gmra.mxu0 %v882
      %v884 = vpop.f32.mrf.mxu0
      %v885 = vadd.f32 %v808, %v884
      %v886 = vand.u32 %v772, 4294901760
      %887 = vmatmul.f32.gmra.mxu0 %v886
      %v888 = vpop.f32.mrf.mxu0
      %v889 = vadd.f32 %v816, %v888
      %v890 = vand.u32 %v775, 4294901760
      %891 = vmatmul.f32.gmra.mxu0 %v890
      %v892 = vpop.f32.mrf.mxu0
      %v893 = vadd.f32 %v824, %v892
      %894 = vdwg.mxu0
      %895 = vmatpush.msra.mxu0 0.0
      %896 = vmatpush.msra.mxu0 0.0
      %897 = vmatpush.msra.mxu0 0.0
      %898 = vmatpush.msra.mxu0 0.0
      %899 = vmatpush.msra.mxu0 0.0
      %900 = vmatpush.msra.mxu0 0.0
      %901 = vmatpush.msra.mxu0 0.0
      %902 = vmatpush.msra.mxu0 0.0
      %v903 = vand.u32 %v762, 4294901760
      %v904 = vsub.f32 %v762, %v903
      %905 = vmatpush.msra.mxu0 %v904
      %v906 = vand.u32 %v761, 4294901760
      %v907 = vsub.f32 %v761, %v906
      %908 = vmatpush.msra.mxu0 %v907
      %v909 = vand.u32 %v760, 4294901760
      %v910 = vsub.f32 %v760, %v909
      %911 = vmatpush.msra.mxu0 %v910
      %v912 = vand.u32 %v759, 4294901760
      %v913 = vsub.f32 %v759, %v912
      %914 = vmatpush.msra.mxu0 %v913
      %v915 = vand.u32 %v758, 4294901760
      %v916 = vsub.f32 %v758, %v915
      %917 = vmatpush.msra.mxu0 %v916
      %v918 = vand.u32 %v757, 4294901760
      %v919 = vsub.f32 %v757, %v918
      %920 = vmatpush.msra.mxu0 %v919
      %v921 = vand.u32 %v756, 4294901760
      %v922 = vsub.f32 %v756, %v921
      %923 = vmatpush.msra.mxu0 %v922
      %v924 = vand.u32 %v755, 4294901760
      %v925 = vsub.f32 %v755, %v924
      %926 = vmatpush.msra.mxu0 %v925
      %v927 = vand.u32 %v769, 4294901760
      %v928 = vsub.f32 %v769, %v927
      %929 = vmatmul.f32.gmra.mxu0 %v928
      %v930 = vpop.f32.mrf.mxu0
      %v931 = vadd.f32 %v885, %v930
      %v932 = vand.u32 %v772, 4294901760
      %v933 = vsub.f32 %v772, %v932
      %934 = vmatmul.f32.gmra.mxu0 %v933
      %v935 = vpop.f32.mrf.mxu0
      %v936 = vadd.f32 %v889, %v935
      %v937 = vand.u32 %v775, 4294901760
      %v938 = vsub.f32 %v775, %v937
      %939 = vmatmul.f32.gmra.mxu0 %v938
      %v940 = vpop.f32.mrf.mxu0
      %v941 = vadd.f32 %v893, %v940
      %942 = vdwg.mxu0
      %943 = vmatpush.msra.mxu0 0.0
      %944 = vmatpush.msra.mxu0 0.0
      %945 = vmatpush.msra.mxu0 0.0
      %946 = vmatpush.msra.mxu0 0.0
      %947 = vmatpush.msra.mxu0 0.0
      %948 = vmatpush.msra.mxu0 0.0
      %949 = vmatpush.msra.mxu0 0.0
      %950 = vmatpush.msra.mxu0 0.0
      %v951 = vand.u32 %v762, 4294901760
      %952 = vmatpush.msra.mxu0 %v951
      %v953 = vand.u32 %v761, 4294901760
      %954 = vmatpush.msra.mxu0 %v953
      %v955 = vand.u32 %v760, 4294901760
      %956 = vmatpush.msra.mxu0 %v955
      %v957 = vand.u32 %v759, 4294901760
      %958 = vmatpush.msra.mxu0 %v957
      %v959 = vand.u32 %v758, 4294901760
      %960 = vmatpush.msra.mxu0 %v959
      %v961 = vand.u32 %v757, 4294901760
      %962 = vmatpush.msra.mxu0 %v961
      %v963 = vand.u32 %v756, 4294901760
      %964 = vmatpush.msra.mxu0 %v963
      %v965 = vand.u32 %v755, 4294901760
      %966 = vmatpush.msra.mxu0 %v965
      %v967 = vand.u32 %v769, 4294901760
      %v968 = vsub.f32 %v769, %v967
      %v969 = vand.u32 %v968, 4294901760
      %970 = vmatmul.f32.gmra.mxu0 %v969
      %v971 = vpop.f32.mrf.mxu0
      %v972 = vadd.f32 %v931, %v971
      %v973 = vand.u32 %v772, 4294901760
      %v974 = vsub.f32 %v772, %v973
      %v975 = vand.u32 %v974, 4294901760
      %976 = vmatmul.f32.gmra.mxu0 %v975
      %v977 = vpop.f32.mrf.mxu0
      %v978 = vadd.f32 %v936, %v977
      %v979 = vand.u32 %v775, 4294901760
      %v980 = vsub.f32 %v775, %v979
      %v981 = vand.u32 %v980, 4294901760
      %982 = vmatmul.f32.gmra.mxu0 %v981
      %v983 = vpop.f32.mrf.mxu0
      %v984 = vadd.f32 %v941, %v983
      %985 = vdwg.mxu0
      %986 = vmatpush.msra.mxu0 0.0
      %987 = vmatpush.msra.mxu0 0.0
      %988 = vmatpush.msra.mxu0 0.0
      %989 = vmatpush.msra.mxu0 0.0
      %990 = vmatpush.msra.mxu0 0.0
      %991 = vmatpush.msra.mxu0 0.0
      %992 = vmatpush.msra.mxu0 0.0
      %993 = vmatpush.msra.mxu0 0.0
      %v994 = vand.u32 %v762, 4294901760
      %v995 = vsub.f32 %v762, %v994
      %v996 = vand.u32 %v995, 4294901760
      %997 = vmatpush.msra.mxu0 %v996
      %v998 = vand.u32 %v761, 4294901760
      %v999 = vsub.f32 %v761, %v998
      %v1000 = vand.u32 %v999, 4294901760
      %1001 = vmatpush.msra.mxu0 %v1000
      %v1002 = vand.u32 %v760, 4294901760
      %v1003 = vsub.f32 %v760, %v1002
      %v1004 = vand.u32 %v1003, 4294901760
      %1005 = vmatpush.msra.mxu0 %v1004
      %v1006 = vand.u32 %v759, 4294901760
      %v1007 = vsub.f32 %v759, %v1006
      %v1008 = vand.u32 %v1007, 4294901760
      %1009 = vmatpush.msra.mxu0 %v1008
      %v1010 = vand.u32 %v758, 4294901760
      %v1011 = vsub.f32 %v758, %v1010
      %v1012 = vand.u32 %v1011, 4294901760
      %1013 = vmatpush.msra.mxu0 %v1012
      %v1014 = vand.u32 %v757, 4294901760
      %v1015 = vsub.f32 %v757, %v1014
      %v1016 = vand.u32 %v1015, 4294901760
      %1017 = vmatpush.msra.mxu0 %v1016
      %v1018 = vand.u32 %v756, 4294901760
      %v1019 = vsub.f32 %v756, %v1018
      %v1020 = vand.u32 %v1019, 4294901760
      %1021 = vmatpush.msra.mxu0 %v1020
      %v1022 = vand.u32 %v755, 4294901760
      %v1023 = vsub.f32 %v755, %v1022
      %v1024 = vand.u32 %v1023, 4294901760
      %1025 = vmatpush.msra.mxu0 %v1024
      %v1026 = vand.u32 %v769, 4294901760
      %1027 = vmatmul.f32.gmra.mxu0 %v1026
      %v1028 = vpop.f32.mrf.mxu0
      %v1029 = vadd.f32 %v972, %v1028
      %v1030 = vand.u32 %v772, 4294901760
      %1031 = vmatmul.f32.gmra.mxu0 %v1030
      %v1032 = vpop.f32.mrf.mxu0
      %v1033 = vadd.f32 %v978, %v1032
      %v1034 = vand.u32 %v775, 4294901760
      %1035 = vmatmul.f32.gmra.mxu0 %v1034
      %v1036 = vpop.f32.mrf.mxu0
      %v1037 = vadd.f32 %v984, %v1036
      %1038 = vdwg.mxu0
      %1039 = vmatpush.msra.mxu0 0.0
      %1040 = vmatpush.msra.mxu0 0.0
      %1041 = vmatpush.msra.mxu0 0.0
      %1042 = vmatpush.msra.mxu0 0.0
      %1043 = vmatpush.msra.mxu0 0.0
      %1044 = vmatpush.msra.mxu0 0.0
      %1045 = vmatpush.msra.mxu0 0.0
      %1046 = vmatpush.msra.mxu0 0.0
      %v1047 = vand.u32 %v762, 4294901760
      %1048 = vmatpush.msra.mxu0 %v1047
      %v1049 = vand.u32 %v761, 4294901760
      %1050 = vmatpush.msra.mxu0 %v1049
      %v1051 = vand.u32 %v760, 4294901760
      %1052 = vmatpush.msra.mxu0 %v1051
      %v1053 = vand.u32 %v759, 4294901760
      %1054 = vmatpush.msra.mxu0 %v1053
      %v1055 = vand.u32 %v758, 4294901760
      %1056 = vmatpush.msra.mxu0 %v1055
      %v1057 = vand.u32 %v757, 4294901760
      %1058 = vmatpush.msra.mxu0 %v1057
      %v1059 = vand.u32 %v756, 4294901760
      %1060 = vmatpush.msra.mxu0 %v1059
      %v1061 = vand.u32 %v755, 4294901760
      %1062 = vmatpush.msra.mxu0 %v1061
      %v1063 = vand.u32 %v769, 4294901760
      %1064 = vmatmul.f32.gmra.mxu0 %v1063
      %v1065 = vpop.f32.mrf.mxu0
      %v1066 = vadd.f32 %v1029, %v1065
      %v1067 = vand.u32 %v772, 4294901760
      %1068 = vmatmul.f32.gmra.mxu0 %v1067
      %v1069 = vpop.f32.mrf.mxu0
      %v1070 = vadd.f32 %v1033, %v1069
      %v1071 = vand.u32 %v775, 4294901760
      %1072 = vmatmul.f32.gmra.mxu0 %v1071
      %v1073 = vpop.f32.mrf.mxu0
      %v1074 = vadd.f32 %v1037, %v1073
      %1075 = vdwg.mxu0
      %v1076 = vadd.f32 %v1066, %v279
      %v1077 = vadd.f32 %v1070, %v280
      %v1078 = vadd.f32 %v1074, %v281
      %1079 = vst.msk [vmem:[%s278] sm:$0xff] %vm284, %v1076
      %1080 = vst.msk [vmem:[%s278 + $0x8] sm:$0xff] %vm284, %v1077
      %1081 = vst.msk [vmem:[%s278 + $0x10] sm:$0x1] %vm291, %v1078
      %p1082 = scmp.lt.s32.totalorder %s18, 1
      %s1083 = scalar_select %p1082, %s18, 1
      %s1084 = smul.addr %s1083, 3
      %s1085 = smul.addr %s1084, 8
      %s1086 = scalar_lea.vmem %s7, %s1085
      // Predicated region
      $region49: #{vit_forward.8} parent=47 // pred_check
        %p1087 = pneg %p188
      $region50: #{vit_forward.8} parent=47 // pred_check_branch
        %1089 = sbr.rel (%p1087) target = $region52
      $region51: #{vit_forward.8} parent=47 // pred_region
        _
      $region52: #{vit_forward.8} parent=47 // pred_fallthru
        _
    $region48: #{vit_forward.8} parent=5 // pred_fallthru
      _
    %p1090 = scmp.le.s32.totalorder 2, %s13
    // Predicated region
    $region53: #{vit_forward.8} parent=5 // pred_check
      %p1091 = pneg %p1090
    $region54: #{vit_forward.8} parent=5 // pred_check_branch
      %1093 = sbr.rel (%p1091) target = $region56
    $region55: #{vit_forward.8} parent=5 // pred_region
      %s1094 = ssub.s32 %s13, 2
      // Predicated region
      $region57: #{vit_forward.8} parent=55 // pred_check
        %p1095 = pneg %p194
      $region58: #{vit_forward.8} parent=55 // pred_check_branch
        %1097 = sbr.rel (%p1095) target = $region60
      $region59: #{vit_forward.8} parent=55 // pred_region
        %p1098 = scmp.lt.s32.totalorder %s19, 1
        %s1099 = scalar_select %p1098, %s19, 1
        %s1100 = smul.addr %s1099, 3
        %s1101 = smul.addr %s1100, 8
        %s1102 = scalar_lea.vmem %s7, %s1101
      $region60: #{vit_forward.8} parent=55 // pred_fallthru
        _
    $region56: #{vit_forward.8} parent=5 // pred_fallthru
      _
  $region6: #{vit_forward.8} parent=0 // loop_footer
    %s17 = sadd.s32 1, %s13
  $region7: #{vit_forward.8} parent=0 // loop_footer_branch
    %12 = sbr.rel target = $region3
  $region8: #{vit_forward.8} parent=0 // loop_exit
    _

// kernel: vit_forward.11
$region0: #{vit_forward.11}
  #allocation0 [shape = 'u32[]', space=smem, size = 0x4, offset = 0x4, fixed_abs, tag = 'smem constant byte address 0x4 - core index']
  #allocation1 [shape = 'u32[72,128]{1,0:T(1,128)}', space=vmem, size = 0x9000, scoped, tag = 'internal scratch']
  %s0 = inlined_call_operand.vmem [shape: f32[2,32], index: 0, kind: input, shape index: {}]
  %s1 = inlined_call_operand.vmem [shape: f32[1,32], index: 1, kind: input, shape index: {}]
  %s2 = inlined_call_operand.vmem [shape: f32[1,32], index: 2, kind: input, shape index: {}]
  %s3 = inlined_call_operand.vmem [shape: f32[32,10], index: 3, kind: input, shape index: {}]
  %s4 = inlined_call_operand.vmem [shape: f32[1,10], index: 4, kind: input, shape index: {}]
  %s5 = inlined_call_operand.hbm [shape: f32[2,10], index: 5, kind: output, shape index: {}]
  %s6 = sld [smem:[#allocation0]]
  $region30: #{vit_forward.11} parent=0
    _
  %s8 = ssub.s32 1, %s6
  %s9 = scalar_select 0, %s8, %s6
  $region1: #{vit_forward.11} parent=0
    #allocation2 [shape = 'u8[1024]{0}', space=vmem, size = 0x400, scoped, tag = 'output window, operand 0, single buffered']
    #allocation3 [shape = 's32[1]{0}', space=sflag, size = 0x4, scoped, tag = 'scoped memory for vit_forward.11']
    %10 = vsyncpa [#allocation3], 0
    // Predicated region
    $region2: #{vit_forward.11} parent=1 // pred_check
      _
    $region3: #{vit_forward.11} parent=1 // pred_check_branch
      %12 = sbr.rel (0) target = $region5
    $region4: #{vit_forward.11} parent=1 // pred_region
      _
    $region5: #{vit_forward.11} parent=1 // pred_fallthru
      _
    // Predicated region
    $region6: #{vit_forward.11} parent=1 // pred_check
      _
    $region7: #{vit_forward.11} parent=1 // pred_check_branch
      %14 = sbr.rel (0) target = $region9
    $region8: #{vit_forward.11} parent=1 // pred_region
      _
    $region9: #{vit_forward.11} parent=1 // pred_fallthru
      _
    // Predicated region
    $region10: #{vit_forward.11} parent=1 // pred_check
      _
    $region11: #{vit_forward.11} parent=1 // pred_check_branch
      %16 = sbr.rel (0) target = $region13
    $region12: #{vit_forward.11} parent=1 // pred_region
      _
    $region13: #{vit_forward.11} parent=1 // pred_fallthru
      _
    // Predicated region
    $region14: #{vit_forward.11} parent=1 // pred_check
      _
    $region15: #{vit_forward.11} parent=1 // pred_check_branch
      %18 = sbr.rel (0) target = $region17
    $region16: #{vit_forward.11} parent=1 // pred_region
      _
    $region17: #{vit_forward.11} parent=1 // pred_fallthru
      _
    // Predicated region
    $region18: #{vit_forward.11} parent=1 // pred_check
      _
    $region19: #{vit_forward.11} parent=1 // pred_check_branch
      %20 = sbr.rel (0) target = $region21
    $region20: #{vit_forward.11} parent=1 // pred_region
      _
    $region21: #{vit_forward.11} parent=1 // pred_fallthru
      _
    %v21 = vld [vmem:[%s0] sm:$0x3]
    %v22 = vld [vmem:[%s1] sm:$0x1]
    %v23 = vld [vmem:[%s2] sm:$0x1]
    %vm24 = vcmask 254976
    %v25 = vsel %vm24, %v21, 0.0
    %26 = vadd.xlane.f32.xlu0 %v25
    %v27 = vpop.xlane.xlu0 %26
    %v28 = vrcp.pop 32.0
    %v29 = vmul.f32 32.0, %v28
    %v30 = vsub.f32 1.0, %v29
    %v31 = vmul.f32 %v28, %v30
    %v32 = vadd.f32 %v28, %v31
    %vm33 = vweird.f32 %v28
    %v34 = vsel %vm33, %v28, %v32
    %v35 = vmul.f32 %v27, %v34
    %v36 = vsub.f32 %v21, %v35
    %v37 = vmul.f32 %v36, %v36
    %v38 = vsel %vm24, %v37, 0.0
    %39 = vadd.xlane.f32.xlu0 %v38
    %v40 = vpop.xlane.xlu0 %39
    %v41 = vmul.f32 %v40, %v34
    %v42 = vadd.f32 %v41, 1e-05
    %v43 = vrsqrt.pop %v42
    %v44 = vmul.f32 %v43, %v42
    %v45 = vmul.f32 %v44, %v43
    %v46 = vmul.f32 0.5, %v45
    %v47 = vsub.f32 1.5, %v46
    %v48 = vmul.f32 %v43, %v47
    %vm49 = vweird.f32 %v42
    %vm50 = vweird.f32 %v43
    %vm51 = vmor %vm49, %vm50
    %v52 = vsel %vm51, %v43, %v48
    %v53 = vmul.f32 %v36, %v52
    %v55 = vperm.slane %v22, 0
    %v57 = vmul.f32 %v53, %v55
    %v59 = vperm.slane %v23, 0
    %v61 = vadd.f32 %v57, %v59
    %v62 = vld [vmem:[%s3] sm:$0xff]
    %v63 = vld [vmem:[%s3 + $0x8] sm:$0xff]
    %v64 = vld [vmem:[%s3 + $0x10] sm:$0xff]
    %v65 = vld [vmem:[%s3 + $0x18] sm:$0xff]
    %v66 = vld [vmem:[%s4] sm:$0x1]
    %v68 = vperm.slane %v66, 0
    %vm70 = vcmask 261120
    %v72 = vsel %vm70, %v61, 0
    %74 = vmatpush.msra.mxu0 0.0
    %75 = vmatpush.msra.mxu0 0.0
    %76 = vmatpush.msra.mxu0 0.0
    %77 = vmatpush.msra.mxu0 0.0
    %78 = vmatpush.msra.mxu0 0.0
    %79 = vmatpush.msra.mxu0 0.0
    %80 = vmatpush.msra.mxu0 0.0
    %81 = vmatpush.msra.mxu0 0.0
    %82 = vmatpush.msra.mxu0 0.0
    %83 = vmatpush.msra.mxu0 0.0
    %84 = vmatpush.msra.mxu0 0.0
    %85 = vmatpush.msra.mxu0 0.0
    %v86 = vand.u32 %v65, 4294901760
    %87 = vmatpush.msra.mxu0 %v86
    %v88 = vand.u32 %v64, 4294901760
    %89 = vmatpush.msra.mxu0 %v88
    %v90 = vand.u32 %v63, 4294901760
    %91 = vmatpush.msra.mxu0 %v90
    %v92 = vand.u32 %v62, 4294901760
    %93 = vmatpush.msra.mxu0 %v92
    %v94 = vand.u32 %v72, 4294901760
    %v95 = vsub.f32 %v72, %v94
    %v96 = vand.u32 %v95, 4294901760
    %v97 = vsub.f32 %v95, %v96
    %v98 = vand.u32 %v97, 4294901760
    %99 = vmatmul.f32.gmra.mxu0 %v98
    %v100 = vpop.f32.mrf.mxu0
    %v101 = vadd.f32 %v68, %v100
    %102 = vdwg.mxu0
    %103 = vmatpush.msra.mxu0 0.0
    %104 = vmatpush.msra.mxu0 0.0
    %105 = vmatpush.msra.mxu0 0.0
    %106 = vmatpush.msra.mxu0 0.0
    %107 = vmatpush.msra.mxu0 0.0
    %108 = vmatpush.msra.mxu0 0.0
    %109 = vmatpush.msra.mxu0 0.0
    %110 = vmatpush.msra.mxu0 0.0
    %111 = vmatpush.msra.mxu0 0.0
    %112 = vmatpush.msra.mxu0 0.0
    %113 = vmatpush.msra.mxu0 0.0
    %114 = vmatpush.msra.mxu0 0.0
    %v115 = vand.u32 %v65, 4294901760
    %v116 = vsub.f32 %v65, %v115
    %v117 = vand.u32 %v116, 4294901760
    %v118 = vsub.f32 %v116, %v117
    %v119 = vand.u32 %v118, 4294901760
    %120 = vmatpush.msra.mxu0 %v119
    %v121 = vand.u32 %v64, 4294901760
    %v122 = vsub.f32 %v64, %v121
    %v123 = vand.u32 %v122, 4294901760
    %v124 = vsub.f32 %v122, %v123
    %v125 = vand.u32 %v124, 4294901760
    %126 = vmatpush.msra.mxu0 %v125
    %v127 = vand.u32 %v63, 4294901760
    %v128 = vsub.f32 %v63, %v127
    %v129 = vand.u32 %v128, 4294901760
    %v130 = vsub.f32 %v128, %v129
    %v131 = vand.u32 %v130, 4294901760
    %132 = vmatpush.msra.mxu0 %v131
    %v133 = vand.u32 %v62, 4294901760
    %v134 = vsub.f32 %v62, %v133
    %v135 = vand.u32 %v134, 4294901760
    %v136 = vsub.f32 %v134, %v135
    %v137 = vand.u32 %v136, 4294901760
    %138 = vmatpush.msra.mxu0 %v137
    %v139 = vand.u32 %v72, 4294901760
    %140 = vmatmul.f32.gmra.mxu0 %v139
    %v141 = vpop.f32.mrf.mxu0
    %v142 = vadd.f32 %v101, %v141
    %143 = vdwg.mxu0
    %144 = vmatpush.msra.mxu0 0.0
    %145 = vmatpush.msra.mxu0 0.0
    %146 = vmatpush.msra.mxu0 0.0
    %147 = vmatpush.msra.mxu0 0.0
    %148 = vmatpush.msra.mxu0 0.0
    %149 = vmatpush.msra.mxu0 0.0
    %150 = vmatpush.msra.mxu0 0.0
    %151 = vmatpush.msra.mxu0 0.0
    %152 = vmatpush.msra.mxu0 0.0
    %153 = vmatpush.msra.mxu0 0.0
    %154 = vmatpush.msra.mxu0 0.0
    %155 = vmatpush.msra.mxu0 0.0
    %v156 = vand.u32 %v65, 4294901760
    %v157 = vsub.f32 %v65, %v156
    %158 = vmatpush.msra.mxu0 %v157
    %v159 = vand.u32 %v64, 4294901760
    %v160 = vsub.f32 %v64, %v159
    %161 = vmatpush.msra.mxu0 %v160
    %v162 = vand.u32 %v63, 4294901760
    %v163 = vsub.f32 %v63, %v162
    %164 = vmatpush.msra.mxu0 %v163
    %v165 = vand.u32 %v62, 4294901760
    %v166 = vsub.f32 %v62, %v165
    %167 = vmatpush.msra.mxu0 %v166
    %v168 = vand.u32 %v72, 4294901760
    %v169 = vsub.f32 %v72, %v168
    %170 = vmatmul.f32.gmra.mxu0 %v169
    %v171 = vpop.f32.mrf.mxu0
    %v172 = vadd.f32 %v142, %v171
    %173 = vdwg.mxu0
    %174 = vmatpush.msra.mxu0 0.0
    %175 = vmatpush.msra.mxu0 0.0
    %176 = vmatpush.msra.mxu0 0.0
    %177 = vmatpush.msra.mxu0 0.0
    %178 = vmatpush.msra.mxu0 0.0
    %179 = vmatpush.msra.mxu0 0.0
    %180 = vmatpush.msra.mxu0 0.0
    %181 = vmatpush.msra.mxu0 0.0
    %182 = vmatpush.msra.mxu0 0.0
    %183 = vmatpush.msra.mxu0 0.0
    %184 = vmatpush.msra.mxu0 0.0
    %185 = vmatpush.msra.mxu0 0.0
    %v186 = vand.u32 %v65, 4294901760
    %187 = vmatpush.msra.mxu0 %v186
    %v188 = vand.u32 %v64, 4294901760
    %189 = vmatpush.msra.mxu0 %v188
    %v190 = vand.u32 %v63, 4294901760
    %191 = vmatpush.msra.mxu0 %v190
    %v192 = vand.u32 %v62, 4294901760
    %193 = vmatpush.msra.mxu0 %v192
    %v194 = vand.u32 %v72, 4294901760
    %v195 = vsub.f32 %v72, %v194
    %v196 = vand.u32 %v195, 4294901760
    %197 = vmatmul.f32.gmra.mxu0 %v196
    %v198 = vpop.f32.mrf.mxu0
    %v199 = vadd.f32 %v172, %v198
    %200 = vdwg.mxu0
    %201 = vmatpush.msra.mxu0 0.0
    %202 = vmatpush.msra.mxu0 0.0
    %203 = vmatpush.msra.mxu0 0.0
    %204 = vmatpush.msra.mxu0 0.0
    %205 = vmatpush.msra.mxu0 0.0
    %206 = vmatpush.msra.mxu0 0.0
    %207 = vmatpush.msra.mxu0 0.0
    %208 = vmatpush.msra.mxu0 0.0
    %209 = vmatpush.msra.mxu0 0.0
    %210 = vmatpush.msra.mxu0 0.0
    %211 = vmatpush.msra.mxu0 0.0
    %212 = vmatpush.msra.mxu0 0.0
    %v213 = vand.u32 %v65, 4294901760
    %v214 = vsub.f32 %v65, %v213
    %v215 = vand.u32 %v214, 4294901760
    %216 = vmatpush.msra.mxu0 %v215
    %v217 = vand.u32 %v64, 4294901760
    %v218 = vsub.f32 %v64, %v217
    %v219 = vand.u32 %v218, 4294901760
    %220 = vmatpush.msra.mxu0 %v219
    %v221 = vand.u32 %v63, 4294901760
    %v222 = vsub.f32 %v63, %v221
    %v223 = vand.u32 %v222, 4294901760
    %224 = vmatpush.msra.mxu0 %v223
    %v225 = vand.u32 %v62, 4294901760
    %v226 = vsub.f32 %v62, %v225
    %v227 = vand.u32 %v226, 4294901760
    %228 = vmatpush.msra.mxu0 %v227
    %v229 = vand.u32 %v72, 4294901760
    %230 = vmatmul.f32.gmra.mxu0 %v229
    %v231 = vpop.f32.mrf.mxu0
    %v232 = vadd.f32 %v199, %v231
    %233 = vdwg.mxu0
    %234 = vmatpush.msra.mxu0 0.0
    %235 = vmatpush.msra.mxu0 0.0
    %236 = vmatpush.msra.mxu0 0.0
    %237 = vmatpush.msra.mxu0 0.0
    %238 = vmatpush.msra.mxu0 0.0
    %239 = vmatpush.msra.mxu0 0.0
    %240 = vmatpush.msra.mxu0 0.0
    %241 = vmatpush.msra.mxu0 0.0
    %242 = vmatpush.msra.mxu0 0.0
    %243 = vmatpush.msra.mxu0 0.0
    %244 = vmatpush.msra.mxu0 0.0
    %245 = vmatpush.msra.mxu0 0.0
    %v246 = vand.u32 %v65, 4294901760
    %247 = vmatpush.msra.mxu0 %v246
    %v248 = vand.u32 %v64, 4294901760
    %249 = vmatpush.msra.mxu0 %v248
    %v250 = vand.u32 %v63, 4294901760
    %251 = vmatpush.msra.mxu0 %v250
    %v252 = vand.u32 %v62, 4294901760
    %253 = vmatpush.msra.mxu0 %v252
    %v254 = vand.u32 %v72, 4294901760
    %255 = vmatmul.f32.gmra.mxu0 %v254
    %v256 = vpop.f32.mrf.mxu0
    %v257 = vadd.f32 %v232, %v256
    %258 = vdwg.mxu0
    %vm259 = vcmask 74752
    %260 = vst.msk [vmem:[#allocation2] sm:$0x3] %vm259, %v257
    // Predicated region
    $region22: #{vit_forward.11} parent=1 // pred_check
      _
    $region23: #{vit_forward.11} parent=1 // pred_check_branch
      %262 = sbr.rel (0) target = $region25
    $region24: #{vit_forward.11} parent=1 // pred_region
      %264 = vsyncadd [#allocation3], 0
      %s266 = sshll.u32 [#allocation2], 4
      %s267 = int_to_ptr.vmem [resolvable:$true] %s266
      %s268 = sshll.u32 %s5, 4
      %s269 = int_to_ptr.hbm [resolvable:$true] %s268
      %271 = dma.vmem_to_hbm [thread:$0]  %s267, 32, %s269, [#allocation3]
    $region25: #{vit_forward.11} parent=1 // pred_fallthru
      _
    // Predicated region
    $region26: #{vit_forward.11} parent=1 // pred_check
      _
    $region27: #{vit_forward.11} parent=1 // pred_check_branch
      %273 = sbr.rel (0) target = $region29
    $region28: #{vit_forward.11} parent=1 // pred_region
      %275 = dma.done [#allocation3], 32
    $region29: #{vit_forward.11} parent=1 // pred_fallthru
      _
    %276 = vsyncpa [#allocation3], 1

</llo_original>
